<compile_context>
chip_gen: v7x
topology: tpu7x:2x2x1
jax: 0.10.0
libtpu: 0.0.40
codegen_flags: <defaults>
</compile_context>

<pallas_src>
import functools

import numpy as np
import jax
import jax.numpy as jnp
from jax.experimental import pallas as pl
from jax.experimental.pallas import tpu as pltpu


# ----------------------------------------------------------------------------
# Kernel: one batch element per grid step.
# ----------------------------------------------------------------------------
def _transition_kernel(x_ref, z_ref, mask_ref, w1_ref, b1_ref, w2_ref, b2_ref,
                       out_ref, *, taps):
    """x_ref/out_ref: (C, N) f32; z_ref: (C, 9) f32; mask_ref: (9, N) f32 0/1;
    w*_ref: (9, Cout, Cin) per-tap weights; b*_ref: (Cout, 1).
    `taps` is a static tuple of (tap_index, lane_roll_shift) for the 8
    non-center taps; tap 4 (center) needs no roll and no mask."""
    f32 = jnp.float32
    x = x_ref[...]                                   # (C, N) f32
    masks = mask_ref[...]                            # (9, N) f32

    def conv3x3(xin, w_ref):
        # 3x3 conv (padding=1) as 9 accumulating per-tap matmuls.
        acc = jnp.dot(w_ref[4], xin, preferred_element_type=f32)       # center
        for t, shift in taps:
            xt = pltpu.roll(xin, shift=shift, axis=1) * masks[t:t + 1, :]
            acc = acc + jnp.dot(w_ref[t], xt, preferred_element_type=f32)
        return acc

    # conv1 + BN (folded) + ReLU.  The spatially-constant action-embedding
    # channels contribute a per-pixel bias = z (C,9) @ valid-tap mask (9,N).
    bias_act = jnp.dot(z_ref[...], masks, preferred_element_type=f32)  # (C, N)
    y = jnp.maximum(conv3x3(x, w1_ref) + bias_act + b1_ref[...], 0.0)

    # conv2 + BN (folded, no ReLU), then the residual connection.
    delta = conv3x3(y, w2_ref) + b2_ref[...]
    out_ref[...] = x + delta


# ----------------------------------------------------------------------------
# Parameter construction (deterministic, synthetic; BN folded into convs).
# Conv weights are built in HWIO (ky, kx, cin, cout); real PyTorch weights
# (cout, cin, kh, kw) must be permuted with .transpose(2, 3, 1, 0) first.
# ----------------------------------------------------------------------------
class _ParamGen:
    def __init__(self, key):
        self._key = key

    def normal(self, shape, scale=1.0):
        self._key, sub = jax.random.split(self._key)
        return scale * jax.random.normal(sub, shape, dtype=jnp.float32)


def _fold_bn(w, b, gamma, beta, mean, var, eps=1e-5):
    s = gamma / jnp.sqrt(var + eps)
    return w * s, (b - mean) * s + beta


def build_params(hidden_dim, key):
    h = hidden_dim
    g = _ParamGen(key)

    def conv(cin, cout, k=1):
        if k == 1:
            w = g.normal((cin, cout), 1.0 / np.sqrt(cin))
        else:
            w = g.normal((k, k, cin, cout), 1.0 / np.sqrt(cin * k * k))
        b = g.normal((cout,), 0.02)
        return w, b

    def bn(c):
        gamma = 1.0 + 0.1 * g.normal((c,))
        beta = 0.1 * g.normal((c,))
        mean = 0.1 * g.normal((c,))
        var = 1.0 + 0.2 * jnp.abs(g.normal((c,)))
        return gamma, beta, mean, var

    def conv_bn(cin, cout, k=1):
        w, b = conv(cin, cout, k)
        return _fold_bn(w, b, *bn(cout))

    ae1w, ae1b = conv_bn(2, h // 2)            # action_embed conv1 (1x1) + BN
    ae2w, ae2b = conv_bn(h // 2, h)            # action_embed conv2 (1x1) + BN
    w1, b1 = conv_bn(2 * h, h, 3)              # transition conv1 (3x3) + BN
    w2, b2 = conv_bn(h, h, 3)                  # transition conv2 (3x3) + BN

    # Split conv1 into the state half and the (spatially constant) action
    # half; reorder to the kernel's per-tap (9, cout, cin) layout.
    w1s = w1[:, :, :h, :].reshape(9, h, h).transpose(0, 2, 1)   # (9, co, ci)
    w1a = w1[:, :, h:, :].reshape(9, h, h)                      # (9, ci, co)
    w2k = w2.reshape(9, h, h).transpose(0, 2, 1)                # (9, co, ci)

    return dict(
        ae1w=ae1w, ae1b=ae1b, ae2w=ae2w, ae2b=ae2b,
        w1s=w1s, w1a=w1a, b1=b1.reshape(h, 1),
        w2=w2k, b2=b2.reshape(h, 1),
    )


# ----------------------------------------------------------------------------
# Wrapper: PyTorch-equivalent forward (eval-mode BN).  NCHW in, NCHW out.
# ----------------------------------------------------------------------------
def transition_model(state_nchw, action, params):
    B, C, H, W = state_nchw.shape
    h, N = C, H * W
    x = state_nchw.reshape(B, C, N).astype(jnp.float32)      # free reshape
    act = action.astype(jnp.float32).reshape(B, 2)

    # Action embedding (two 1x1 convs on a constant map == dense), hoisted out
    # of the kernel; then per-tap contribution z[b, co, t].
    a = jnp.maximum(act @ params["ae1w"] + params["ae1b"], 0.0)
    a = jnp.maximum(a @ params["ae2w"] + params["ae2b"], 0.0)            # (B, h)
    zT = jnp.einsum("bi,tio->bot", a, params["w1a"])                     # (B, h, 9)

    # Constant tap-validity mask (encodes the 3x3 zero padding) + roll shifts.
    yy, xx = np.meshgrid(np.arange(H), np.arange(W), indexing="ij")
    mask_rows, taps = [], []
    for ky in range(3):
        for kx in range(3):
            oy, ox = ky - 1, kx - 1
            m = ((yy + oy >= 0) & (yy + oy < H) & (xx + ox >= 0) & (xx + ox < W))
            mask_rows.append(m.reshape(-1))
            t = ky * 3 + kx
            if t != 4:
                # shifted view: x_t[n] = x[n + oy*W + ox]  ->  roll by -(offset)
                taps.append((t, (-(oy * W + ox)) % N))
    valid = jnp.asarray(np.stack(mask_rows), dtype=jnp.float32)          # (9, N)

    kernel = functools.partial(_transition_kernel, taps=tuple(taps))

    flops = B * 2 * N * h * (9 * h + 9 * h + 9)
    bytes_accessed = (2 * B * C * N * 4            # state in + out
                      + B * h * 9 * 4              # zT
                      + 9 * N * 4                  # mask
                      + 2 * 9 * h * h * 4          # conv weights
                      + 2 * h * 4)                 # biases
    cost = pl.CostEstimate(flops=flops, transcendentals=0,
                           bytes_accessed=bytes_accessed)

    grid_spec = pltpu.PrefetchScalarGridSpec(
        num_scalar_prefetch=0,
        grid=(B,),
        in_specs=[
            pl.BlockSpec((None, C, N), lambda b: (b, 0, 0)),    # state
            pl.BlockSpec((None, h, 9), lambda b: (b, 0, 0)),    # zT (action taps)
            pl.BlockSpec((9, N), lambda b: (0, 0)),             # validity mask
            pl.BlockSpec((9, h, h), lambda b: (0, 0, 0)),       # w1 (state half)
            pl.BlockSpec((h, 1), lambda b: (0, 0)),             # b1
            pl.BlockSpec((9, h, h), lambda b: (0, 0, 0)),       # w2
            pl.BlockSpec((h, 1), lambda b: (0, 0)),             # b2
        ],
        out_specs=pl.BlockSpec((None, C, N), lambda b: (b, 0, 0)),
    )

    out = pl.pallas_call(
        kernel,
        out_shape=jax.ShapeDtypeStruct((B, C, N), jnp.float32),
        grid_spec=grid_spec,
        compiler_params=pltpu.CompilerParams(
            dimension_semantics=("parallel",),     # batch across v7x cores
        ),
        cost_estimate=cost,
    )(x, zT, valid, params["w1s"], params["b1"], params["w2"], params["b2"])

    return out.reshape(B, C, H, W)


if __name__ == "__main__":
    HIDDEN = 32
    B, H, W = 2, 16, 16

    key = jax.random.PRNGKey(0)
    k_state, k_action, k_params = jax.random.split(key, 3)
    state = jax.random.normal(k_state, (B, HIDDEN, H, W), jnp.float32)   # NCHW
    action = jax.random.normal(k_action, (B, 2), jnp.float32)
    params = build_params(HIDDEN, k_params)

    forward = jax.jit(transition_model)
    next_state = forward(state, action, params)
    next_state = jax.block_until_ready(next_state)

    assert next_state.shape == (B, HIDDEN, H, W)
    assert bool(jnp.all(jnp.isfinite(next_state)))
    print("KERNEL_OK")
</pallas_src>

<mosaic_0001>
module attributes {stable_mosaic.version = 11 : i64} {
  func.func @_transition_kernel(%arg0: i32, %arg1: memref<1x32x256xf32, #tpu.memory_space<vmem>>, %arg2: memref<1x32x9xf32, #tpu.memory_space<vmem>>, %arg3: memref<9x256xf32, #tpu.memory_space<vmem>>, %arg4: memref<9x32x32xf32, #tpu.memory_space<vmem>>, %arg5: memref<32x1xf32, #tpu.memory_space<vmem>>, %arg6: memref<9x32x32xf32, #tpu.memory_space<vmem>>, %arg7: memref<32x1xf32, #tpu.memory_space<vmem>>, %arg8: memref<1x32x256xf32, #tpu.memory_space<vmem>>) attributes {dimension_semantics = [#tpu.dimension_semantics<parallel>], iteration_bounds = array<i64: 2>, scalar_prefetch = 0 : i64, scratch_operands = 0 : i64, tpu.core_type = #tpu.core_type<tc>, window_params = [{transform_indices = @transform_0, window_bounds = array<i64: 1, 32, 256>}, {transform_indices = @transform_1, window_bounds = array<i64: 1, 32, 9>}, {pipeline_mode = #tpu.pipeline_mode<synchronous>, transform_indices = @transform_2, window_bounds = array<i64: 9, 256>}, {pipeline_mode = #tpu.pipeline_mode<synchronous>, transform_indices = @transform_3, window_bounds = array<i64: 9, 32, 32>}, {pipeline_mode = #tpu.pipeline_mode<synchronous>, transform_indices = @transform_4, window_bounds = array<i64: 32, 1>}, {pipeline_mode = #tpu.pipeline_mode<synchronous>, transform_indices = @transform_5, window_bounds = array<i64: 9, 32, 32>}, {pipeline_mode = #tpu.pipeline_mode<synchronous>, transform_indices = @transform_6, window_bounds = array<i64: 32, 1>}, {transform_indices = @transform_7, window_bounds = array<i64: 1, 32, 256>}]} {
    %c0 = arith.constant 0 : index
    %c0_0 = arith.constant 0 : index
    %c0_1 = arith.constant 0 : index
    %0 = vector.load %arg1[%c0, %c0_0, %c0_1] : memref<1x32x256xf32, #tpu.memory_space<vmem>>, vector<1x32x256xf32>
    %1 = vector.shape_cast %0 : vector<1x32x256xf32> to vector<32x256xf32>
    %c0_2 = arith.constant 0 : index
    %c0_3 = arith.constant 0 : index
    %2 = vector.load %arg3[%c0_2, %c0_3] : memref<9x256xf32, #tpu.memory_space<vmem>>, vector<9x256xf32>
    %c0_4 = arith.constant 0 : index
    %c0_5 = arith.constant 0 : index
    %c0_6 = arith.constant 0 : index
    %3 = vector.load %arg2[%c0_4, %c0_5, %c0_6] : memref<1x32x9xf32, #tpu.memory_space<vmem>>, vector<1x32x9xf32>
    %4 = vector.shape_cast %3 : vector<1x32x9xf32> to vector<32x9xf32>
    %cst = arith.constant dense<0.000000e+00> : vector<32x256xf32>
    %5 = tpu.matmul %4, %2, %cst {dimension_numbers = #tpu.dot_dimension_numbers<[1], [0], [0], [1], [0, 0, 1, 1], [], []>} : vector<32x9xf32>, vector<9x256xf32>, vector<32x256xf32> -> vector<32x256xf32>
    %c4 = arith.constant 4 : index
    %c0_7 = arith.constant 0 : index
    %c0_8 = arith.constant 0 : index
    %6 = vector.load %arg4[%c4, %c0_7, %c0_8] : memref<9x32x32xf32, #tpu.memory_space<vmem>>, vector<1x32x32xf32>
    %7 = vector.shape_cast %6 : vector<1x32x32xf32> to vector<32x32xf32>
    %cst_9 = arith.constant dense<0.000000e+00> : vector<32x256xf32>
    %8 = tpu.matmul %7, %1, %cst_9 {dimension_numbers = #tpu.dot_dimension_numbers<[1], [0], [0], [1], [0, 0, 1, 1], [], []>} : vector<32x32xf32>, vector<32x256xf32>, vector<32x256xf32> -> vector<32x256xf32>
    %c17_i32 = arith.constant 17 : i32
    %9 = tpu.dynamic_rotate %1 by %c17_i32 dim 1 : vector<32x256xf32>, i32 -> vector<32x256xf32>
    %10 = vector.extract_strided_slice %2 {offsets = [0, 0], sizes = [1, 256], strides = [1, 1]} : vector<9x256xf32> to vector<1x256xf32>
    %11 = vector.broadcast %10 : vector<1x256xf32> to vector<32x256xf32>
    %12 = arith.mulf %9, %11 : vector<32x256xf32>
    %c0_10 = arith.constant 0 : index
    %c0_11 = arith.constant 0 : index
    %c0_12 = arith.constant 0 : index
    %13 = vector.load %arg4[%c0_10, %c0_11, %c0_12] : memref<9x32x32xf32, #tpu.memory_space<vmem>>, vector<1x32x32xf32>
    %14 = vector.shape_cast %13 : vector<1x32x32xf32> to vector<32x32xf32>
    %cst_13 = arith.constant dense<0.000000e+00> : vector<32x256xf32>
    %15 = tpu.matmul %14, %12, %cst_13 {dimension_numbers = #tpu.dot_dimension_numbers<[1], [0], [0], [1], [0, 0, 1, 1], [], []>} : vector<32x32xf32>, vector<32x256xf32>, vector<32x256xf32> -> vector<32x256xf32>
    %16 = arith.addf %8, %15 : vector<32x256xf32>
    %c16_i32 = arith.constant 16 : i32
    %17 = tpu.dynamic_rotate %1 by %c16_i32 dim 1 : vector<32x256xf32>, i32 -> vector<32x256xf32>
    %18 = vector.extract_strided_slice %2 {offsets = [1, 0], sizes = [1, 256], strides = [1, 1]} : vector<9x256xf32> to vector<1x256xf32>
    %19 = vector.broadcast %18 : vector<1x256xf32> to vector<32x256xf32>
    %20 = arith.mulf %17, %19 : vector<32x256xf32>
    %c1 = arith.constant 1 : index
    %c0_14 = arith.constant 0 : index
    %c0_15 = arith.constant 0 : index
    %21 = vector.load %arg4[%c1, %c0_14, %c0_15] : memref<9x32x32xf32, #tpu.memory_space<vmem>>, vector<1x32x32xf32>
    %22 = vector.shape_cast %21 : vector<1x32x32xf32> to vector<32x32xf32>
    %cst_16 = arith.constant dense<0.000000e+00> : vector<32x256xf32>
    %23 = tpu.matmul %22, %20, %cst_16 {dimension_numbers = #tpu.dot_dimension_numbers<[1], [0], [0], [1], [0, 0, 1, 1], [], []>} : vector<32x32xf32>, vector<32x256xf32>, vector<32x256xf32> -> vector<32x256xf32>
    %24 = arith.addf %16, %23 : vector<32x256xf32>
    %c15_i32 = arith.constant 15 : i32
    %25 = tpu.dynamic_rotate %1 by %c15_i32 dim 1 : vector<32x256xf32>, i32 -> vector<32x256xf32>
    %26 = vector.extract_strided_slice %2 {offsets = [2, 0], sizes = [1, 256], strides = [1, 1]} : vector<9x256xf32> to vector<1x256xf32>
    %27 = vector.broadcast %26 : vector<1x256xf32> to vector<32x256xf32>
    %28 = arith.mulf %25, %27 : vector<32x256xf32>
    %c2 = arith.constant 2 : index
    %c0_17 = arith.constant 0 : index
    %c0_18 = arith.constant 0 : index
    %29 = vector.load %arg4[%c2, %c0_17, %c0_18] : memref<9x32x32xf32, #tpu.memory_space<vmem>>, vector<1x32x32xf32>
    %30 = vector.shape_cast %29 : vector<1x32x32xf32> to vector<32x32xf32>
    %cst_19 = arith.constant dense<0.000000e+00> : vector<32x256xf32>
    %31 = tpu.matmul %30, %28, %cst_19 {dimension_numbers = #tpu.dot_dimension_numbers<[1], [0], [0], [1], [0, 0, 1, 1], [], []>} : vector<32x32xf32>, vector<32x256xf32>, vector<32x256xf32> -> vector<32x256xf32>
    %32 = arith.addf %24, %31 : vector<32x256xf32>
    %c1_i32 = arith.constant 1 : i32
    %33 = tpu.dynamic_rotate %1 by %c1_i32 dim 1 : vector<32x256xf32>, i32 -> vector<32x256xf32>
    %34 = vector.extract_strided_slice %2 {offsets = [3, 0], sizes = [1, 256], strides = [1, 1]} : vector<9x256xf32> to vector<1x256xf32>
    %35 = vector.broadcast %34 : vector<1x256xf32> to vector<32x256xf32>
    %36 = arith.mulf %33, %35 : vector<32x256xf32>
    %c3 = arith.constant 3 : index
    %c0_20 = arith.constant 0 : index
    %c0_21 = arith.constant 0 : index
    %37 = vector.load %arg4[%c3, %c0_20, %c0_21] : memref<9x32x32xf32, #tpu.memory_space<vmem>>, vector<1x32x32xf32>
    %38 = vector.shape_cast %37 : vector<1x32x32xf32> to vector<32x32xf32>
    %cst_22 = arith.constant dense<0.000000e+00> : vector<32x256xf32>
    %39 = tpu.matmul %38, %36, %cst_22 {dimension_numbers = #tpu.dot_dimension_numbers<[1], [0], [0], [1], [0, 0, 1, 1], [], []>} : vector<32x32xf32>, vector<32x256xf32>, vector<32x256xf32> -> vector<32x256xf32>
    %40 = arith.addf %32, %39 : vector<32x256xf32>
    %c255_i32 = arith.constant 255 : i32
    %41 = tpu.dynamic_rotate %1 by %c255_i32 dim 1 : vector<32x256xf32>, i32 -> vector<32x256xf32>
    %42 = vector.extract_strided_slice %2 {offsets = [5, 0], sizes = [1, 256], strides = [1, 1]} : vector<9x256xf32> to vector<1x256xf32>
    %43 = vector.broadcast %42 : vector<1x256xf32> to vector<32x256xf32>
    %44 = arith.mulf %41, %43 : vector<32x256xf32>
    %c5 = arith.constant 5 : index
    %c0_23 = arith.constant 0 : index
    %c0_24 = arith.constant 0 : index
    %45 = vector.load %arg4[%c5, %c0_23, %c0_24] : memref<9x32x32xf32, #tpu.memory_space<vmem>>, vector<1x32x32xf32>
    %46 = vector.shape_cast %45 : vector<1x32x32xf32> to vector<32x32xf32>
    %cst_25 = arith.constant dense<0.000000e+00> : vector<32x256xf32>
    %47 = tpu.matmul %46, %44, %cst_25 {dimension_numbers = #tpu.dot_dimension_numbers<[1], [0], [0], [1], [0, 0, 1, 1], [], []>} : vector<32x32xf32>, vector<32x256xf32>, vector<32x256xf32> -> vector<32x256xf32>
    %48 = arith.addf %40, %47 : vector<32x256xf32>
    %c241_i32 = arith.constant 241 : i32
    %49 = tpu.dynamic_rotate %1 by %c241_i32 dim 1 : vector<32x256xf32>, i32 -> vector<32x256xf32>
    %50 = vector.extract_strided_slice %2 {offsets = [6, 0], sizes = [1, 256], strides = [1, 1]} : vector<9x256xf32> to vector<1x256xf32>
    %51 = vector.broadcast %50 : vector<1x256xf32> to vector<32x256xf32>
    %52 = arith.mulf %49, %51 : vector<32x256xf32>
    %c6 = arith.constant 6 : index
    %c0_26 = arith.constant 0 : index
    %c0_27 = arith.constant 0 : index
    %53 = vector.load %arg4[%c6, %c0_26, %c0_27] : memref<9x32x32xf32, #tpu.memory_space<vmem>>, vector<1x32x32xf32>
    %54 = vector.shape_cast %53 : vector<1x32x32xf32> to vector<32x32xf32>
    %cst_28 = arith.constant dense<0.000000e+00> : vector<32x256xf32>
    %55 = tpu.matmul %54, %52, %cst_28 {dimension_numbers = #tpu.dot_dimension_numbers<[1], [0], [0], [1], [0, 0, 1, 1], [], []>} : vector<32x32xf32>, vector<32x256xf32>, vector<32x256xf32> -> vector<32x256xf32>
    %56 = arith.addf %48, %55 : vector<32x256xf32>
    %c240_i32 = arith.constant 240 : i32
    %57 = tpu.dynamic_rotate %1 by %c240_i32 dim 1 : vector<32x256xf32>, i32 -> vector<32x256xf32>
    %58 = vector.extract_strided_slice %2 {offsets = [7, 0], sizes = [1, 256], strides = [1, 1]} : vector<9x256xf32> to vector<1x256xf32>
    %59 = vector.broadcast %58 : vector<1x256xf32> to vector<32x256xf32>
    %60 = arith.mulf %57, %59 : vector<32x256xf32>
    %c7 = arith.constant 7 : index
    %c0_29 = arith.constant 0 : index
    %c0_30 = arith.constant 0 : index
    %61 = vector.load %arg4[%c7, %c0_29, %c0_30] : memref<9x32x32xf32, #tpu.memory_space<vmem>>, vector<1x32x32xf32>
    %62 = vector.shape_cast %61 : vector<1x32x32xf32> to vector<32x32xf32>
    %cst_31 = arith.constant dense<0.000000e+00> : vector<32x256xf32>
    %63 = tpu.matmul %62, %60, %cst_31 {dimension_numbers = #tpu.dot_dimension_numbers<[1], [0], [0], [1], [0, 0, 1, 1], [], []>} : vector<32x32xf32>, vector<32x256xf32>, vector<32x256xf32> -> vector<32x256xf32>
    %64 = arith.addf %56, %63 : vector<32x256xf32>
    %c239_i32 = arith.constant 239 : i32
    %65 = tpu.dynamic_rotate %1 by %c239_i32 dim 1 : vector<32x256xf32>, i32 -> vector<32x256xf32>
    %66 = vector.extract_strided_slice %2 {offsets = [8, 0], sizes = [1, 256], strides = [1, 1]} : vector<9x256xf32> to vector<1x256xf32>
    %67 = vector.broadcast %66 : vector<1x256xf32> to vector<32x256xf32>
    %68 = arith.mulf %65, %67 : vector<32x256xf32>
    %c8 = arith.constant 8 : index
    %c0_32 = arith.constant 0 : index
    %c0_33 = arith.constant 0 : index
    %69 = vector.load %arg4[%c8, %c0_32, %c0_33] : memref<9x32x32xf32, #tpu.memory_space<vmem>>, vector<1x32x32xf32>
    %70 = vector.shape_cast %69 : vector<1x32x32xf32> to vector<32x32xf32>
    %cst_34 = arith.constant dense<0.000000e+00> : vector<32x256xf32>
    %71 = tpu.matmul %70, %68, %cst_34 {dimension_numbers = #tpu.dot_dimension_numbers<[1], [0], [0], [1], [0, 0, 1, 1], [], []>} : vector<32x32xf32>, vector<32x256xf32>, vector<32x256xf32> -> vector<32x256xf32>
    %72 = arith.addf %64, %71 : vector<32x256xf32>
    %73 = arith.addf %72, %5 : vector<32x256xf32>
    %c0_35 = arith.constant 0 : index
    %c0_36 = arith.constant 0 : index
    %74 = vector.load %arg5[%c0_35, %c0_36] : memref<32x1xf32, #tpu.memory_space<vmem>>, vector<32x1xf32>
    %75 = vector.broadcast %74 : vector<32x1xf32> to vector<32x256xf32>
    %76 = arith.addf %73, %75 : vector<32x256xf32>
    %cst_37 = arith.constant 0.000000e+00 : f32
    %77 = vector.broadcast %cst_37 : f32 to vector<32x256xf32>
    %78 = arith.maximumf %76, %77 : vector<32x256xf32>
    %c4_38 = arith.constant 4 : index
    %c0_39 = arith.constant 0 : index
    %c0_40 = arith.constant 0 : index
    %79 = vector.load %arg6[%c4_38, %c0_39, %c0_40] : memref<9x32x32xf32, #tpu.memory_space<vmem>>, vector<1x32x32xf32>
    %80 = vector.shape_cast %79 : vector<1x32x32xf32> to vector<32x32xf32>
    %cst_41 = arith.constant dense<0.000000e+00> : vector<32x256xf32>
    %81 = tpu.matmul %80, %78, %cst_41 {dimension_numbers = #tpu.dot_dimension_numbers<[1], [0], [0], [1], [0, 0, 1, 1], [], []>} : vector<32x32xf32>, vector<32x256xf32>, vector<32x256xf32> -> vector<32x256xf32>
    %c17_i32_42 = arith.constant 17 : i32
    %82 = tpu.dynamic_rotate %78 by %c17_i32_42 dim 1 : vector<32x256xf32>, i32 -> vector<32x256xf32>
    %83 = vector.extract_strided_slice %2 {offsets = [0, 0], sizes = [1, 256], strides = [1, 1]} : vector<9x256xf32> to vector<1x256xf32>
    %84 = vector.broadcast %83 : vector<1x256xf32> to vector<32x256xf32>
    %85 = arith.mulf %82, %84 : vector<32x256xf32>
    %c0_43 = arith.constant 0 : index
    %c0_44 = arith.constant 0 : index
    %c0_45 = arith.constant 0 : index
    %86 = vector.load %arg6[%c0_43, %c0_44, %c0_45] : memref<9x32x32xf32, #tpu.memory_space<vmem>>, vector<1x32x32xf32>
    %87 = vector.shape_cast %86 : vector<1x32x32xf32> to vector<32x32xf32>
    %cst_46 = arith.constant dense<0.000000e+00> : vector<32x256xf32>
    %88 = tpu.matmul %87, %85, %cst_46 {dimension_numbers = #tpu.dot_dimension_numbers<[1], [0], [0], [1], [0, 0, 1, 1], [], []>} : vector<32x32xf32>, vector<32x256xf32>, vector<32x256xf32> -> vector<32x256xf32>
    %89 = arith.addf %81, %88 : vector<32x256xf32>
    %c16_i32_47 = arith.constant 16 : i32
    %90 = tpu.dynamic_rotate %78 by %c16_i32_47 dim 1 : vector<32x256xf32>, i32 -> vector<32x256xf32>
    %91 = vector.extract_strided_slice %2 {offsets = [1, 0], sizes = [1, 256], strides = [1, 1]} : vector<9x256xf32> to vector<1x256xf32>
    %92 = vector.broadcast %91 : vector<1x256xf32> to vector<32x256xf32>
    %93 = arith.mulf %90, %92 : vector<32x256xf32>
    %c1_48 = arith.constant 1 : index
    %c0_49 = arith.constant 0 : index
    %c0_50 = arith.constant 0 : index
    %94 = vector.load %arg6[%c1_48, %c0_49, %c0_50] : memref<9x32x32xf32, #tpu.memory_space<vmem>>, vector<1x32x32xf32>
    %95 = vector.shape_cast %94 : vector<1x32x32xf32> to vector<32x32xf32>
    %cst_51 = arith.constant dense<0.000000e+00> : vector<32x256xf32>
    %96 = tpu.matmul %95, %93, %cst_51 {dimension_numbers = #tpu.dot_dimension_numbers<[1], [0], [0], [1], [0, 0, 1, 1], [], []>} : vector<32x32xf32>, vector<32x256xf32>, vector<32x256xf32> -> vector<32x256xf32>
    %97 = arith.addf %89, %96 : vector<32x256xf32>
    %c15_i32_52 = arith.constant 15 : i32
    %98 = tpu.dynamic_rotate %78 by %c15_i32_52 dim 1 : vector<32x256xf32>, i32 -> vector<32x256xf32>
    %99 = vector.extract_strided_slice %2 {offsets = [2, 0], sizes = [1, 256], strides = [1, 1]} : vector<9x256xf32> to vector<1x256xf32>
    %100 = vector.broadcast %99 : vector<1x256xf32> to vector<32x256xf32>
    %101 = arith.mulf %98, %100 : vector<32x256xf32>
    %c2_53 = arith.constant 2 : index
    %c0_54 = arith.constant 0 : index
    %c0_55 = arith.constant 0 : index
    %102 = vector.load %arg6[%c2_53, %c0_54, %c0_55] : memref<9x32x32xf32, #tpu.memory_space<vmem>>, vector<1x32x32xf32>
    %103 = vector.shape_cast %102 : vector<1x32x32xf32> to vector<32x32xf32>
    %cst_56 = arith.constant dense<0.000000e+00> : vector<32x256xf32>
    %104 = tpu.matmul %103, %101, %cst_56 {dimension_numbers = #tpu.dot_dimension_numbers<[1], [0], [0], [1], [0, 0, 1, 1], [], []>} : vector<32x32xf32>, vector<32x256xf32>, vector<32x256xf32> -> vector<32x256xf32>
    %105 = arith.addf %97, %104 : vector<32x256xf32>
    %c1_i32_57 = arith.constant 1 : i32
    %106 = tpu.dynamic_rotate %78 by %c1_i32_57 dim 1 : vector<32x256xf32>, i32 -> vector<32x256xf32>
    %107 = vector.extract_strided_slice %2 {offsets = [3, 0], sizes = [1, 256], strides = [1, 1]} : vector<9x256xf32> to vector<1x256xf32>
    %108 = vector.broadcast %107 : vector<1x256xf32> to vector<32x256xf32>
    %109 = arith.mulf %106, %108 : vector<32x256xf32>
    %c3_58 = arith.constant 3 : index
    %c0_59 = arith.constant 0 : index
    %c0_60 = arith.constant 0 : index
    %110 = vector.load %arg6[%c3_58, %c0_59, %c0_60] : memref<9x32x32xf32, #tpu.memory_space<vmem>>, vector<1x32x32xf32>
    %111 = vector.shape_cast %110 : vector<1x32x32xf32> to vector<32x32xf32>
    %cst_61 = arith.constant dense<0.000000e+00> : vector<32x256xf32>
    %112 = tpu.matmul %111, %109, %cst_61 {dimension_numbers = #tpu.dot_dimension_numbers<[1], [0], [0], [1], [0, 0, 1, 1], [], []>} : vector<32x32xf32>, vector<32x256xf32>, vector<32x256xf32> -> vector<32x256xf32>
    %113 = arith.addf %105, %112 : vector<32x256xf32>
    %c255_i32_62 = arith.constant 255 : i32
    %114 = tpu.dynamic_rotate %78 by %c255_i32_62 dim 1 : vector<32x256xf32>, i32 -> vector<32x256xf32>
    %115 = vector.extract_strided_slice %2 {offsets = [5, 0], sizes = [1, 256], strides = [1, 1]} : vector<9x256xf32> to vector<1x256xf32>
    %116 = vector.broadcast %115 : vector<1x256xf32> to vector<32x256xf32>
    %117 = arith.mulf %114, %116 : vector<32x256xf32>
    %c5_63 = arith.constant 5 : index
    %c0_64 = arith.constant 0 : index
    %c0_65 = arith.constant 0 : index
    %118 = vector.load %arg6[%c5_63, %c0_64, %c0_65] : memref<9x32x32xf32, #tpu.memory_space<vmem>>, vector<1x32x32xf32>
    %119 = vector.shape_cast %118 : vector<1x32x32xf32> to vector<32x32xf32>
    %cst_66 = arith.constant dense<0.000000e+00> : vector<32x256xf32>
    %120 = tpu.matmul %119, %117, %cst_66 {dimension_numbers = #tpu.dot_dimension_numbers<[1], [0], [0], [1], [0, 0, 1, 1], [], []>} : vector<32x32xf32>, vector<32x256xf32>, vector<32x256xf32> -> vector<32x256xf32>
    %121 = arith.addf %113, %120 : vector<32x256xf32>
    %c241_i32_67 = arith.constant 241 : i32
    %122 = tpu.dynamic_rotate %78 by %c241_i32_67 dim 1 : vector<32x256xf32>, i32 -> vector<32x256xf32>
    %123 = vector.extract_strided_slice %2 {offsets = [6, 0], sizes = [1, 256], strides = [1, 1]} : vector<9x256xf32> to vector<1x256xf32>
    %124 = vector.broadcast %123 : vector<1x256xf32> to vector<32x256xf32>
    %125 = arith.mulf %122, %124 : vector<32x256xf32>
    %c6_68 = arith.constant 6 : index
    %c0_69 = arith.constant 0 : index
    %c0_70 = arith.constant 0 : index
    %126 = vector.load %arg6[%c6_68, %c0_69, %c0_70] : memref<9x32x32xf32, #tpu.memory_space<vmem>>, vector<1x32x32xf32>
    %127 = vector.shape_cast %126 : vector<1x32x32xf32> to vector<32x32xf32>
    %cst_71 = arith.constant dense<0.000000e+00> : vector<32x256xf32>
    %128 = tpu.matmul %127, %125, %cst_71 {dimension_numbers = #tpu.dot_dimension_numbers<[1], [0], [0], [1], [0, 0, 1, 1], [], []>} : vector<32x32xf32>, vector<32x256xf32>, vector<32x256xf32> -> vector<32x256xf32>
    %129 = arith.addf %121, %128 : vector<32x256xf32>
    %c240_i32_72 = arith.constant 240 : i32
    %130 = tpu.dynamic_rotate %78 by %c240_i32_72 dim 1 : vector<32x256xf32>, i32 -> vector<32x256xf32>
    %131 = vector.extract_strided_slice %2 {offsets = [7, 0], sizes = [1, 256], strides = [1, 1]} : vector<9x256xf32> to vector<1x256xf32>
    %132 = vector.broadcast %131 : vector<1x256xf32> to vector<32x256xf32>
    %133 = arith.mulf %130, %132 : vector<32x256xf32>
    %c7_73 = arith.constant 7 : index
    %c0_74 = arith.constant 0 : index
    %c0_75 = arith.constant 0 : index
    %134 = vector.load %arg6[%c7_73, %c0_74, %c0_75] : memref<9x32x32xf32, #tpu.memory_space<vmem>>, vector<1x32x32xf32>
    %135 = vector.shape_cast %134 : vector<1x32x32xf32> to vector<32x32xf32>
    %cst_76 = arith.constant dense<0.000000e+00> : vector<32x256xf32>
    %136 = tpu.matmul %135, %133, %cst_76 {dimension_numbers = #tpu.dot_dimension_numbers<[1], [0], [0], [1], [0, 0, 1, 1], [], []>} : vector<32x32xf32>, vector<32x256xf32>, vector<32x256xf32> -> vector<32x256xf32>
    %137 = arith.addf %129, %136 : vector<32x256xf32>
    %c239_i32_77 = arith.constant 239 : i32
    %138 = tpu.dynamic_rotate %78 by %c239_i32_77 dim 1 : vector<32x256xf32>, i32 -> vector<32x256xf32>
    %139 = vector.extract_strided_slice %2 {offsets = [8, 0], sizes = [1, 256], strides = [1, 1]} : vector<9x256xf32> to vector<1x256xf32>
    %140 = vector.broadcast %139 : vector<1x256xf32> to vector<32x256xf32>
    %141 = arith.mulf %138, %140 : vector<32x256xf32>
    %c8_78 = arith.constant 8 : index
    %c0_79 = arith.constant 0 : index
    %c0_80 = arith.constant 0 : index
    %142 = vector.load %arg6[%c8_78, %c0_79, %c0_80] : memref<9x32x32xf32, #tpu.memory_space<vmem>>, vector<1x32x32xf32>
    %143 = vector.shape_cast %142 : vector<1x32x32xf32> to vector<32x32xf32>
    %cst_81 = arith.constant dense<0.000000e+00> : vector<32x256xf32>
    %144 = tpu.matmul %143, %141, %cst_81 {dimension_numbers = #tpu.dot_dimension_numbers<[1], [0], [0], [1], [0, 0, 1, 1], [], []>} : vector<32x32xf32>, vector<32x256xf32>, vector<32x256xf32> -> vector<32x256xf32>
    %145 = arith.addf %137, %144 : vector<32x256xf32>
    %c0_82 = arith.constant 0 : index
    %c0_83 = arith.constant 0 : index
    %146 = vector.load %arg7[%c0_82, %c0_83] : memref<32x1xf32, #tpu.memory_space<vmem>>, vector<32x1xf32>
    %147 = vector.broadcast %146 : vector<32x1xf32> to vector<32x256xf32>
    %148 = arith.addf %145, %147 : vector<32x256xf32>
    %149 = arith.addf %1, %148 : vector<32x256xf32>
    %c0_84 = arith.constant 0 : index
    %c0_85 = arith.constant 0 : index
    %c0_86 = arith.constant 0 : index
    %150 = vector.load %arg8[%c0_84, %c0_85, %c0_86] : memref<1x32x256xf32, #tpu.memory_space<vmem>>, vector<1x32x256xf32>
    %151 = vector.shape_cast %150 : vector<1x32x256xf32> to vector<32x256xf32>
    %152 = vector.shape_cast %149 : vector<32x256xf32> to vector<1x32x256xf32>
    tpu.vector_store %arg8[%c0_84, %c0_85, %c0_86], %152 {strides = array<i32>} : memref<1x32x256xf32, #tpu.memory_space<vmem>>, vector<1x32x256xf32>,
    return
  }
  func.func @transform_0(%arg0: i32) -> (i32, i32, i32) {
    %c0_i32 = arith.constant 0 : i32
    %c0_i32_0 = arith.constant 0 : i32
    %c0_i32_1 = arith.constant 0 : i32
    return %arg0, %c0_i32, %c0_i32_0 : i32, i32, i32
  }
  func.func @transform_1(%arg0: i32) -> (i32, i32, i32) {
    %c0_i32 = arith.constant 0 : i32
    %c0_i32_0 = arith.constant 0 : i32
    %c0_i32_1 = arith.constant 0 : i32
    return %arg0, %c0_i32, %c0_i32_0 : i32, i32, i32
  }
  func.func @transform_2(%arg0: i32) -> (i32, i32) {
    %c0_i32 = arith.constant 0 : i32
    %c0_i32_0 = arith.constant 0 : i32
    %c0_i32_1 = arith.constant 0 : i32
    return %c0_i32, %c0_i32_0 : i32, i32
  }
  func.func @transform_3(%arg0: i32) -> (i32, i32, i32) {
    %c0_i32 = arith.constant 0 : i32
    %c0_i32_0 = arith.constant 0 : i32
    %c0_i32_1 = arith.constant 0 : i32
    %c0_i32_2 = arith.constant 0 : i32
    return %c0_i32, %c0_i32_0, %c0_i32_1 : i32, i32, i32
  }
  func.func @transform_4(%arg0: i32) -> (i32, i32) {
    %c0_i32 = arith.constant 0 : i32
    %c0_i32_0 = arith.constant 0 : i32
    %c0_i32_1 = arith.constant 0 : i32
    return %c0_i32, %c0_i32_0 : i32, i32
  }
  func.func @transform_5(%arg0: i32) -> (i32, i32, i32) {
    %c0_i32 = arith.constant 0 : i32
    %c0_i32_0 = arith.constant 0 : i32
    %c0_i32_1 = arith.constant 0 : i32
    %c0_i32_2 = arith.constant 0 : i32
    return %c0_i32, %c0_i32_0, %c0_i32_1 : i32, i32, i32
  }
  func.func @transform_6(%arg0: i32) -> (i32, i32) {
    %c0_i32 = arith.constant 0 : i32
    %c0_i32_0 = arith.constant 0 : i32
    %c0_i32_1 = arith.constant 0 : i32
    return %c0_i32, %c0_i32_0 : i32, i32
  }
  func.func @transform_7(%arg0: i32) -> (i32, i32, i32) {
    %c0_i32 = arith.constant 0 : i32
    %c0_i32_0 = arith.constant 0 : i32
    %c0_i32_1 = arith.constant 0 : i32
    return %arg0, %c0_i32, %c0_i32_0 : i32, i32, i32
  }
}

</mosaic_0001>

<llo_original>
// kernel: transition_model.1
$region0: #{transition_model.1}
  #allocation0 [shape = 'u32[]', space=smem, size = 0x4, offset = 0x4, fixed_abs, tag = 'smem constant byte address 0x4 - core index']
  #allocation1 [shape = 'u32[144,128]{1,0:T(1,128)}', space=vmem, size = 0x12000, scoped, tag = 'internal scratch']
  %s0 = inlined_call_operand.vmem [shape: f32[2,32,256], index: 0, kind: input, shape index: {}]
  %s1 = inlined_call_operand.vmem [shape: f32[2,32,9], index: 1, kind: input, shape index: {}]
  %s2 = inlined_call_operand.vmem [shape: f32[9,256], index: 2, kind: input, shape index: {}]
  %s3 = inlined_call_operand.vmem [shape: f32[9,32,32], index: 3, kind: input, shape index: {}]
  %s4 = inlined_call_operand.vmem [shape: f32[32,1], index: 4, kind: input, shape index: {}]
  %s5 = inlined_call_operand.vmem [shape: f32[9,32,32], index: 5, kind: input, shape index: {}]
  %s6 = inlined_call_operand.vmem [shape: f32[32,1], index: 6, kind: input, shape index: {}]
  %s7 = inlined_call_operand.vmem [shape: f32[2,32,256], index: 7, kind: output, shape index: {}]
  %s8 = sld [smem:[#allocation0]]
  $region61: #{transition_model.1} parent=0
    _
  %s10 = ssub.s32 1, %s8
  %s11 = scalar_select 0, %s10, %s8
  loop: start=0, step=1, limit=4
  $region2: #{transition_model.1} parent=0 // loop_pre_header
    _
  $region3: #{transition_model.1} parent=0 // loop_header
    %s13 = sphi 0, %s17
    %p14 = scmp.ge.s32.totalorder %s13, 4
    %s23 = sphi 0, %s25
    %s26 = sphi 0, %s23
    %s27 = sphi 0, %s26
    %s43 = sphi 0, %s27
    %s49 = sphi 0, %s51
    %s52 = sphi 0, %s49
    %s53 = sphi 0, %s52
    %s69 = sphi 0, %s53
    %s73 = sphi 0, %s73
    %s75 = sphi 0, %s73
    %s76 = sphi 0, %s75
    %s90 = sphi 0, %s76
    %s94 = sphi 0, %s94
    %s96 = sphi 0, %s94
    %s97 = sphi 0, %s96
    %s111 = sphi 0, %s97
    %s115 = sphi 0, %s115
    %s117 = sphi 0, %s115
    %s118 = sphi 0, %s117
    %s132 = sphi 0, %s118
    %s136 = sphi 0, %s136
    %s138 = sphi 0, %s136
    %s139 = sphi 0, %s138
    %s153 = sphi 0, %s139
    %s157 = sphi 0, %s157
    %s159 = sphi 0, %s157
    %s160 = sphi 0, %s159
    %s174 = sphi 0, %s160
    %s180 = sphi 0, %s182
    %s183 = sphi 0, %s180
    %s184 = sphi 0, %s183
    %s200 = sphi 0, %s184
  $region4: #{transition_model.1} parent=0 // loop_header_branch
    %16 = sbr.rel (%p14) target = $region8
  $region5: #{transition_model.1} parent=0 // loop_body
    %s18 = ssub.s32 %s13, 1
    %s19 = ssub.s32 %s13, 2
    %s20 = sadd.s32 %s13, 1
    %s21 = ssub.s32 %s13, %s20
    %p22 = scmp.eq.s32.totalorder %s21, 0
    %s24 = sadd.s32 %s23, 1
    %s25 = scalar_select %p22, %s23, %s24
    %p28 = pneg %p22
    %p29 = scmp.eq.s32.totalorder %s13, 1
    %p30 = por %p28, %p29
    %p31 = scmp.ne.s32.totalorder %s23, %s26
    %p32 = scmp.eq.s32.totalorder %s13, 0
    %p33 = por %p31, %p32
    %p34 = scmp.ne.s32.totalorder %s23, %s26
    %p35 = scmp.eq.s32.totalorder %s18, 1
    %p36 = por %p34, %p35
    %p37 = scmp.ne.s32.totalorder %s26, %s27
    %p38 = scmp.eq.s32.totalorder %s18, 0
    %p39 = por %p37, %p38
    %p40 = scmp.ne.s32.totalorder %s26, %s27
    %p41 = scmp.eq.s32.totalorder %s19, 1
    %p42 = por %p40, %p41
    %p44 = scmp.ne.s32.totalorder %s27, %s43
    %p45 = scmp.eq.s32.totalorder %s19, 0
    %p46 = por %p44, %p45
    %s47 = ssub.s32 %s13, %s20
    %p48 = scmp.eq.s32.totalorder %s47, 0
    %s50 = sadd.s32 %s49, 1
    %s51 = scalar_select %p48, %s49, %s50
    %p54 = pneg %p48
    %p55 = scmp.eq.s32.totalorder %s13, 1
    %p56 = por %p54, %p55
    %p57 = scmp.ne.s32.totalorder %s49, %s52
    %p58 = scmp.eq.s32.totalorder %s13, 0
    %p59 = por %p57, %p58
    %p60 = scmp.ne.s32.totalorder %s49, %s52
    %p61 = scmp.eq.s32.totalorder %s18, 1
    %p62 = por %p60, %p61
    %p63 = scmp.ne.s32.totalorder %s52, %s53
    %p64 = scmp.eq.s32.totalorder %s18, 0
    %p65 = por %p63, %p64
    %p66 = scmp.ne.s32.totalorder %s52, %s53
    %p67 = scmp.eq.s32.totalorder %s19, 1
    %p68 = por %p66, %p67
    %p70 = scmp.ne.s32.totalorder %s53, %s69
    %p71 = scmp.eq.s32.totalorder %s19, 0
    %p72 = por %p70, %p71
    %s74 = sadd.s32 %s73, 1
    %p77 = scmp.eq.s32.totalorder %s13, 1
    %p78 = scmp.ne.s32.totalorder %s73, %s75
    %p79 = scmp.eq.s32.totalorder %s13, 0
    %p80 = por %p78, %p79
    %p81 = scmp.ne.s32.totalorder %s73, %s75
    %p82 = scmp.eq.s32.totalorder %s18, 1
    %p83 = por %p81, %p82
    %p84 = scmp.ne.s32.totalorder %s75, %s76
    %p85 = scmp.eq.s32.totalorder %s18, 0
    %p86 = por %p84, %p85
    %p87 = scmp.ne.s32.totalorder %s75, %s76
    %p88 = scmp.eq.s32.totalorder %s19, 1
    %p89 = por %p87, %p88
    %p91 = scmp.ne.s32.totalorder %s76, %s90
    %p92 = scmp.eq.s32.totalorder %s19, 0
    %p93 = por %p91, %p92
    %s95 = sadd.s32 %s94, 1
    %p98 = scmp.eq.s32.totalorder %s13, 1
    %p99 = scmp.ne.s32.totalorder %s94, %s96
    %p100 = scmp.eq.s32.totalorder %s13, 0
    %p101 = por %p99, %p100
    %p102 = scmp.ne.s32.totalorder %s94, %s96
    %p103 = scmp.eq.s32.totalorder %s18, 1
    %p104 = por %p102, %p103
    %p105 = scmp.ne.s32.totalorder %s96, %s97
    %p106 = scmp.eq.s32.totalorder %s18, 0
    %p107 = por %p105, %p106
    %p108 = scmp.ne.s32.totalorder %s96, %s97
    %p109 = scmp.eq.s32.totalorder %s19, 1
    %p110 = por %p108, %p109
    %p112 = scmp.ne.s32.totalorder %s97, %s111
    %p113 = scmp.eq.s32.totalorder %s19, 0
    %p114 = por %p112, %p113
    %s116 = sadd.s32 %s115, 1
    %p119 = scmp.eq.s32.totalorder %s13, 1
    %p120 = scmp.ne.s32.totalorder %s115, %s117
    %p121 = scmp.eq.s32.totalorder %s13, 0
    %p122 = por %p120, %p121
    %p123 = scmp.ne.s32.totalorder %s115, %s117
    %p124 = scmp.eq.s32.totalorder %s18, 1
    %p125 = por %p123, %p124
    %p126 = scmp.ne.s32.totalorder %s117, %s118
    %p127 = scmp.eq.s32.totalorder %s18, 0
    %p128 = por %p126, %p127
    %p129 = scmp.ne.s32.totalorder %s117, %s118
    %p130 = scmp.eq.s32.totalorder %s19, 1
    %p131 = por %p129, %p130
    %p133 = scmp.ne.s32.totalorder %s118, %s132
    %p134 = scmp.eq.s32.totalorder %s19, 0
    %p135 = por %p133, %p134
    %s137 = sadd.s32 %s136, 1
    %p140 = scmp.eq.s32.totalorder %s13, 1
    %p141 = scmp.ne.s32.totalorder %s136, %s138
    %p142 = scmp.eq.s32.totalorder %s13, 0
    %p143 = por %p141, %p142
    %p144 = scmp.ne.s32.totalorder %s136, %s138
    %p145 = scmp.eq.s32.totalorder %s18, 1
    %p146 = por %p144, %p145
    %p147 = scmp.ne.s32.totalorder %s138, %s139
    %p148 = scmp.eq.s32.totalorder %s18, 0
    %p149 = por %p147, %p148
    %p150 = scmp.ne.s32.totalorder %s138, %s139
    %p151 = scmp.eq.s32.totalorder %s19, 1
    %p152 = por %p150, %p151
    %p154 = scmp.ne.s32.totalorder %s139, %s153
    %p155 = scmp.eq.s32.totalorder %s19, 0
    %p156 = por %p154, %p155
    %s158 = sadd.s32 %s157, 1
    %p161 = scmp.eq.s32.totalorder %s13, 1
    %p162 = scmp.ne.s32.totalorder %s157, %s159
    %p163 = scmp.eq.s32.totalorder %s13, 0
    %p164 = por %p162, %p163
    %p165 = scmp.ne.s32.totalorder %s157, %s159
    %p166 = scmp.eq.s32.totalorder %s18, 1
    %p167 = por %p165, %p166
    %p168 = scmp.ne.s32.totalorder %s159, %s160
    %p169 = scmp.eq.s32.totalorder %s18, 0
    %p170 = por %p168, %p169
    %p171 = scmp.ne.s32.totalorder %s159, %s160
    %p172 = scmp.eq.s32.totalorder %s19, 1
    %p173 = por %p171, %p172
    %p175 = scmp.ne.s32.totalorder %s160, %s174
    %p176 = scmp.eq.s32.totalorder %s19, 0
    %p177 = por %p175, %p176
    %s178 = ssub.s32 %s13, %s20
    %p179 = scmp.eq.s32.totalorder %s178, 0
    %s181 = sadd.s32 %s180, 1
    %s182 = scalar_select %p179, %s180, %s181
    %p185 = pneg %p179
    %p186 = scmp.eq.s32.totalorder %s13, 1
    %p187 = por %p185, %p186
    %p188 = scmp.ne.s32.totalorder %s180, %s183
    %p189 = scmp.eq.s32.totalorder %s13, 0
    %p190 = por %p188, %p189
    %p191 = scmp.ne.s32.totalorder %s180, %s183
    %p192 = scmp.eq.s32.totalorder %s18, 1
    %p193 = por %p191, %p192
    %p194 = scmp.ne.s32.totalorder %s183, %s184
    %p195 = scmp.eq.s32.totalorder %s18, 0
    %p196 = por %p194, %p195
    %p197 = scmp.ne.s32.totalorder %s183, %s184
    %p198 = scmp.eq.s32.totalorder %s19, 1
    %p199 = por %p197, %p198
    %p201 = scmp.ne.s32.totalorder %s184, %s200
    %p202 = scmp.eq.s32.totalorder %s19, 0
    %p203 = por %p201, %p202
    %p204 = scmp.le.s32.totalorder 1, %s13
    %p205 = scmp.lt.s32.totalorder %s13, 3
    %p206 = pnand %p204, %p205
    %p207 = pneg %p206
    // Predicated region
    $region9: #{transition_model.1} parent=5 // pred_check
      _
    $region10: #{transition_model.1} parent=5 // pred_check_branch
      %209 = sbr.rel (%p206) target = $region12
    $region11: #{transition_model.1} parent=5 // pred_region
      %s210 = ssub.s32 %s13, 1
      // Predicated region
      $region13: #{transition_model.1} parent=11 // pred_check
        %p211 = pneg %p86
      $region14: #{transition_model.1} parent=11 // pred_check_branch
        %213 = sbr.rel (%p211) target = $region16
      $region15: #{transition_model.1} parent=11 // pred_region
        _
      $region16: #{transition_model.1} parent=11 // pred_fallthru
        _
      // Predicated region
      $region17: #{transition_model.1} parent=11 // pred_check
        %p214 = pneg %p107
      $region18: #{transition_model.1} parent=11 // pred_check_branch
        %216 = sbr.rel (%p214) target = $region20
      $region19: #{transition_model.1} parent=11 // pred_region
        _
      $region20: #{transition_model.1} parent=11 // pred_fallthru
        _
      // Predicated region
      $region21: #{transition_model.1} parent=11 // pred_check
        %p217 = pneg %p128
      $region22: #{transition_model.1} parent=11 // pred_check_branch
        %219 = sbr.rel (%p217) target = $region24
      $region23: #{transition_model.1} parent=11 // pred_region
        _
      $region24: #{transition_model.1} parent=11 // pred_fallthru
        _
      // Predicated region
      $region25: #{transition_model.1} parent=11 // pred_check
        %p220 = pneg %p149
      $region26: #{transition_model.1} parent=11 // pred_check_branch
        %222 = sbr.rel (%p220) target = $region28
      $region27: #{transition_model.1} parent=11 // pred_region
        _
      $region28: #{transition_model.1} parent=11 // pred_fallthru
        _
      // Predicated region
      $region29: #{transition_model.1} parent=11 // pred_check
        %p223 = pneg %p170
      $region30: #{transition_model.1} parent=11 // pred_check_branch
        %225 = sbr.rel (%p223) target = $region32
      $region31: #{transition_model.1} parent=11 // pred_region
        _
      $region32: #{transition_model.1} parent=11 // pred_fallthru
        _
    $region12: #{transition_model.1} parent=5 // pred_fallthru
      _
    %p226 = scmp.lt.s32.totalorder %s13, 2
    // Predicated region
    $region33: #{transition_model.1} parent=5 // pred_check
      %p227 = pneg %p226
    $region34: #{transition_model.1} parent=5 // pred_check_branch
      %229 = sbr.rel (%p227) target = $region36
    $region35: #{transition_model.1} parent=5 // pred_region
      // Predicated region
      $region37: #{transition_model.1} parent=35 // pred_check
        %p230 = pneg %p33
      $region38: #{transition_model.1} parent=35 // pred_check_branch
        %232 = sbr.rel (%p230) target = $region40
      $region39: #{transition_model.1} parent=35 // pred_region
        %p233 = scmp.lt.s32.totalorder %s13, 1
        %s234 = scalar_select %p233, %s13, 1
        %s235 = smul.addr %s234, 8
        %s236 = smul.addr %s235, 8
        %s237 = scalar_lea.vmem %s0, %s236
      $region40: #{transition_model.1} parent=35 // pred_fallthru
        _
      // Predicated region
      $region41: #{transition_model.1} parent=35 // pred_check
        %p238 = pneg %p59
      $region42: #{transition_model.1} parent=35 // pred_check_branch
        %240 = sbr.rel (%p238) target = $region44
      $region43: #{transition_model.1} parent=35 // pred_region
        %p241 = scmp.lt.s32.totalorder %s13, 1
        %s242 = scalar_select %p241, %s13, 1
        %s243 = smul.addr %s242, 4
        %s244 = smul.addr %s243, 8
        %s245 = scalar_lea.vmem %s1, %s244
      $region44: #{transition_model.1} parent=35 // pred_fallthru
        _
    $region36: #{transition_model.1} parent=5 // pred_fallthru
      _
    %p246 = scmp.le.s32.totalorder 1, %s13
    %p247 = scmp.lt.s32.totalorder %s13, 3
    %p248 = pnand %p246, %p247
    %p249 = pneg %p248
    // Predicated region
    $region45: #{transition_model.1} parent=5 // pred_check
      _
    $region46: #{transition_model.1} parent=5 // pred_check_branch
      %251 = sbr.rel (%p248) target = $region48
    $region47: #{transition_model.1} parent=5 // pred_region
      %s252 = ssub.s32 %s13, 1
      %p253 = scmp.lt.s32.totalorder %s18, 1
      %s254 = scalar_select %p253, %s18, 1
      %s255 = smul.addr %s254, 8
      %s256 = smul.addr %s255, 8
      %s257 = scalar_lea.vmem %s0, %s256
      %p258 = pneg %p39
      %p259 = pneg %p36
      %p260 = scmp.lt.s32.totalorder %s18, 1
      %s261 = scalar_select %p260, %s18, 1
      %s262 = smul.addr %s261, 4
      %s263 = smul.addr %s262, 8
      %s264 = scalar_lea.vmem %s1, %s263
      %p265 = pneg %p65
      %p266 = pneg %p62
      %p267 = pneg %p86
      %p268 = pneg %p83
      %p269 = pneg %p107
      %p270 = pneg %p104
      %p271 = pneg %p128
      %p272 = pneg %p125
      %p273 = pneg %p149
      %p274 = pneg %p146
      %p275 = pneg %p170
      %p276 = pneg %p167
      %p277 = pneg %p196
      %p278 = pneg %p193
      %p279 = scmp.lt.s32.totalorder %s18, 1
      %s280 = scalar_select %p279, %s18, 1
      %s281 = smul.addr %s280, 8
      %s282 = smul.addr %s281, 8
      %s283 = scalar_lea.vmem %s7, %s282
      %p284 = scmp.lt.s32.totalorder %s18, 1
      %s285 = scalar_select %p284, %s18, 1
      %s286 = smul.addr %s285, 8
      %s287 = smul.addr %s286, 8
      %s288 = scalar_lea.vmem %s0, %s287
      %p289 = scmp.lt.s32.totalorder %s18, 1
      %s290 = scalar_select %p289, %s18, 1
      %s291 = smul.addr %s290, 4
      %s292 = smul.addr %s291, 8
      %s293 = scalar_lea.vmem %s1, %s292
      %p294 = scmp.lt.s32.totalorder %s18, 1
      %s295 = scalar_select %p294, %s18, 1
      %s296 = smul.addr %s295, 8
      %s297 = smul.addr %s296, 8
      %s298 = scalar_lea.vmem %s7, %s297
      %v299 = vld [vmem:[%s288] sm:$0xff]
      %v300 = vld [vmem:[%s288 + $0x8] sm:$0xff]
      %v301 = vld [vmem:[%s288 + $0x10] sm:$0xff]
      %v302 = vld [vmem:[%s288 + $0x18] sm:$0xff]
      %v303 = vld [vmem:[%s288 + $0x20] sm:$0xff]
      %v304 = vld [vmem:[%s288 + $0x28] sm:$0xff]
      %v305 = vld [vmem:[%s288 + $0x30] sm:$0xff]
      %v306 = vld [vmem:[%s288 + $0x38] sm:$0xff]
      %v307 = vld [vmem:[%s2] sm:$0xff]
      %v308 = vld [vmem:[%s2 + $0x8] sm:$0xff]
      %v309 = vld [vmem:[%s2 + $0x10] sm:$0x1]
      %v310 = vld [vmem:[%s2 + $0x18] sm:$0x1]
      %v311 = vld [vmem:[%s293] sm:$0xff]
      %v312 = vld [vmem:[%s293 + $0x8] sm:$0xff]
      %v313 = vld [vmem:[%s293 + $0x10] sm:$0xff]
      %v314 = vld [vmem:[%s293 + $0x18] sm:$0xff]
      %vm315 = vcmask 72704
      %v317 = vsel %vm315, %v311, 0
      %v320 = vsel %vm315, %v312, 0
      %v323 = vsel %vm315, %v313, 0
      %v326 = vsel %vm315, %v314, 0
      %vm328 = vcmask 1040384
      %v330 = vsel %vm328, %v309, 0
      %v333 = vsel %vm328, %v310, 0
      %335 = vmatprep.subr.mxu0 %v308
      %336 = vmatpush1.msra.mxu0 %v307
      %337 = vmatprep.subr.mxu0 %v333
      %338 = vmatpush1.msra.mxu0 %v330
      %339 = vmatprep.subr.mxu0 0.0
      %340 = vmatpush1.msra.mxu0 0.0
      %341 = vmatprep.subr.mxu0 0.0
      %342 = vmatpush1.msra.mxu0 0.0
      %343 = vmatprep.subr.mxu0 0.0
      %344 = vmatpush1.msra.mxu0 0.0
      %345 = vmatprep.subr.mxu0 0.0
      %346 = vmatpush1.msra.mxu0 0.0
      %347 = vmatprep.subr.mxu0 0.0
      %348 = vmatpush1.msra.mxu0 0.0
      %349 = vmatprep.subr.mxu0 0.0
      %350 = vmatpush1.msra.mxu0 0.0
      %351 = vmatprep.subr.mxu0 0.0
      %352 = vmatpush1.msra.mxu0 0.0
      %353 = vmatprep.subr.mxu0 0.0
      %354 = vmatpush1.msra.mxu0 0.0
      %355 = vmatprep.subr.mxu0 0.0
      %356 = vmatpush1.msra.mxu0 0.0
      %357 = vmatprep.subr.mxu0 0.0
      %358 = vmatpush1.msra.mxu0 0.0
      %359 = vmatprep.subr.mxu0 0.0
      %360 = vmatpush1.msra.mxu0 0.0
      %361 = vmatprep.subr.mxu0 0.0
      %362 = vmatpush1.msra.mxu0 0.0
      %363 = vmatprep.subr.mxu0 0.0
      %364 = vmatpush1.msra.mxu0 0.0
      %365 = vmatprep.subr.mxu0 0.0
      %366 = vmatpush1.msra.mxu0 0.0
      %367 = vmatprep.subr.mxu0 0.0
      %368 = vmatpush1.msra.mxu0 0.0
      %369 = vmatprep.subr.mxu0 0.0
      %370 = vmatpush1.msra.mxu0 0.0
      %371 = vmatprep.subr.mxu0 0.0
      %372 = vmatpush1.msra.mxu0 0.0
      %373 = vmatprep.subr.mxu0 0.0
      %374 = vmatpush1.msra.mxu0 0.0
      %375 = vmatprep.subr.mxu0 0.0
      %376 = vmatpush1.msra.mxu0 0.0
      %377 = vmatprep.subr.mxu0 0.0
      %378 = vmatpush1.msra.mxu0 0.0
      %379 = vmatprep.subr.mxu0 0.0
      %380 = vmatpush1.msra.mxu0 0.0
      %381 = vmatprep.subr.mxu0 0.0
      %382 = vmatpush1.msra.mxu0 0.0
      %383 = vmatprep.subr.mxu0 0.0
      %384 = vmatpush1.msra.mxu0 0.0
      %385 = vmatprep.subr.mxu0 0.0
      %386 = vmatpush1.msra.mxu0 0.0
      %387 = vmatprep.subr.mxu0 0.0
      %388 = vmatpush1.msra.mxu0 0.0
      %389 = vmatprep.subr.mxu0 0.0
      %390 = vmatpush1.msra.mxu0 0.0
      %391 = vmatprep.subr.mxu0 0.0
      %392 = vmatpush1.msra.mxu0 0.0
      %393 = vmatprep.subr.mxu0 0.0
      %394 = vmatpush1.msra.mxu0 0.0
      %395 = vmatprep.subr.mxu0 0.0
      %396 = vmatpush1.msra.mxu0 0.0
      %397 = vmatprep.subr.mxu0 0.0
      %398 = vmatpush1.msra.mxu0 0.0
      %399 = vmatprep.mubr.f32.mxu0 0.0
      %400 = vmatmul.mubr.f32.gmra.mrb[0].mxu0 %v317
      %v401 = vpop.f32.mrb[0].mxu0
      %v402 = vadd.f32 0.0, %v401
      %v403 = vpop.f32.mrb[0].mxu0
      %v404 = vadd.f32 0.0, %v403
      %405 = vmatprep.mubr.f32.mxu0 0.0
      %406 = vmatmul.mubr.f32.gmra.mrb[0].mxu0 %v320
      %v407 = vpop.f32.mrb[0].mxu0
      %v408 = vadd.f32 0.0, %v407
      %v409 = vpop.f32.mrb[0].mxu0
      %v410 = vadd.f32 0.0, %v409
      %411 = vmatprep.mubr.f32.mxu0 0.0
      %412 = vmatmul.mubr.f32.gmra.mrb[0].mxu0 %v323
      %v413 = vpop.f32.mrb[0].mxu0
      %v414 = vadd.f32 0.0, %v413
      %v415 = vpop.f32.mrb[0].mxu0
      %v416 = vadd.f32 0.0, %v415
      %417 = vmatprep.mubr.f32.mxu0 0.0
      %418 = vmatmul.mubr.f32.gmra.mrb[0].mxu0 %v326
      %v419 = vpop.f32.mrb[0].mxu0
      %v420 = vadd.f32 0.0, %v419
      %v421 = vpop.f32.mrb[0].mxu0
      %v422 = vadd.f32 0.0, %v421
      %423 = vdwg.mxu0
      %s424 = scalar_lea.vmem %s3, 128
      %v425 = vld [vmem:[%s424] sm:$0xff]
      %v426 = vld [vmem:[%s424 + $0x8] sm:$0xff]
      %v427 = vld [vmem:[%s424 + $0x10] sm:$0xff]
      %v428 = vld [vmem:[%s424 + $0x18] sm:$0xff]
      %429 = vrot.lane.b32.xlu0 %v299, 17
      %v430 = vpop.permute.xlu0 %429
      %431 = vrot.lane.b32.xlu0 %v301, 17
      %v432 = vpop.permute.xlu0 %431
      %433 = vrot.lane.b32.xlu0 %v303, 17
      %v434 = vpop.permute.xlu0 %433
      %435 = vrot.lane.b32.xlu0 %v305, 17
      %v436 = vpop.permute.xlu0 %435
      %437 = vrot.lane.b32.xlu0 %v300, 17
      %v438 = vpop.permute.xlu0 %437
      %439 = vrot.lane.b32.xlu0 %v302, 17
      %v440 = vpop.permute.xlu0 %439
      %441 = vrot.lane.b32.xlu0 %v304, 17
      %v442 = vpop.permute.xlu0 %441
      %443 = vrot.lane.b32.xlu0 %v306, 17
      %v444 = vpop.permute.xlu0 %443
      %v445 = vlaneseq
      %v446 = vand.u32 %v445, 127
      %vm447 = vcmp.lt.s32.totalorder %v446, 17
      %v448 = vsel %vm447, %v430, %v438
      %v449 = vsel %vm447, %v432, %v440
      %v450 = vsel %vm447, %v434, %v442
      %v451 = vsel %vm447, %v436, %v444
      %v452 = vsel %vm447, %v438, %v430
      %v453 = vsel %vm447, %v440, %v432
      %v454 = vsel %vm447, %v442, %v434
      %v455 = vsel %vm447, %v444, %v436
      %v456 = vlaneseq
      %v457 = vshrl.u32 %v456, 7
      %v458 = vsub.s32 0, %v457
      %v459 = vrot.slane %v307, %v458
      %v460 = vlaneseq
      %v461 = vshrl.u32 %v460, 7
      %v462 = vsub.s32 0, %v461
      %v463 = vrot.slane %v308, %v462
      %v464 = vmul.f32 %v452, %v459
      %v465 = vmul.f32 %v448, %v463
      %v466 = vmul.f32 %v453, %v459
      %v467 = vmul.f32 %v449, %v463
      %v468 = vmul.f32 %v454, %v459
      %v469 = vmul.f32 %v450, %v463
      %v470 = vmul.f32 %v455, %v459
      %v471 = vmul.f32 %v451, %v463
      %v472 = vld [vmem:[%s3] sm:$0xff]
      %v473 = vld [vmem:[%s3 + $0x8] sm:$0xff]
      %v474 = vld [vmem:[%s3 + $0x10] sm:$0xff]
      %v475 = vld [vmem:[%s3 + $0x18] sm:$0xff]
      %vm476 = vcmask 261120
      %v478 = vsel %vm476, %v472, 0
      %v481 = vsel %vm476, %v473, 0
      %v484 = vsel %vm476, %v474, 0
      %v487 = vsel %vm476, %v475, 0
      %489 = vmatprep.subr.mxu0 %v465
      %490 = vmatpush1.msra.mxu0 %v464
      %491 = vmatprep.subr.mxu0 %v467
      %492 = vmatpush1.msra.mxu0 %v466
      %493 = vmatprep.subr.mxu0 %v469
      %494 = vmatpush1.msra.mxu0 %v468
      %495 = vmatprep.subr.mxu0 %v471
      %496 = vmatpush1.msra.mxu0 %v470
      %497 = vmatprep.subr.mxu0 0.0
      %498 = vmatpush1.msra.mxu0 0.0
      %499 = vmatprep.subr.mxu0 0.0
      %500 = vmatpush1.msra.mxu0 0.0
      %501 = vmatprep.subr.mxu0 0.0
      %502 = vmatpush1.msra.mxu0 0.0
      %503 = vmatprep.subr.mxu0 0.0
      %504 = vmatpush1.msra.mxu0 0.0
      %505 = vmatprep.subr.mxu0 0.0
      %506 = vmatpush1.msra.mxu0 0.0
      %507 = vmatprep.subr.mxu0 0.0
      %508 = vmatpush1.msra.mxu0 0.0
      %509 = vmatprep.subr.mxu0 0.0
      %510 = vmatpush1.msra.mxu0 0.0
      %511 = vmatprep.subr.mxu0 0.0
      %512 = vmatpush1.msra.mxu0 0.0
      %513 = vmatprep.subr.mxu0 0.0
      %514 = vmatpush1.msra.mxu0 0.0
      %515 = vmatprep.subr.mxu0 0.0
      %516 = vmatpush1.msra.mxu0 0.0
      %517 = vmatprep.subr.mxu0 0.0
      %518 = vmatpush1.msra.mxu0 0.0
      %519 = vmatprep.subr.mxu0 0.0
      %520 = vmatpush1.msra.mxu0 0.0
      %521 = vmatprep.subr.mxu0 0.0
      %522 = vmatpush1.msra.mxu0 0.0
      %523 = vmatprep.subr.mxu0 0.0
      %524 = vmatpush1.msra.mxu0 0.0
      %525 = vmatprep.subr.mxu0 0.0
      %526 = vmatpush1.msra.mxu0 0.0
      %527 = vmatprep.subr.mxu0 0.0
      %528 = vmatpush1.msra.mxu0 0.0
      %529 = vmatprep.subr.mxu0 0.0
      %530 = vmatpush1.msra.mxu0 0.0
      %531 = vmatprep.subr.mxu0 0.0
      %532 = vmatpush1.msra.mxu0 0.0
      %533 = vmatprep.subr.mxu0 0.0
      %534 = vmatpush1.msra.mxu0 0.0
      %535 = vmatprep.subr.mxu0 0.0
      %536 = vmatpush1.msra.mxu0 0.0
      %537 = vmatprep.subr.mxu0 0.0
      %538 = vmatpush1.msra.mxu0 0.0
      %539 = vmatprep.subr.mxu0 0.0
      %540 = vmatpush1.msra.mxu0 0.0
      %541 = vmatprep.subr.mxu0 0.0
      %542 = vmatpush1.msra.mxu0 0.0
      %543 = vmatprep.subr.mxu0 0.0
      %544 = vmatpush1.msra.mxu0 0.0
      %545 = vmatprep.subr.mxu0 0.0
      %546 = vmatpush1.msra.mxu0 0.0
      %547 = vmatprep.subr.mxu0 0.0
      %548 = vmatpush1.msra.mxu0 0.0
      %549 = vmatprep.subr.mxu0 0.0
      %550 = vmatpush1.msra.mxu0 0.0
      %551 = vmatprep.subr.mxu0 0.0
      %552 = vmatpush1.msra.mxu0 0.0
      %553 = vmatprep.mubr.f32.mxu0 0.0
      %554 = vmatmul.mubr.f32.gmra.mrb[0].mxu0 %v478
      %v555 = vpop.f32.mrb[0].mxu0
      %v556 = vadd.f32 0.0, %v555
      %v557 = vpop.f32.mrb[0].mxu0
      %v558 = vadd.f32 0.0, %v557
      %559 = vmatprep.mubr.f32.mxu0 0.0
      %560 = vmatmul.mubr.f32.gmra.mrb[0].mxu0 %v481
      %v561 = vpop.f32.mrb[0].mxu0
      %v562 = vadd.f32 0.0, %v561
      %v563 = vpop.f32.mrb[0].mxu0
      %v564 = vadd.f32 0.0, %v563
      %565 = vmatprep.mubr.f32.mxu0 0.0
      %566 = vmatmul.mubr.f32.gmra.mrb[0].mxu0 %v484
      %v567 = vpop.f32.mrb[0].mxu0
      %v568 = vadd.f32 0.0, %v567
      %v569 = vpop.f32.mrb[0].mxu0
      %v570 = vadd.f32 0.0, %v569
      %571 = vmatprep.mubr.f32.mxu0 0.0
      %572 = vmatmul.mubr.f32.gmra.mrb[0].mxu0 %v487
      %v573 = vpop.f32.mrb[0].mxu0
      %v574 = vadd.f32 0.0, %v573
      %v575 = vpop.f32.mrb[0].mxu0
      %v576 = vadd.f32 0.0, %v575
      %577 = vdwg.mxu0
      %v579 = vsel %vm476, %v425, 0
      %v582 = vsel %vm476, %v426, 0
      %v585 = vsel %vm476, %v427, 0
      %v588 = vsel %vm476, %v428, 0
      %590 = vmatprep.subr.mxu0 %v300
      %591 = vmatpush1.msra.mxu0 %v299
      %592 = vmatprep.subr.mxu0 %v302
      %593 = vmatpush1.msra.mxu0 %v301
      %594 = vmatprep.subr.mxu0 %v304
      %595 = vmatpush1.msra.mxu0 %v303
      %596 = vmatprep.subr.mxu0 %v306
      %597 = vmatpush1.msra.mxu0 %v305
      %598 = vmatprep.subr.mxu0 0.0
      %599 = vmatpush1.msra.mxu0 0.0
      %600 = vmatprep.subr.mxu0 0.0
      %601 = vmatpush1.msra.mxu0 0.0
      %602 = vmatprep.subr.mxu0 0.0
      %603 = vmatpush1.msra.mxu0 0.0
      %604 = vmatprep.subr.mxu0 0.0
      %605 = vmatpush1.msra.mxu0 0.0
      %606 = vmatprep.subr.mxu0 0.0
      %607 = vmatpush1.msra.mxu0 0.0
      %608 = vmatprep.subr.mxu0 0.0
      %609 = vmatpush1.msra.mxu0 0.0
      %610 = vmatprep.subr.mxu0 0.0
      %611 = vmatpush1.msra.mxu0 0.0
      %612 = vmatprep.subr.mxu0 0.0
      %613 = vmatpush1.msra.mxu0 0.0
      %614 = vmatprep.subr.mxu0 0.0
      %615 = vmatpush1.msra.mxu0 0.0
      %616 = vmatprep.subr.mxu0 0.0
      %617 = vmatpush1.msra.mxu0 0.0
      %618 = vmatprep.subr.mxu0 0.0
      %619 = vmatpush1.msra.mxu0 0.0
      %620 = vmatprep.subr.mxu0 0.0
      %621 = vmatpush1.msra.mxu0 0.0
      %622 = vmatprep.subr.mxu0 0.0
      %623 = vmatpush1.msra.mxu0 0.0
      %624 = vmatprep.subr.mxu0 0.0
      %625 = vmatpush1.msra.mxu0 0.0
      %626 = vmatprep.subr.mxu0 0.0
      %627 = vmatpush1.msra.mxu0 0.0
      %628 = vmatprep.subr.mxu0 0.0
      %629 = vmatpush1.msra.mxu0 0.0
      %630 = vmatprep.subr.mxu0 0.0
      %631 = vmatpush1.msra.mxu0 0.0
      %632 = vmatprep.subr.mxu0 0.0
      %633 = vmatpush1.msra.mxu0 0.0
      %634 = vmatprep.subr.mxu0 0.0
      %635 = vmatpush1.msra.mxu0 0.0
      %636 = vmatprep.subr.mxu0 0.0
      %637 = vmatpush1.msra.mxu0 0.0
      %638 = vmatprep.subr.mxu0 0.0
      %639 = vmatpush1.msra.mxu0 0.0
      %640 = vmatprep.subr.mxu0 0.0
      %641 = vmatpush1.msra.mxu0 0.0
      %642 = vmatprep.subr.mxu0 0.0
      %643 = vmatpush1.msra.mxu0 0.0
      %644 = vmatprep.subr.mxu0 0.0
      %645 = vmatpush1.msra.mxu0 0.0
      %646 = vmatprep.subr.mxu0 0.0
      %647 = vmatpush1.msra.mxu0 0.0
      %648 = vmatprep.subr.mxu0 0.0
      %649 = vmatpush1.msra.mxu0 0.0
      %650 = vmatprep.subr.mxu0 0.0
      %651 = vmatpush1.msra.mxu0 0.0
      %652 = vmatprep.subr.mxu0 0.0
      %653 = vmatpush1.msra.mxu0 0.0
      %654 = vmatprep.mubr.f32.mxu0 0.0
      %655 = vmatmul.mubr.f32.gmra.mrb[0].mxu0 %v579
      %v656 = vpop.f32.mrb[0].mxu0
      %v657 = vadd.f32 %v556, %v656
      %v658 = vpop.f32.mrb[0].mxu0
      %v659 = vadd.f32 %v558, %v658
      %660 = vmatprep.mubr.f32.mxu0 0.0
      %661 = vmatmul.mubr.f32.gmra.mrb[0].mxu0 %v582
      %v662 = vpop.f32.mrb[0].mxu0
      %v663 = vadd.f32 %v562, %v662
      %v664 = vpop.f32.mrb[0].mxu0
      %v665 = vadd.f32 %v564, %v664
      %666 = vmatprep.mubr.f32.mxu0 0.0
      %667 = vmatmul.mubr.f32.gmra.mrb[0].mxu0 %v585
      %v668 = vpop.f32.mrb[0].mxu0
      %v669 = vadd.f32 %v568, %v668
      %v670 = vpop.f32.mrb[0].mxu0
      %v671 = vadd.f32 %v570, %v670
      %672 = vmatprep.mubr.f32.mxu0 0.0
      %673 = vmatmul.mubr.f32.gmra.mrb[0].mxu0 %v588
      %v674 = vpop.f32.mrb[0].mxu0
      %v675 = vadd.f32 %v574, %v674
      %v676 = vpop.f32.mrb[0].mxu0
      %v677 = vadd.f32 %v576, %v676
      %678 = vdwg.mxu0
      %679 = vrot.lane.b32.xlu0 %v299, 16
      %v680 = vpop.permute.xlu0 %679
      %681 = vrot.lane.b32.xlu0 %v301, 16
      %v682 = vpop.permute.xlu0 %681
      %683 = vrot.lane.b32.xlu0 %v303, 16
      %v684 = vpop.permute.xlu0 %683
      %685 = vrot.lane.b32.xlu0 %v305, 16
      %v686 = vpop.permute.xlu0 %685
      %687 = vrot.lane.b32.xlu0 %v300, 16
      %v688 = vpop.permute.xlu0 %687
      %689 = vrot.lane.b32.xlu0 %v302, 16
      %v690 = vpop.permute.xlu0 %689
      %691 = vrot.lane.b32.xlu0 %v304, 16
      %v692 = vpop.permute.xlu0 %691
      %693 = vrot.lane.b32.xlu0 %v306, 16
      %v694 = vpop.permute.xlu0 %693
      %vm695 = vcmp.lt.s32.totalorder %v446, 16
      %v696 = vsel %vm695, %v680, %v688
      %v697 = vsel %vm695, %v682, %v690
      %v698 = vsel %vm695, %v684, %v692
      %v699 = vsel %vm695, %v686, %v694
      %v700 = vsel %vm695, %v688, %v680
      %v701 = vsel %vm695, %v690, %v682
      %v702 = vsel %vm695, %v692, %v684
      %v703 = vsel %vm695, %v694, %v686
      %v704 = vlaneseq
      %v705 = vshrl.u32 %v704, 7
      %v706 = vsub.s32 1, %v705
      %v707 = vrot.slane %v307, %v706
      %v708 = vlaneseq
      %v709 = vshrl.u32 %v708, 7
      %v710 = vsub.s32 1, %v709
      %v711 = vrot.slane %v308, %v710
      %v712 = vmul.f32 %v700, %v707
      %v713 = vmul.f32 %v696, %v711
      %v714 = vmul.f32 %v701, %v707
      %v715 = vmul.f32 %v697, %v711
      %v716 = vmul.f32 %v702, %v707
      %v717 = vmul.f32 %v698, %v711
      %v718 = vmul.f32 %v703, %v707
      %v719 = vmul.f32 %v699, %v711
      %s720 = scalar_lea.vmem %s3, 32
      %v721 = vld [vmem:[%s720] sm:$0xff]
      %v722 = vld [vmem:[%s720 + $0x8] sm:$0xff]
      %v723 = vld [vmem:[%s720 + $0x10] sm:$0xff]
      %v724 = vld [vmem:[%s720 + $0x18] sm:$0xff]
      %v726 = vsel %vm476, %v721, 0
      %v729 = vsel %vm476, %v722, 0
      %v732 = vsel %vm476, %v723, 0
      %v735 = vsel %vm476, %v724, 0
      %737 = vmatprep.subr.mxu0 %v713
      %738 = vmatpush1.msra.mxu0 %v712
      %739 = vmatprep.subr.mxu0 %v715
      %740 = vmatpush1.msra.mxu0 %v714
      %741 = vmatprep.subr.mxu0 %v717
      %742 = vmatpush1.msra.mxu0 %v716
      %743 = vmatprep.subr.mxu0 %v719
      %744 = vmatpush1.msra.mxu0 %v718
      %745 = vmatprep.subr.mxu0 0.0
      %746 = vmatpush1.msra.mxu0 0.0
      %747 = vmatprep.subr.mxu0 0.0
      %748 = vmatpush1.msra.mxu0 0.0
      %749 = vmatprep.subr.mxu0 0.0
      %750 = vmatpush1.msra.mxu0 0.0
      %751 = vmatprep.subr.mxu0 0.0
      %752 = vmatpush1.msra.mxu0 0.0
      %753 = vmatprep.subr.mxu0 0.0
      %754 = vmatpush1.msra.mxu0 0.0
      %755 = vmatprep.subr.mxu0 0.0
      %756 = vmatpush1.msra.mxu0 0.0
      %757 = vmatprep.subr.mxu0 0.0
      %758 = vmatpush1.msra.mxu0 0.0
      %759 = vmatprep.subr.mxu0 0.0
      %760 = vmatpush1.msra.mxu0 0.0
      %761 = vmatprep.subr.mxu0 0.0
      %762 = vmatpush1.msra.mxu0 0.0
      %763 = vmatprep.subr.mxu0 0.0
      %764 = vmatpush1.msra.mxu0 0.0
      %765 = vmatprep.subr.mxu0 0.0
      %766 = vmatpush1.msra.mxu0 0.0
      %767 = vmatprep.subr.mxu0 0.0
      %768 = vmatpush1.msra.mxu0 0.0
      %769 = vmatprep.subr.mxu0 0.0
      %770 = vmatpush1.msra.mxu0 0.0
      %771 = vmatprep.subr.mxu0 0.0
      %772 = vmatpush1.msra.mxu0 0.0
      %773 = vmatprep.subr.mxu0 0.0
      %774 = vmatpush1.msra.mxu0 0.0
      %775 = vmatprep.subr.mxu0 0.0
      %776 = vmatpush1.msra.mxu0 0.0
      %777 = vmatprep.subr.mxu0 0.0
      %778 = vmatpush1.msra.mxu0 0.0
      %779 = vmatprep.subr.mxu0 0.0
      %780 = vmatpush1.msra.mxu0 0.0
      %781 = vmatprep.subr.mxu0 0.0
      %782 = vmatpush1.msra.mxu0 0.0
      %783 = vmatprep.subr.mxu0 0.0
      %784 = vmatpush1.msra.mxu0 0.0
      %785 = vmatprep.subr.mxu0 0.0
      %786 = vmatpush1.msra.mxu0 0.0
      %787 = vmatprep.subr.mxu0 0.0
      %788 = vmatpush1.msra.mxu0 0.0
      %789 = vmatprep.subr.mxu0 0.0
      %790 = vmatpush1.msra.mxu0 0.0
      %791 = vmatprep.subr.mxu0 0.0
      %792 = vmatpush1.msra.mxu0 0.0
      %793 = vmatprep.subr.mxu0 0.0
      %794 = vmatpush1.msra.mxu0 0.0
      %795 = vmatprep.subr.mxu0 0.0
      %796 = vmatpush1.msra.mxu0 0.0
      %797 = vmatprep.subr.mxu0 0.0
      %798 = vmatpush1.msra.mxu0 0.0
      %799 = vmatprep.subr.mxu0 0.0
      %800 = vmatpush1.msra.mxu0 0.0
      %801 = vmatprep.mubr.f32.mxu0 0.0
      %802 = vmatmul.mubr.f32.gmra.mrb[0].mxu0 %v726
      %v803 = vpop.f32.mrb[0].mxu0
      %v804 = vadd.f32 0.0, %v803
      %v805 = vpop.f32.mrb[0].mxu0
      %v806 = vadd.f32 0.0, %v805
      %807 = vmatprep.mubr.f32.mxu0 0.0
      %808 = vmatmul.mubr.f32.gmra.mrb[0].mxu0 %v729
      %v809 = vpop.f32.mrb[0].mxu0
      %v810 = vadd.f32 0.0, %v809
      %v811 = vpop.f32.mrb[0].mxu0
      %v812 = vadd.f32 0.0, %v811
      %813 = vmatprep.mubr.f32.mxu0 0.0
      %814 = vmatmul.mubr.f32.gmra.mrb[0].mxu0 %v732
      %v815 = vpop.f32.mrb[0].mxu0
      %v816 = vadd.f32 0.0, %v815
      %v817 = vpop.f32.mrb[0].mxu0
      %v818 = vadd.f32 0.0, %v817
      %819 = vmatprep.mubr.f32.mxu0 0.0
      %820 = vmatmul.mubr.f32.gmra.mrb[0].mxu0 %v735
      %v821 = vpop.f32.mrb[0].mxu0
      %v822 = vadd.f32 0.0, %v821
      %v823 = vpop.f32.mrb[0].mxu0
      %v824 = vadd.f32 0.0, %v823
      %825 = vdwg.mxu0
      %v826 = vadd.f32 %v657, %v804
      %v827 = vadd.f32 %v659, %v806
      %v828 = vadd.f32 %v663, %v810
      %v829 = vadd.f32 %v665, %v812
      %v830 = vadd.f32 %v669, %v816
      %v831 = vadd.f32 %v671, %v818
      %v832 = vadd.f32 %v675, %v822
      %v833 = vadd.f32 %v677, %v824
      %834 = vrot.lane.b32.xlu0 %v299, 15
      %v835 = vpop.permute.xlu0 %834
      %836 = vrot.lane.b32.xlu0 %v301, 15
      %v837 = vpop.permute.xlu0 %836
      %838 = vrot.lane.b32.xlu0 %v303, 15
      %v839 = vpop.permute.xlu0 %838
      %840 = vrot.lane.b32.xlu0 %v305, 15
      %v841 = vpop.permute.xlu0 %840
      %842 = vrot.lane.b32.xlu0 %v300, 15
      %v843 = vpop.permute.xlu0 %842
      %844 = vrot.lane.b32.xlu0 %v302, 15
      %v845 = vpop.permute.xlu0 %844
      %846 = vrot.lane.b32.xlu0 %v304, 15
      %v847 = vpop.permute.xlu0 %846
      %848 = vrot.lane.b32.xlu0 %v306, 15
      %v849 = vpop.permute.xlu0 %848
      %vm850 = vcmp.lt.s32.totalorder %v446, 15
      %v851 = vsel %vm850, %v835, %v843
      %v852 = vsel %vm850, %v837, %v845
      %v853 = vsel %vm850, %v839, %v847
      %v854 = vsel %vm850, %v841, %v849
      %v855 = vsel %vm850, %v843, %v835
      %v856 = vsel %vm850, %v845, %v837
      %v857 = vsel %vm850, %v847, %v839
      %v858 = vsel %vm850, %v849, %v841
      %v859 = vlaneseq
      %v860 = vshrl.u32 %v859, 7
      %v861 = vsub.s32 2, %v860
      %v862 = vrot.slane %v307, %v861
      %v863 = vlaneseq
      %v864 = vshrl.u32 %v863, 7
      %v865 = vsub.s32 2, %v864
      %v866 = vrot.slane %v308, %v865
      %v867 = vmul.f32 %v855, %v862
      %v868 = vmul.f32 %v851, %v866
      %v869 = vmul.f32 %v856, %v862
      %v870 = vmul.f32 %v852, %v866
      %v871 = vmul.f32 %v857, %v862
      %v872 = vmul.f32 %v853, %v866
      %v873 = vmul.f32 %v858, %v862
      %v874 = vmul.f32 %v854, %v866
      %s875 = scalar_lea.vmem %s3, 64
      %v876 = vld [vmem:[%s875] sm:$0xff]
      %v877 = vld [vmem:[%s875 + $0x8] sm:$0xff]
      %v878 = vld [vmem:[%s875 + $0x10] sm:$0xff]
      %v879 = vld [vmem:[%s875 + $0x18] sm:$0xff]
      %v881 = vsel %vm476, %v876, 0
      %v884 = vsel %vm476, %v877, 0
      %v887 = vsel %vm476, %v878, 0
      %v890 = vsel %vm476, %v879, 0
      %892 = vmatprep.subr.mxu0 %v868
      %893 = vmatpush1.msra.mxu0 %v867
      %894 = vmatprep.subr.mxu0 %v870
      %895 = vmatpush1.msra.mxu0 %v869
      %896 = vmatprep.subr.mxu0 %v872
      %897 = vmatpush1.msra.mxu0 %v871
      %898 = vmatprep.subr.mxu0 %v874
      %899 = vmatpush1.msra.mxu0 %v873
      %900 = vmatprep.subr.mxu0 0.0
      %901 = vmatpush1.msra.mxu0 0.0
      %902 = vmatprep.subr.mxu0 0.0
      %903 = vmatpush1.msra.mxu0 0.0
      %904 = vmatprep.subr.mxu0 0.0
      %905 = vmatpush1.msra.mxu0 0.0
      %906 = vmatprep.subr.mxu0 0.0
      %907 = vmatpush1.msra.mxu0 0.0
      %908 = vmatprep.subr.mxu0 0.0
      %909 = vmatpush1.msra.mxu0 0.0
      %910 = vmatprep.subr.mxu0 0.0
      %911 = vmatpush1.msra.mxu0 0.0
      %912 = vmatprep.subr.mxu0 0.0
      %913 = vmatpush1.msra.mxu0 0.0
      %914 = vmatprep.subr.mxu0 0.0
      %915 = vmatpush1.msra.mxu0 0.0
      %916 = vmatprep.subr.mxu0 0.0
      %917 = vmatpush1.msra.mxu0 0.0
      %918 = vmatprep.subr.mxu0 0.0
      %919 = vmatpush1.msra.mxu0 0.0
      %920 = vmatprep.subr.mxu0 0.0
      %921 = vmatpush1.msra.mxu0 0.0
      %922 = vmatprep.subr.mxu0 0.0
      %923 = vmatpush1.msra.mxu0 0.0
      %924 = vmatprep.subr.mxu0 0.0
      %925 = vmatpush1.msra.mxu0 0.0
      %926 = vmatprep.subr.mxu0 0.0
      %927 = vmatpush1.msra.mxu0 0.0
      %928 = vmatprep.subr.mxu0 0.0
      %929 = vmatpush1.msra.mxu0 0.0
      %930 = vmatprep.subr.mxu0 0.0
      %931 = vmatpush1.msra.mxu0 0.0
      %932 = vmatprep.subr.mxu0 0.0
      %933 = vmatpush1.msra.mxu0 0.0
      %934 = vmatprep.subr.mxu0 0.0
      %935 = vmatpush1.msra.mxu0 0.0
      %936 = vmatprep.subr.mxu0 0.0
      %937 = vmatpush1.msra.mxu0 0.0
      %938 = vmatprep.subr.mxu0 0.0
      %939 = vmatpush1.msra.mxu0 0.0
      %940 = vmatprep.subr.mxu0 0.0
      %941 = vmatpush1.msra.mxu0 0.0
      %942 = vmatprep.subr.mxu0 0.0
      %943 = vmatpush1.msra.mxu0 0.0
      %944 = vmatprep.subr.mxu0 0.0
      %945 = vmatpush1.msra.mxu0 0.0
      %946 = vmatprep.subr.mxu0 0.0
      %947 = vmatpush1.msra.mxu0 0.0
      %948 = vmatprep.subr.mxu0 0.0
      %949 = vmatpush1.msra.mxu0 0.0
      %950 = vmatprep.subr.mxu0 0.0
      %951 = vmatpush1.msra.mxu0 0.0
      %952 = vmatprep.subr.mxu0 0.0
      %953 = vmatpush1.msra.mxu0 0.0
      %954 = vmatprep.subr.mxu0 0.0
      %955 = vmatpush1.msra.mxu0 0.0
      %956 = vmatprep.mubr.f32.mxu0 0.0
      %957 = vmatmul.mubr.f32.gmra.mrb[0].mxu0 %v881
      %v958 = vpop.f32.mrb[0].mxu0
      %v959 = vadd.f32 0.0, %v958
      %v960 = vpop.f32.mrb[0].mxu0
      %v961 = vadd.f32 0.0, %v960
      %962 = vmatprep.mubr.f32.mxu0 0.0
      %963 = vmatmul.mubr.f32.gmra.mrb[0].mxu0 %v884
      %v964 = vpop.f32.mrb[0].mxu0
      %v965 = vadd.f32 0.0, %v964
      %v966 = vpop.f32.mrb[0].mxu0
      %v967 = vadd.f32 0.0, %v966
      %968 = vmatprep.mubr.f32.mxu0 0.0
      %969 = vmatmul.mubr.f32.gmra.mrb[0].mxu0 %v887
      %v970 = vpop.f32.mrb[0].mxu0
      %v971 = vadd.f32 0.0, %v970
      %v972 = vpop.f32.mrb[0].mxu0
      %v973 = vadd.f32 0.0, %v972
      %974 = vmatprep.mubr.f32.mxu0 0.0
      %975 = vmatmul.mubr.f32.gmra.mrb[0].mxu0 %v890
      %v976 = vpop.f32.mrb[0].mxu0
      %v977 = vadd.f32 0.0, %v976
      %v978 = vpop.f32.mrb[0].mxu0
      %v979 = vadd.f32 0.0, %v978
      %980 = vdwg.mxu0
      %v981 = vadd.f32 %v826, %v959
      %v982 = vadd.f32 %v827, %v961
      %v983 = vadd.f32 %v828, %v965
      %v984 = vadd.f32 %v829, %v967
      %v985 = vadd.f32 %v830, %v971
      %v986 = vadd.f32 %v831, %v973
      %v987 = vadd.f32 %v832, %v977
      %v988 = vadd.f32 %v833, %v979
      %989 = vrot.lane.b32.xlu0 %v299, 1
      %v990 = vpop.permute.xlu0 %989
      %991 = vrot.lane.b32.xlu0 %v301, 1
      %v992 = vpop.permute.xlu0 %991
      %993 = vrot.lane.b32.xlu0 %v303, 1
      %v994 = vpop.permute.xlu0 %993
      %995 = vrot.lane.b32.xlu0 %v305, 1
      %v996 = vpop.permute.xlu0 %995
      %997 = vrot.lane.b32.xlu0 %v300, 1
      %v998 = vpop.permute.xlu0 %997
      %999 = vrot.lane.b32.xlu0 %v302, 1
      %v1000 = vpop.permute.xlu0 %999
      %1001 = vrot.lane.b32.xlu0 %v304, 1
      %v1002 = vpop.permute.xlu0 %1001
      %1003 = vrot.lane.b32.xlu0 %v306, 1
      %v1004 = vpop.permute.xlu0 %1003
      %vm1005 = vcmp.lt.s32.totalorder %v446, 1
      %v1006 = vsel %vm1005, %v990, %v998
      %v1007 = vsel %vm1005, %v992, %v1000
      %v1008 = vsel %vm1005, %v994, %v1002
      %v1009 = vsel %vm1005, %v996, %v1004
      %v1010 = vsel %vm1005, %v998, %v990
      %v1011 = vsel %vm1005, %v1000, %v992
      %v1012 = vsel %vm1005, %v1002, %v994
      %v1013 = vsel %vm1005, %v1004, %v996
      %v1014 = vlaneseq
      %v1015 = vshrl.u32 %v1014, 7
      %v1016 = vsub.s32 3, %v1015
      %v1017 = vrot.slane %v307, %v1016
      %v1018 = vlaneseq
      %v1019 = vshrl.u32 %v1018, 7
      %v1020 = vsub.s32 3, %v1019
      %v1021 = vrot.slane %v308, %v1020
      %v1022 = vmul.f32 %v1010, %v1017
      %v1023 = vmul.f32 %v1006, %v1021
      %v1024 = vmul.f32 %v1011, %v1017
      %v1025 = vmul.f32 %v1007, %v1021
      %v1026 = vmul.f32 %v1012, %v1017
      %v1027 = vmul.f32 %v1008, %v1021
      %v1028 = vmul.f32 %v1013, %v1017
      %v1029 = vmul.f32 %v1009, %v1021
      %s1030 = scalar_lea.vmem %s3, 96
      %v1031 = vld [vmem:[%s1030] sm:$0xff]
      %v1032 = vld [vmem:[%s1030 + $0x8] sm:$0xff]
      %v1033 = vld [vmem:[%s1030 + $0x10] sm:$0xff]
      %v1034 = vld [vmem:[%s1030 + $0x18] sm:$0xff]
      %v1036 = vsel %vm476, %v1031, 0
      %v1039 = vsel %vm476, %v1032, 0
      %v1042 = vsel %vm476, %v1033, 0
      %v1045 = vsel %vm476, %v1034, 0
      %1047 = vmatprep.subr.mxu0 %v1023
      %1048 = vmatpush1.msra.mxu0 %v1022
      %1049 = vmatprep.subr.mxu0 %v1025
      %1050 = vmatpush1.msra.mxu0 %v1024
      %1051 = vmatprep.subr.mxu0 %v1027
      %1052 = vmatpush1.msra.mxu0 %v1026
      %1053 = vmatprep.subr.mxu0 %v1029
      %1054 = vmatpush1.msra.mxu0 %v1028
      %1055 = vmatprep.subr.mxu0 0.0
      %1056 = vmatpush1.msra.mxu0 0.0
      %1057 = vmatprep.subr.mxu0 0.0
      %1058 = vmatpush1.msra.mxu0 0.0
      %1059 = vmatprep.subr.mxu0 0.0
      %1060 = vmatpush1.msra.mxu0 0.0
      %1061 = vmatprep.subr.mxu0 0.0
      %1062 = vmatpush1.msra.mxu0 0.0
      %1063 = vmatprep.subr.mxu0 0.0
      %1064 = vmatpush1.msra.mxu0 0.0
      %1065 = vmatprep.subr.mxu0 0.0
      %1066 = vmatpush1.msra.mxu0 0.0
      %1067 = vmatprep.subr.mxu0 0.0
      %1068 = vmatpush1.msra.mxu0 0.0
      %1069 = vmatprep.subr.mxu0 0.0
      %1070 = vmatpush1.msra.mxu0 0.0
      %1071 = vmatprep.subr.mxu0 0.0
      %1072 = vmatpush1.msra.mxu0 0.0
      %1073 = vmatprep.subr.mxu0 0.0
      %1074 = vmatpush1.msra.mxu0 0.0
      %1075 = vmatprep.subr.mxu0 0.0
      %1076 = vmatpush1.msra.mxu0 0.0
      %1077 = vmatprep.subr.mxu0 0.0
      %1078 = vmatpush1.msra.mxu0 0.0
      %1079 = vmatprep.subr.mxu0 0.0
      %1080 = vmatpush1.msra.mxu0 0.0
      %1081 = vmatprep.subr.mxu0 0.0
      %1082 = vmatpush1.msra.mxu0 0.0
      %1083 = vmatprep.subr.mxu0 0.0
      %1084 = vmatpush1.msra.mxu0 0.0
      %1085 = vmatprep.subr.mxu0 0.0
      %1086 = vmatpush1.msra.mxu0 0.0
      %1087 = vmatprep.subr.mxu0 0.0
      %1088 = vmatpush1.msra.mxu0 0.0
      %1089 = vmatprep.subr.mxu0 0.0
      %1090 = vmatpush1.msra.mxu0 0.0
      %1091 = vmatprep.subr.mxu0 0.0
      %1092 = vmatpush1.msra.mxu0 0.0
      %1093 = vmatprep.subr.mxu0 0.0
      %1094 = vmatpush1.msra.mxu0 0.0
      %1095 = vmatprep.subr.mxu0 0.0
      %1096 = vmatpush1.msra.mxu0 0.0
      %1097 = vmatprep.subr.mxu0 0.0
      %1098 = vmatpush1.msra.mxu0 0.0
      %1099 = vmatprep.subr.mxu0 0.0
      %1100 = vmatpush1.msra.mxu0 0.0
      %1101 = vmatprep.subr.mxu0 0.0
      %1102 = vmatpush1.msra.mxu0 0.0
      %1103 = vmatprep.subr.mxu0 0.0
      %1104 = vmatpush1.msra.mxu0 0.0
      %1105 = vmatprep.subr.mxu0 0.0
      %1106 = vmatpush1.msra.mxu0 0.0
      %1107 = vmatprep.subr.mxu0 0.0
      %1108 = vmatpush1.msra.mxu0 0.0
      %1109 = vmatprep.subr.mxu0 0.0
      %1110 = vmatpush1.msra.mxu0 0.0
      %1111 = vmatprep.mubr.f32.mxu0 0.0
      %1112 = vmatmul.mubr.f32.gmra.mrb[0].mxu0 %v1036
      %v1113 = vpop.f32.mrb[0].mxu0
      %v1114 = vadd.f32 0.0, %v1113
      %v1115 = vpop.f32.mrb[0].mxu0
      %v1116 = vadd.f32 0.0, %v1115
      %1117 = vmatprep.mubr.f32.mxu0 0.0
      %1118 = vmatmul.mubr.f32.gmra.mrb[0].mxu0 %v1039
      %v1119 = vpop.f32.mrb[0].mxu0
      %v1120 = vadd.f32 0.0, %v1119
      %v1121 = vpop.f32.mrb[0].mxu0
      %v1122 = vadd.f32 0.0, %v1121
      %1123 = vmatprep.mubr.f32.mxu0 0.0
      %1124 = vmatmul.mubr.f32.gmra.mrb[0].mxu0 %v1042
      %v1125 = vpop.f32.mrb[0].mxu0
      %v1126 = vadd.f32 0.0, %v1125
      %v1127 = vpop.f32.mrb[0].mxu0
      %v1128 = vadd.f32 0.0, %v1127
      %1129 = vmatprep.mubr.f32.mxu0 0.0
      %1130 = vmatmul.mubr.f32.gmra.mrb[0].mxu0 %v1045
      %v1131 = vpop.f32.mrb[0].mxu0
      %v1132 = vadd.f32 0.0, %v1131
      %v1133 = vpop.f32.mrb[0].mxu0
      %v1134 = vadd.f32 0.0, %v1133
      %1135 = vdwg.mxu0
      %v1136 = vadd.f32 %v981, %v1114
      %v1137 = vadd.f32 %v982, %v1116
      %v1138 = vadd.f32 %v983, %v1120
      %v1139 = vadd.f32 %v984, %v1122
      %v1140 = vadd.f32 %v985, %v1126
      %v1141 = vadd.f32 %v986, %v1128
      %v1142 = vadd.f32 %v987, %v1132
      %v1143 = vadd.f32 %v988, %v1134
      %1144 = vrot.lane.b32.xlu0 %v299, 127
      %v1145 = vpop.permute.xlu0 %1144
      %1146 = vrot.lane.b32.xlu0 %v301, 127
      %v1147 = vpop.permute.xlu0 %1146
      %1148 = vrot.lane.b32.xlu0 %v303, 127
      %v1149 = vpop.permute.xlu0 %1148
      %1150 = vrot.lane.b32.xlu0 %v305, 127
      %v1151 = vpop.permute.xlu0 %1150
      %1152 = vrot.lane.b32.xlu0 %v300, 127
      %v1153 = vpop.permute.xlu0 %1152
      %1154 = vrot.lane.b32.xlu0 %v302, 127
      %v1155 = vpop.permute.xlu0 %1154
      %1156 = vrot.lane.b32.xlu0 %v304, 127
      %v1157 = vpop.permute.xlu0 %1156
      %1158 = vrot.lane.b32.xlu0 %v306, 127
      %v1159 = vpop.permute.xlu0 %1158
      %vm1160 = vcmp.lt.s32.totalorder %v446, 127
      %v1161 = vsel %vm1160, %v1145, %v1153
      %v1162 = vsel %vm1160, %v1147, %v1155
      %v1163 = vsel %vm1160, %v1149, %v1157
      %v1164 = vsel %vm1160, %v1151, %v1159
      %v1165 = vsel %vm1160, %v1153, %v1145
      %v1166 = vsel %vm1160, %v1155, %v1147
      %v1167 = vsel %vm1160, %v1157, %v1149
      %v1168 = vsel %vm1160, %v1159, %v1151
      %v1169 = vlaneseq
      %v1170 = vshrl.u32 %v1169, 7
      %v1171 = vsub.s32 5, %v1170
      %v1172 = vrot.slane %v307, %v1171
      %v1173 = vlaneseq
      %v1174 = vshrl.u32 %v1173, 7
      %v1175 = vsub.s32 5, %v1174
      %v1176 = vrot.slane %v308, %v1175
      %v1177 = vmul.f32 %v1161, %v1172
      %v1178 = vmul.f32 %v1165, %v1176
      %v1179 = vmul.f32 %v1162, %v1172
      %v1180 = vmul.f32 %v1166, %v1176
      %v1181 = vmul.f32 %v1163, %v1172
      %v1182 = vmul.f32 %v1167, %v1176
      %v1183 = vmul.f32 %v1164, %v1172
      %v1184 = vmul.f32 %v1168, %v1176
      %s1185 = scalar_lea.vmem %s3, 160
      %v1186 = vld [vmem:[%s1185] sm:$0xff]
      %v1187 = vld [vmem:[%s1185 + $0x8] sm:$0xff]
      %v1188 = vld [vmem:[%s1185 + $0x10] sm:$0xff]
      %v1189 = vld [vmem:[%s1185 + $0x18] sm:$0xff]
      %v1191 = vsel %vm476, %v1186, 0
      %v1194 = vsel %vm476, %v1187, 0
      %v1197 = vsel %vm476, %v1188, 0
      %v1200 = vsel %vm476, %v1189, 0
      %1202 = vmatprep.subr.mxu0 %v1178
      %1203 = vmatpush1.msra.mxu0 %v1177
      %1204 = vmatprep.subr.mxu0 %v1180
      %1205 = vmatpush1.msra.mxu0 %v1179
      %1206 = vmatprep.subr.mxu0 %v1182
      %1207 = vmatpush1.msra.mxu0 %v1181
      %1208 = vmatprep.subr.mxu0 %v1184
      %1209 = vmatpush1.msra.mxu0 %v1183
      %1210 = vmatprep.subr.mxu0 0.0
      %1211 = vmatpush1.msra.mxu0 0.0
      %1212 = vmatprep.subr.mxu0 0.0
      %1213 = vmatpush1.msra.mxu0 0.0
      %1214 = vmatprep.subr.mxu0 0.0
      %1215 = vmatpush1.msra.mxu0 0.0
      %1216 = vmatprep.subr.mxu0 0.0
      %1217 = vmatpush1.msra.mxu0 0.0
      %1218 = vmatprep.subr.mxu0 0.0
      %1219 = vmatpush1.msra.mxu0 0.0
      %1220 = vmatprep.subr.mxu0 0.0
      %1221 = vmatpush1.msra.mxu0 0.0
      %1222 = vmatprep.subr.mxu0 0.0
      %1223 = vmatpush1.msra.mxu0 0.0
      %1224 = vmatprep.subr.mxu0 0.0
      %1225 = vmatpush1.msra.mxu0 0.0
      %1226 = vmatprep.subr.mxu0 0.0
      %1227 = vmatpush1.msra.mxu0 0.0
      %1228 = vmatprep.subr.mxu0 0.0
      %1229 = vmatpush1.msra.mxu0 0.0
      %1230 = vmatprep.subr.mxu0 0.0
      %1231 = vmatpush1.msra.mxu0 0.0
      %1232 = vmatprep.subr.mxu0 0.0
      %1233 = vmatpush1.msra.mxu0 0.0
      %1234 = vmatprep.subr.mxu0 0.0
      %1235 = vmatpush1.msra.mxu0 0.0
      %1236 = vmatprep.subr.mxu0 0.0
      %1237 = vmatpush1.msra.mxu0 0.0
      %1238 = vmatprep.subr.mxu0 0.0
      %1239 = vmatpush1.msra.mxu0 0.0
      %1240 = vmatprep.subr.mxu0 0.0
      %1241 = vmatpush1.msra.mxu0 0.0
      %1242 = vmatprep.subr.mxu0 0.0
      %1243 = vmatpush1.msra.mxu0 0.0
      %1244 = vmatprep.subr.mxu0 0.0
      %1245 = vmatpush1.msra.mxu0 0.0
      %1246 = vmatprep.subr.mxu0 0.0
      %1247 = vmatpush1.msra.mxu0 0.0
      %1248 = vmatprep.subr.mxu0 0.0
      %1249 = vmatpush1.msra.mxu0 0.0
      %1250 = vmatprep.subr.mxu0 0.0
      %1251 = vmatpush1.msra.mxu0 0.0
      %1252 = vmatprep.subr.mxu0 0.0
      %1253 = vmatpush1.msra.mxu0 0.0
      %1254 = vmatprep.subr.mxu0 0.0
      %1255 = vmatpush1.msra.mxu0 0.0
      %1256 = vmatprep.subr.mxu0 0.0
      %1257 = vmatpush1.msra.mxu0 0.0
      %1258 = vmatprep.subr.mxu0 0.0
      %1259 = vmatpush1.msra.mxu0 0.0
      %1260 = vmatprep.subr.mxu0 0.0
      %1261 = vmatpush1.msra.mxu0 0.0
      %1262 = vmatprep.subr.mxu0 0.0
      %1263 = vmatpush1.msra.mxu0 0.0
      %1264 = vmatprep.subr.mxu0 0.0
      %1265 = vmatpush1.msra.mxu0 0.0
      %1266 = vmatprep.mubr.f32.mxu0 0.0
      %1267 = vmatmul.mubr.f32.gmra.mrb[0].mxu0 %v1191
      %v1268 = vpop.f32.mrb[0].mxu0
      %v1269 = vadd.f32 0.0, %v1268
      %v1270 = vpop.f32.mrb[0].mxu0
      %v1271 = vadd.f32 0.0, %v1270
      %1272 = vmatprep.mubr.f32.mxu0 0.0
      %1273 = vmatmul.mubr.f32.gmra.mrb[0].mxu0 %v1194
      %v1274 = vpop.f32.mrb[0].mxu0
      %v1275 = vadd.f32 0.0, %v1274
      %v1276 = vpop.f32.mrb[0].mxu0
      %v1277 = vadd.f32 0.0, %v1276
      %1278 = vmatprep.mubr.f32.mxu0 0.0
      %1279 = vmatmul.mubr.f32.gmra.mrb[0].mxu0 %v1197
      %v1280 = vpop.f32.mrb[0].mxu0
      %v1281 = vadd.f32 0.0, %v1280
      %v1282 = vpop.f32.mrb[0].mxu0
      %v1283 = vadd.f32 0.0, %v1282
      %1284 = vmatprep.mubr.f32.mxu0 0.0
      %1285 = vmatmul.mubr.f32.gmra.mrb[0].mxu0 %v1200
      %v1286 = vpop.f32.mrb[0].mxu0
      %v1287 = vadd.f32 0.0, %v1286
      %v1288 = vpop.f32.mrb[0].mxu0
      %v1289 = vadd.f32 0.0, %v1288
      %1290 = vdwg.mxu0
      %v1291 = vadd.f32 %v1136, %v1269
      %v1292 = vadd.f32 %v1137, %v1271
      %v1293 = vadd.f32 %v1138, %v1275
      %v1294 = vadd.f32 %v1139, %v1277
      %v1295 = vadd.f32 %v1140, %v1281
      %v1296 = vadd.f32 %v1141, %v1283
      %v1297 = vadd.f32 %v1142, %v1287
      %v1298 = vadd.f32 %v1143, %v1289
      %1299 = vrot.lane.b32.xlu0 %v299, 113
      %v1300 = vpop.permute.xlu0 %1299
      %1301 = vrot.lane.b32.xlu0 %v301, 113
      %v1302 = vpop.permute.xlu0 %1301
      %1303 = vrot.lane.b32.xlu0 %v303, 113
      %v1304 = vpop.permute.xlu0 %1303
      %1305 = vrot.lane.b32.xlu0 %v305, 113
      %v1306 = vpop.permute.xlu0 %1305
      %1307 = vrot.lane.b32.xlu0 %v300, 113
      %v1308 = vpop.permute.xlu0 %1307
      %1309 = vrot.lane.b32.xlu0 %v302, 113
      %v1310 = vpop.permute.xlu0 %1309
      %1311 = vrot.lane.b32.xlu0 %v304, 113
      %v1312 = vpop.permute.xlu0 %1311
      %1313 = vrot.lane.b32.xlu0 %v306, 113
      %v1314 = vpop.permute.xlu0 %1313
      %vm1315 = vcmp.lt.s32.totalorder %v446, 113
      %v1316 = vsel %vm1315, %v1300, %v1308
      %v1317 = vsel %vm1315, %v1302, %v1310
      %v1318 = vsel %vm1315, %v1304, %v1312
      %v1319 = vsel %vm1315, %v1306, %v1314
      %v1320 = vsel %vm1315, %v1308, %v1300
      %v1321 = vsel %vm1315, %v1310, %v1302
      %v1322 = vsel %vm1315, %v1312, %v1304
      %v1323 = vsel %vm1315, %v1314, %v1306
      %v1324 = vlaneseq
      %v1325 = vshrl.u32 %v1324, 7
      %v1326 = vsub.s32 6, %v1325
      %v1327 = vrot.slane %v307, %v1326
      %v1328 = vlaneseq
      %v1329 = vshrl.u32 %v1328, 7
      %v1330 = vsub.s32 6, %v1329
      %v1331 = vrot.slane %v308, %v1330
      %v1332 = vmul.f32 %v1316, %v1327
      %v1333 = vmul.f32 %v1320, %v1331
      %v1334 = vmul.f32 %v1317, %v1327
      %v1335 = vmul.f32 %v1321, %v1331
      %v1336 = vmul.f32 %v1318, %v1327
      %v1337 = vmul.f32 %v1322, %v1331
      %v1338 = vmul.f32 %v1319, %v1327
      %v1339 = vmul.f32 %v1323, %v1331
      %s1340 = scalar_lea.vmem %s3, 192
      %v1341 = vld [vmem:[%s1340] sm:$0xff]
      %v1342 = vld [vmem:[%s1340 + $0x8] sm:$0xff]
      %v1343 = vld [vmem:[%s1340 + $0x10] sm:$0xff]
      %v1344 = vld [vmem:[%s1340 + $0x18] sm:$0xff]
      %v1346 = vsel %vm476, %v1341, 0
      %v1349 = vsel %vm476, %v1342, 0
      %v1352 = vsel %vm476, %v1343, 0
      %v1355 = vsel %vm476, %v1344, 0
      %1357 = vmatprep.subr.mxu0 %v1333
      %1358 = vmatpush1.msra.mxu0 %v1332
      %1359 = vmatprep.subr.mxu0 %v1335
      %1360 = vmatpush1.msra.mxu0 %v1334
      %1361 = vmatprep.subr.mxu0 %v1337
      %1362 = vmatpush1.msra.mxu0 %v1336
      %1363 = vmatprep.subr.mxu0 %v1339
      %1364 = vmatpush1.msra.mxu0 %v1338
      %1365 = vmatprep.subr.mxu0 0.0
      %1366 = vmatpush1.msra.mxu0 0.0
      %1367 = vmatprep.subr.mxu0 0.0
      %1368 = vmatpush1.msra.mxu0 0.0
      %1369 = vmatprep.subr.mxu0 0.0
      %1370 = vmatpush1.msra.mxu0 0.0
      %1371 = vmatprep.subr.mxu0 0.0
      %1372 = vmatpush1.msra.mxu0 0.0
      %1373 = vmatprep.subr.mxu0 0.0
      %1374 = vmatpush1.msra.mxu0 0.0
      %1375 = vmatprep.subr.mxu0 0.0
      %1376 = vmatpush1.msra.mxu0 0.0
      %1377 = vmatprep.subr.mxu0 0.0
      %1378 = vmatpush1.msra.mxu0 0.0
      %1379 = vmatprep.subr.mxu0 0.0
      %1380 = vmatpush1.msra.mxu0 0.0
      %1381 = vmatprep.subr.mxu0 0.0
      %1382 = vmatpush1.msra.mxu0 0.0
      %1383 = vmatprep.subr.mxu0 0.0
      %1384 = vmatpush1.msra.mxu0 0.0
      %1385 = vmatprep.subr.mxu0 0.0
      %1386 = vmatpush1.msra.mxu0 0.0
      %1387 = vmatprep.subr.mxu0 0.0
      %1388 = vmatpush1.msra.mxu0 0.0
      %1389 = vmatprep.subr.mxu0 0.0
      %1390 = vmatpush1.msra.mxu0 0.0
      %1391 = vmatprep.subr.mxu0 0.0
      %1392 = vmatpush1.msra.mxu0 0.0
      %1393 = vmatprep.subr.mxu0 0.0
      %1394 = vmatpush1.msra.mxu0 0.0
      %1395 = vmatprep.subr.mxu0 0.0
      %1396 = vmatpush1.msra.mxu0 0.0
      %1397 = vmatprep.subr.mxu0 0.0
      %1398 = vmatpush1.msra.mxu0 0.0
      %1399 = vmatprep.subr.mxu0 0.0
      %1400 = vmatpush1.msra.mxu0 0.0
      %1401 = vmatprep.subr.mxu0 0.0
      %1402 = vmatpush1.msra.mxu0 0.0
      %1403 = vmatprep.subr.mxu0 0.0
      %1404 = vmatpush1.msra.mxu0 0.0
      %1405 = vmatprep.subr.mxu0 0.0
      %1406 = vmatpush1.msra.mxu0 0.0
      %1407 = vmatprep.subr.mxu0 0.0
      %1408 = vmatpush1.msra.mxu0 0.0
      %1409 = vmatprep.subr.mxu0 0.0
      %1410 = vmatpush1.msra.mxu0 0.0
      %1411 = vmatprep.subr.mxu0 0.0
      %1412 = vmatpush1.msra.mxu0 0.0
      %1413 = vmatprep.subr.mxu0 0.0
      %1414 = vmatpush1.msra.mxu0 0.0
      %1415 = vmatprep.subr.mxu0 0.0
      %1416 = vmatpush1.msra.mxu0 0.0
      %1417 = vmatprep.subr.mxu0 0.0
      %1418 = vmatpush1.msra.mxu0 0.0
      %1419 = vmatprep.subr.mxu0 0.0
      %1420 = vmatpush1.msra.mxu0 0.0
      %1421 = vmatprep.mubr.f32.mxu0 0.0
      %1422 = vmatmul.mubr.f32.gmra.mrb[0].mxu0 %v1346
      %v1423 = vpop.f32.mrb[0].mxu0
      %v1424 = vadd.f32 0.0, %v1423
      %v1425 = vpop.f32.mrb[0].mxu0
      %v1426 = vadd.f32 0.0, %v1425
      %1427 = vmatprep.mubr.f32.mxu0 0.0
      %1428 = vmatmul.mubr.f32.gmra.mrb[0].mxu0 %v1349
      %v1429 = vpop.f32.mrb[0].mxu0
      %v1430 = vadd.f32 0.0, %v1429
      %v1431 = vpop.f32.mrb[0].mxu0
      %v1432 = vadd.f32 0.0, %v1431
      %1433 = vmatprep.mubr.f32.mxu0 0.0
      %1434 = vmatmul.mubr.f32.gmra.mrb[0].mxu0 %v1352
      %v1435 = vpop.f32.mrb[0].mxu0
      %v1436 = vadd.f32 0.0, %v1435
      %v1437 = vpop.f32.mrb[0].mxu0
      %v1438 = vadd.f32 0.0, %v1437
      %1439 = vmatprep.mubr.f32.mxu0 0.0
      %1440 = vmatmul.mubr.f32.gmra.mrb[0].mxu0 %v1355
      %v1441 = vpop.f32.mrb[0].mxu0
      %v1442 = vadd.f32 0.0, %v1441
      %v1443 = vpop.f32.mrb[0].mxu0
      %v1444 = vadd.f32 0.0, %v1443
      %1445 = vdwg.mxu0
      %v1446 = vadd.f32 %v1291, %v1424
      %v1447 = vadd.f32 %v1292, %v1426
      %v1448 = vadd.f32 %v1293, %v1430
      %v1449 = vadd.f32 %v1294, %v1432
      %v1450 = vadd.f32 %v1295, %v1436
      %v1451 = vadd.f32 %v1296, %v1438
      %v1452 = vadd.f32 %v1297, %v1442
      %v1453 = vadd.f32 %v1298, %v1444
      %1454 = vrot.lane.b32.xlu0 %v299, 112
      %v1455 = vpop.permute.xlu0 %1454
      %1456 = vrot.lane.b32.xlu0 %v301, 112
      %v1457 = vpop.permute.xlu0 %1456
      %1458 = vrot.lane.b32.xlu0 %v303, 112
      %v1459 = vpop.permute.xlu0 %1458
      %1460 = vrot.lane.b32.xlu0 %v305, 112
      %v1461 = vpop.permute.xlu0 %1460
      %1462 = vrot.lane.b32.xlu0 %v300, 112
      %v1463 = vpop.permute.xlu0 %1462
      %1464 = vrot.lane.b32.xlu0 %v302, 112
      %v1465 = vpop.permute.xlu0 %1464
      %1466 = vrot.lane.b32.xlu0 %v304, 112
      %v1467 = vpop.permute.xlu0 %1466
      %1468 = vrot.lane.b32.xlu0 %v306, 112
      %v1469 = vpop.permute.xlu0 %1468
      %vm1470 = vcmp.lt.s32.totalorder %v446, 112
      %v1471 = vsel %vm1470, %v1455, %v1463
      %v1472 = vsel %vm1470, %v1457, %v1465
      %v1473 = vsel %vm1470, %v1459, %v1467
      %v1474 = vsel %vm1470, %v1461, %v1469
      %v1475 = vsel %vm1470, %v1463, %v1455
      %v1476 = vsel %vm1470, %v1465, %v1457
      %v1477 = vsel %vm1470, %v1467, %v1459
      %v1478 = vsel %vm1470, %v1469, %v1461
      %v1479 = vlaneseq
      %v1480 = vshrl.u32 %v1479, 7
      %v1481 = vsub.s32 7, %v1480
      %v1482 = vrot.slane %v307, %v1481
      %v1483 = vlaneseq
      %v1484 = vshrl.u32 %v1483, 7
      %v1485 = vsub.s32 7, %v1484
      %v1486 = vrot.slane %v308, %v1485
      %v1487 = vmul.f32 %v1471, %v1482
      %v1488 = vmul.f32 %v1475, %v1486
      %v1489 = vmul.f32 %v1472, %v1482
      %v1490 = vmul.f32 %v1476, %v1486
      %v1491 = vmul.f32 %v1473, %v1482
      %v1492 = vmul.f32 %v1477, %v1486
      %v1493 = vmul.f32 %v1474, %v1482
      %v1494 = vmul.f32 %v1478, %v1486
      %s1495 = scalar_lea.vmem %s3, 224
      %v1496 = vld [vmem:[%s1495] sm:$0xff]
      %v1497 = vld [vmem:[%s1495 + $0x8] sm:$0xff]
      %v1498 = vld [vmem:[%s1495 + $0x10] sm:$0xff]
      %v1499 = vld [vmem:[%s1495 + $0x18] sm:$0xff]
      %v1501 = vsel %vm476, %v1496, 0
      %v1504 = vsel %vm476, %v1497, 0
      %v1507 = vsel %vm476, %v1498, 0
      %v1510 = vsel %vm476, %v1499, 0
      %1512 = vmatprep.subr.mxu0 %v1488
      %1513 = vmatpush1.msra.mxu0 %v1487
      %1514 = vmatprep.subr.mxu0 %v1490
      %1515 = vmatpush1.msra.mxu0 %v1489
      %1516 = vmatprep.subr.mxu0 %v1492
      %1517 = vmatpush1.msra.mxu0 %v1491
      %1518 = vmatprep.subr.mxu0 %v1494
      %1519 = vmatpush1.msra.mxu0 %v1493
      %1520 = vmatprep.subr.mxu0 0.0
      %1521 = vmatpush1.msra.mxu0 0.0
      %1522 = vmatprep.subr.mxu0 0.0
      %1523 = vmatpush1.msra.mxu0 0.0
      %1524 = vmatprep.subr.mxu0 0.0
      %1525 = vmatpush1.msra.mxu0 0.0
      %1526 = vmatprep.subr.mxu0 0.0
      %1527 = vmatpush1.msra.mxu0 0.0
      %1528 = vmatprep.subr.mxu0 0.0
      %1529 = vmatpush1.msra.mxu0 0.0
      %1530 = vmatprep.subr.mxu0 0.0
      %1531 = vmatpush1.msra.mxu0 0.0
      %1532 = vmatprep.subr.mxu0 0.0
      %1533 = vmatpush1.msra.mxu0 0.0
      %1534 = vmatprep.subr.mxu0 0.0
      %1535 = vmatpush1.msra.mxu0 0.0
      %1536 = vmatprep.subr.mxu0 0.0
      %1537 = vmatpush1.msra.mxu0 0.0
      %1538 = vmatprep.subr.mxu0 0.0
      %1539 = vmatpush1.msra.mxu0 0.0
      %1540 = vmatprep.subr.mxu0 0.0
      %1541 = vmatpush1.msra.mxu0 0.0
      %1542 = vmatprep.subr.mxu0 0.0
      %1543 = vmatpush1.msra.mxu0 0.0
      %1544 = vmatprep.subr.mxu0 0.0
      %1545 = vmatpush1.msra.mxu0 0.0
      %1546 = vmatprep.subr.mxu0 0.0
      %1547 = vmatpush1.msra.mxu0 0.0
      %1548 = vmatprep.subr.mxu0 0.0
      %1549 = vmatpush1.msra.mxu0 0.0
      %1550 = vmatprep.subr.mxu0 0.0
      %1551 = vmatpush1.msra.mxu0 0.0
      %1552 = vmatprep.subr.mxu0 0.0
      %1553 = vmatpush1.msra.mxu0 0.0
      %1554 = vmatprep.subr.mxu0 0.0
      %1555 = vmatpush1.msra.mxu0 0.0
      %1556 = vmatprep.subr.mxu0 0.0
      %1557 = vmatpush1.msra.mxu0 0.0
      %1558 = vmatprep.subr.mxu0 0.0
      %1559 = vmatpush1.msra.mxu0 0.0
      %1560 = vmatprep.subr.mxu0 0.0
      %1561 = vmatpush1.msra.mxu0 0.0
      %1562 = vmatprep.subr.mxu0 0.0
      %1563 = vmatpush1.msra.mxu0 0.0
      %1564 = vmatprep.subr.mxu0 0.0
      %1565 = vmatpush1.msra.mxu0 0.0
      %1566 = vmatprep.subr.mxu0 0.0
      %1567 = vmatpush1.msra.mxu0 0.0
      %1568 = vmatprep.subr.mxu0 0.0
      %1569 = vmatpush1.msra.mxu0 0.0
      %1570 = vmatprep.subr.mxu0 0.0
      %1571 = vmatpush1.msra.mxu0 0.0
      %1572 = vmatprep.subr.mxu0 0.0
      %1573 = vmatpush1.msra.mxu0 0.0
      %1574 = vmatprep.subr.mxu0 0.0
      %1575 = vmatpush1.msra.mxu0 0.0
      %1576 = vmatprep.mubr.f32.mxu0 0.0
      %1577 = vmatmul.mubr.f32.gmra.mrb[0].mxu0 %v1501
      %v1578 = vpop.f32.mrb[0].mxu0
      %v1579 = vadd.f32 0.0, %v1578
      %v1580 = vpop.f32.mrb[0].mxu0
      %v1581 = vadd.f32 0.0, %v1580
      %1582 = vmatprep.mubr.f32.mxu0 0.0
      %1583 = vmatmul.mubr.f32.gmra.mrb[0].mxu0 %v1504
      %v1584 = vpop.f32.mrb[0].mxu0
      %v1585 = vadd.f32 0.0, %v1584
      %v1586 = vpop.f32.mrb[0].mxu0
      %v1587 = vadd.f32 0.0, %v1586
      %1588 = vmatprep.mubr.f32.mxu0 0.0
      %1589 = vmatmul.mubr.f32.gmra.mrb[0].mxu0 %v1507
      %v1590 = vpop.f32.mrb[0].mxu0
      %v1591 = vadd.f32 0.0, %v1590
      %v1592 = vpop.f32.mrb[0].mxu0
      %v1593 = vadd.f32 0.0, %v1592
      %1594 = vmatprep.mubr.f32.mxu0 0.0
      %1595 = vmatmul.mubr.f32.gmra.mrb[0].mxu0 %v1510
      %v1596 = vpop.f32.mrb[0].mxu0
      %v1597 = vadd.f32 0.0, %v1596
      %v1598 = vpop.f32.mrb[0].mxu0
      %v1599 = vadd.f32 0.0, %v1598
      %1600 = vdwg.mxu0
      %v1601 = vadd.f32 %v1446, %v1579
      %v1602 = vadd.f32 %v1447, %v1581
      %v1603 = vadd.f32 %v1448, %v1585
      %v1604 = vadd.f32 %v1449, %v1587
      %v1605 = vadd.f32 %v1450, %v1591
      %v1606 = vadd.f32 %v1451, %v1593
      %v1607 = vadd.f32 %v1452, %v1597
      %v1608 = vadd.f32 %v1453, %v1599
      %1609 = vrot.lane.b32.xlu0 %v299, 111
      %v1610 = vpop.permute.xlu0 %1609
      %1611 = vrot.lane.b32.xlu0 %v301, 111
      %v1612 = vpop.permute.xlu0 %1611
      %1613 = vrot.lane.b32.xlu0 %v303, 111
      %v1614 = vpop.permute.xlu0 %1613
      %1615 = vrot.lane.b32.xlu0 %v305, 111
      %v1616 = vpop.permute.xlu0 %1615
      %1617 = vrot.lane.b32.xlu0 %v300, 111
      %v1618 = vpop.permute.xlu0 %1617
      %1619 = vrot.lane.b32.xlu0 %v302, 111
      %v1620 = vpop.permute.xlu0 %1619
      %1621 = vrot.lane.b32.xlu0 %v304, 111
      %v1622 = vpop.permute.xlu0 %1621
      %1623 = vrot.lane.b32.xlu0 %v306, 111
      %v1624 = vpop.permute.xlu0 %1623
      %vm1625 = vcmp.lt.s32.totalorder %v446, 111
      %v1626 = vsel %vm1625, %v1610, %v1618
      %v1627 = vsel %vm1625, %v1612, %v1620
      %v1628 = vsel %vm1625, %v1614, %v1622
      %v1629 = vsel %vm1625, %v1616, %v1624
      %v1630 = vsel %vm1625, %v1618, %v1610
      %v1631 = vsel %vm1625, %v1620, %v1612
      %v1632 = vsel %vm1625, %v1622, %v1614
      %v1633 = vsel %vm1625, %v1624, %v1616
      %v1634 = vlaneseq
      %v1635 = vshrl.u32 %v1634, 7
      %v1636 = vsub.s32 0, %v1635
      %v1637 = vrot.slane %v309, %v1636
      %v1638 = vlaneseq
      %v1639 = vshrl.u32 %v1638, 7
      %v1640 = vsub.s32 0, %v1639
      %v1641 = vrot.slane %v310, %v1640
      %v1642 = vmul.f32 %v1626, %v1637
      %v1643 = vmul.f32 %v1630, %v1641
      %v1644 = vmul.f32 %v1627, %v1637
      %v1645 = vmul.f32 %v1631, %v1641
      %v1646 = vmul.f32 %v1628, %v1637
      %v1647 = vmul.f32 %v1632, %v1641
      %v1648 = vmul.f32 %v1629, %v1637
      %v1649 = vmul.f32 %v1633, %v1641
      %s1650 = scalar_lea.vmem %s3, 256
      %v1651 = vld [vmem:[%s1650] sm:$0xff]
      %v1652 = vld [vmem:[%s1650 + $0x8] sm:$0xff]
      %v1653 = vld [vmem:[%s1650 + $0x10] sm:$0xff]
      %v1654 = vld [vmem:[%s1650 + $0x18] sm:$0xff]
      %v1656 = vsel %vm476, %v1651, 0
      %v1659 = vsel %vm476, %v1652, 0
      %v1662 = vsel %vm476, %v1653, 0
      %v1665 = vsel %vm476, %v1654, 0
      %1667 = vmatprep.subr.mxu0 %v1643
      %1668 = vmatpush1.msra.mxu0 %v1642
      %1669 = vmatprep.subr.mxu0 %v1645
      %1670 = vmatpush1.msra.mxu0 %v1644
      %1671 = vmatprep.subr.mxu0 %v1647
      %1672 = vmatpush1.msra.mxu0 %v1646
      %1673 = vmatprep.subr.mxu0 %v1649
      %1674 = vmatpush1.msra.mxu0 %v1648
      %1675 = vmatprep.subr.mxu0 0.0
      %1676 = vmatpush1.msra.mxu0 0.0
      %1677 = vmatprep.subr.mxu0 0.0
      %1678 = vmatpush1.msra.mxu0 0.0
      %1679 = vmatprep.subr.mxu0 0.0
      %1680 = vmatpush1.msra.mxu0 0.0
      %1681 = vmatprep.subr.mxu0 0.0
      %1682 = vmatpush1.msra.mxu0 0.0
      %1683 = vmatprep.subr.mxu0 0.0
      %1684 = vmatpush1.msra.mxu0 0.0
      %1685 = vmatprep.subr.mxu0 0.0
      %1686 = vmatpush1.msra.mxu0 0.0
      %1687 = vmatprep.subr.mxu0 0.0
      %1688 = vmatpush1.msra.mxu0 0.0
      %1689 = vmatprep.subr.mxu0 0.0
      %1690 = vmatpush1.msra.mxu0 0.0
      %1691 = vmatprep.subr.mxu0 0.0
      %1692 = vmatpush1.msra.mxu0 0.0
      %1693 = vmatprep.subr.mxu0 0.0
      %1694 = vmatpush1.msra.mxu0 0.0
      %1695 = vmatprep.subr.mxu0 0.0
      %1696 = vmatpush1.msra.mxu0 0.0
      %1697 = vmatprep.subr.mxu0 0.0
      %1698 = vmatpush1.msra.mxu0 0.0
      %1699 = vmatprep.subr.mxu0 0.0
      %1700 = vmatpush1.msra.mxu0 0.0
      %1701 = vmatprep.subr.mxu0 0.0
      %1702 = vmatpush1.msra.mxu0 0.0
      %1703 = vmatprep.subr.mxu0 0.0
      %1704 = vmatpush1.msra.mxu0 0.0
      %1705 = vmatprep.subr.mxu0 0.0
      %1706 = vmatpush1.msra.mxu0 0.0
      %1707 = vmatprep.subr.mxu0 0.0
      %1708 = vmatpush1.msra.mxu0 0.0
      %1709 = vmatprep.subr.mxu0 0.0
      %1710 = vmatpush1.msra.mxu0 0.0
      %1711 = vmatprep.subr.mxu0 0.0
      %1712 = vmatpush1.msra.mxu0 0.0
      %1713 = vmatprep.subr.mxu0 0.0
      %1714 = vmatpush1.msra.mxu0 0.0
      %1715 = vmatprep.subr.mxu0 0.0
      %1716 = vmatpush1.msra.mxu0 0.0
      %1717 = vmatprep.subr.mxu0 0.0
      %1718 = vmatpush1.msra.mxu0 0.0
      %1719 = vmatprep.subr.mxu0 0.0
      %1720 = vmatpush1.msra.mxu0 0.0
      %1721 = vmatprep.subr.mxu0 0.0
      %1722 = vmatpush1.msra.mxu0 0.0
      %1723 = vmatprep.subr.mxu0 0.0
      %1724 = vmatpush1.msra.mxu0 0.0
      %1725 = vmatprep.subr.mxu0 0.0
      %1726 = vmatpush1.msra.mxu0 0.0
      %1727 = vmatprep.subr.mxu0 0.0
      %1728 = vmatpush1.msra.mxu0 0.0
      %1729 = vmatprep.subr.mxu0 0.0
      %1730 = vmatpush1.msra.mxu0 0.0
      %1731 = vmatprep.mubr.f32.mxu0 0.0
      %1732 = vmatmul.mubr.f32.gmra.mrb[0].mxu0 %v1656
      %v1733 = vpop.f32.mrb[0].mxu0
      %v1734 = vadd.f32 0.0, %v1733
      %v1735 = vpop.f32.mrb[0].mxu0
      %v1736 = vadd.f32 0.0, %v1735
      %1737 = vmatprep.mubr.f32.mxu0 0.0
      %1738 = vmatmul.mubr.f32.gmra.mrb[0].mxu0 %v1659
      %v1739 = vpop.f32.mrb[0].mxu0
      %v1740 = vadd.f32 0.0, %v1739
      %v1741 = vpop.f32.mrb[0].mxu0
      %v1742 = vadd.f32 0.0, %v1741
      %1743 = vmatprep.mubr.f32.mxu0 0.0
      %1744 = vmatmul.mubr.f32.gmra.mrb[0].mxu0 %v1662
      %v1745 = vpop.f32.mrb[0].mxu0
      %v1746 = vadd.f32 0.0, %v1745
      %v1747 = vpop.f32.mrb[0].mxu0
      %v1748 = vadd.f32 0.0, %v1747
      %1749 = vmatprep.mubr.f32.mxu0 0.0
      %1750 = vmatmul.mubr.f32.gmra.mrb[0].mxu0 %v1665
      %v1751 = vpop.f32.mrb[0].mxu0
      %v1752 = vadd.f32 0.0, %v1751
      %v1753 = vpop.f32.mrb[0].mxu0
      %v1754 = vadd.f32 0.0, %v1753
      %1755 = vdwg.mxu0
      %v1756 = vadd.f32 %v1601, %v1734
      %v1757 = vadd.f32 %v1602, %v1736
      %v1758 = vadd.f32 %v1603, %v1740
      %v1759 = vadd.f32 %v1604, %v1742
      %v1760 = vadd.f32 %v1605, %v1746
      %v1761 = vadd.f32 %v1606, %v1748
      %v1762 = vadd.f32 %v1607, %v1752
      %v1763 = vadd.f32 %v1608, %v1754
      %v1764 = vadd.f32 %v1756, %v402
      %v1765 = vadd.f32 %v1757, %v404
      %v1766 = vadd.f32 %v1758, %v408
      %v1767 = vadd.f32 %v1759, %v410
      %v1768 = vadd.f32 %v1760, %v414
      %v1769 = vadd.f32 %v1761, %v416
      %v1770 = vadd.f32 %v1762, %v420
      %v1771 = vadd.f32 %v1763, %v422
      %v1772 = vld [vmem:[%s4] sm:$0xff]
      %v1773 = vld [vmem:[%s4 + $0x8] sm:$0xff]
      %v1774 = vld [vmem:[%s4 + $0x10] sm:$0xff]
      %v1775 = vld [vmem:[%s4 + $0x18] sm:$0xff]
      %1777 = vset.pattern.permute.xlu0 0
      %1778 = vperm.xlu0 %1777, %v1772
      %v1779 = vpop.permute.xlu0 %1778
      %1782 = vset.pattern.permute.xlu0 0
      %1783 = vperm.xlu0 %1782, %v1773
      %v1784 = vpop.permute.xlu0 %1783
      %1787 = vset.pattern.permute.xlu0 0
      %1788 = vperm.xlu0 %1787, %v1774
      %v1789 = vpop.permute.xlu0 %1788
      %1792 = vset.pattern.permute.xlu0 0
      %1793 = vperm.xlu0 %1792, %v1775
      %v1794 = vpop.permute.xlu0 %1793
      %v1796 = vadd.f32 %v1764, %v1779
      %v1797 = vadd.f32 %v1765, %v1779
      %v1798 = vadd.f32 %v1766, %v1784
      %v1799 = vadd.f32 %v1767, %v1784
      %v1800 = vadd.f32 %v1768, %v1789
      %v1801 = vadd.f32 %v1769, %v1789
      %v1802 = vadd.f32 %v1770, %v1794
      %v1803 = vadd.f32 %v1771, %v1794
      %v1804 = vmax.f32 %v1796, 0.0
      %v1805 = vmax.f32 %v1797, 0.0
      %v1806 = vmax.f32 %v1798, 0.0
      %v1807 = vmax.f32 %v1799, 0.0
      %v1808 = vmax.f32 %v1800, 0.0
      %v1809 = vmax.f32 %v1801, 0.0
      %v1810 = vmax.f32 %v1802, 0.0
      %v1811 = vmax.f32 %v1803, 0.0
      %s1812 = scalar_lea.vmem %s5, 128
      %v1813 = vld [vmem:[%s1812] sm:$0xff]
      %v1814 = vld [vmem:[%s1812 + $0x8] sm:$0xff]
      %v1815 = vld [vmem:[%s1812 + $0x10] sm:$0xff]
      %v1816 = vld [vmem:[%s1812 + $0x18] sm:$0xff]
      %1817 = vrot.lane.b32.xlu0 %v1804, 17
      %v1818 = vpop.permute.xlu0 %1817
      %1819 = vrot.lane.b32.xlu0 %v1806, 17
      %v1820 = vpop.permute.xlu0 %1819
      %1821 = vrot.lane.b32.xlu0 %v1808, 17
      %v1822 = vpop.permute.xlu0 %1821
      %1823 = vrot.lane.b32.xlu0 %v1810, 17
      %v1824 = vpop.permute.xlu0 %1823
      %1825 = vrot.lane.b32.xlu0 %v1805, 17
      %v1826 = vpop.permute.xlu0 %1825
      %1827 = vrot.lane.b32.xlu0 %v1807, 17
      %v1828 = vpop.permute.xlu0 %1827
      %1829 = vrot.lane.b32.xlu0 %v1809, 17
      %v1830 = vpop.permute.xlu0 %1829
      %1831 = vrot.lane.b32.xlu0 %v1811, 17
      %v1832 = vpop.permute.xlu0 %1831
      %v1833 = vsel %vm447, %v1818, %v1826
      %v1834 = vsel %vm447, %v1820, %v1828
      %v1835 = vsel %vm447, %v1822, %v1830
      %v1836 = vsel %vm447, %v1824, %v1832
      %v1837 = vsel %vm447, %v1826, %v1818
      %v1838 = vsel %vm447, %v1828, %v1820
      %v1839 = vsel %vm447, %v1830, %v1822
      %v1840 = vsel %vm447, %v1832, %v1824
      %v1841 = vmul.f32 %v1837, %v459
      %v1842 = vmul.f32 %v1833, %v463
      %v1843 = vmul.f32 %v1838, %v459
      %v1844 = vmul.f32 %v1834, %v463
      %v1845 = vmul.f32 %v1839, %v459
      %v1846 = vmul.f32 %v1835, %v463
      %v1847 = vmul.f32 %v1840, %v459
      %v1848 = vmul.f32 %v1836, %v463
      %v1849 = vld [vmem:[%s5] sm:$0xff]
      %v1850 = vld [vmem:[%s5 + $0x8] sm:$0xff]
      %v1851 = vld [vmem:[%s5 + $0x10] sm:$0xff]
      %v1852 = vld [vmem:[%s5 + $0x18] sm:$0xff]
      %v1854 = vsel %vm476, %v1849, 0
      %v1857 = vsel %vm476, %v1850, 0
      %v1860 = vsel %vm476, %v1851, 0
      %v1863 = vsel %vm476, %v1852, 0
      %1865 = vmatprep.subr.mxu0 %v1842
      %1866 = vmatpush1.msra.mxu0 %v1841
      %1867 = vmatprep.subr.mxu0 %v1844
      %1868 = vmatpush1.msra.mxu0 %v1843
      %1869 = vmatprep.subr.mxu0 %v1846
      %1870 = vmatpush1.msra.mxu0 %v1845
      %1871 = vmatprep.subr.mxu0 %v1848
      %1872 = vmatpush1.msra.mxu0 %v1847
      %1873 = vmatprep.subr.mxu0 0.0
      %1874 = vmatpush1.msra.mxu0 0.0
      %1875 = vmatprep.subr.mxu0 0.0
      %1876 = vmatpush1.msra.mxu0 0.0
      %1877 = vmatprep.subr.mxu0 0.0
      %1878 = vmatpush1.msra.mxu0 0.0
      %1879 = vmatprep.subr.mxu0 0.0
      %1880 = vmatpush1.msra.mxu0 0.0
      %1881 = vmatprep.subr.mxu0 0.0
      %1882 = vmatpush1.msra.mxu0 0.0
      %1883 = vmatprep.subr.mxu0 0.0
      %1884 = vmatpush1.msra.mxu0 0.0
      %1885 = vmatprep.subr.mxu0 0.0
      %1886 = vmatpush1.msra.mxu0 0.0
      %1887 = vmatprep.subr.mxu0 0.0
      %1888 = vmatpush1.msra.mxu0 0.0
      %1889 = vmatprep.subr.mxu0 0.0
      %1890 = vmatpush1.msra.mxu0 0.0
      %1891 = vmatprep.subr.mxu0 0.0
      %1892 = vmatpush1.msra.mxu0 0.0
      %1893 = vmatprep.subr.mxu0 0.0
      %1894 = vmatpush1.msra.mxu0 0.0
      %1895 = vmatprep.subr.mxu0 0.0
      %1896 = vmatpush1.msra.mxu0 0.0
      %1897 = vmatprep.subr.mxu0 0.0
      %1898 = vmatpush1.msra.mxu0 0.0
      %1899 = vmatprep.subr.mxu0 0.0
      %1900 = vmatpush1.msra.mxu0 0.0
      %1901 = vmatprep.subr.mxu0 0.0
      %1902 = vmatpush1.msra.mxu0 0.0
      %1903 = vmatprep.subr.mxu0 0.0
      %1904 = vmatpush1.msra.mxu0 0.0
      %1905 = vmatprep.subr.mxu0 0.0
      %1906 = vmatpush1.msra.mxu0 0.0
      %1907 = vmatprep.subr.mxu0 0.0
      %1908 = vmatpush1.msra.mxu0 0.0
      %1909 = vmatprep.subr.mxu0 0.0
      %1910 = vmatpush1.msra.mxu0 0.0
      %1911 = vmatprep.subr.mxu0 0.0
      %1912 = vmatpush1.msra.mxu0 0.0
      %1913 = vmatprep.subr.mxu0 0.0
      %1914 = vmatpush1.msra.mxu0 0.0
      %1915 = vmatprep.subr.mxu0 0.0
      %1916 = vmatpush1.msra.mxu0 0.0
      %1917 = vmatprep.subr.mxu0 0.0
      %1918 = vmatpush1.msra.mxu0 0.0
      %1919 = vmatprep.subr.mxu0 0.0
      %1920 = vmatpush1.msra.mxu0 0.0
      %1921 = vmatprep.subr.mxu0 0.0
      %1922 = vmatpush1.msra.mxu0 0.0
      %1923 = vmatprep.subr.mxu0 0.0
      %1924 = vmatpush1.msra.mxu0 0.0
      %1925 = vmatprep.subr.mxu0 0.0
      %1926 = vmatpush1.msra.mxu0 0.0
      %1927 = vmatprep.subr.mxu0 0.0
      %1928 = vmatpush1.msra.mxu0 0.0
      %1929 = vmatprep.mubr.f32.mxu0 0.0
      %1930 = vmatmul.mubr.f32.gmra.mrb[0].mxu0 %v1854
      %v1931 = vpop.f32.mrb[0].mxu0
      %v1932 = vadd.f32 0.0, %v1931
      %v1933 = vpop.f32.mrb[0].mxu0
      %v1934 = vadd.f32 0.0, %v1933
      %1935 = vmatprep.mubr.f32.mxu0 0.0
      %1936 = vmatmul.mubr.f32.gmra.mrb[0].mxu0 %v1857
      %v1937 = vpop.f32.mrb[0].mxu0
      %v1938 = vadd.f32 0.0, %v1937
      %v1939 = vpop.f32.mrb[0].mxu0
      %v1940 = vadd.f32 0.0, %v1939
      %1941 = vmatprep.mubr.f32.mxu0 0.0
      %1942 = vmatmul.mubr.f32.gmra.mrb[0].mxu0 %v1860
      %v1943 = vpop.f32.mrb[0].mxu0
      %v1944 = vadd.f32 0.0, %v1943
      %v1945 = vpop.f32.mrb[0].mxu0
      %v1946 = vadd.f32 0.0, %v1945
      %1947 = vmatprep.mubr.f32.mxu0 0.0
      %1948 = vmatmul.mubr.f32.gmra.mrb[0].mxu0 %v1863
      %v1949 = vpop.f32.mrb[0].mxu0
      %v1950 = vadd.f32 0.0, %v1949
      %v1951 = vpop.f32.mrb[0].mxu0
      %v1952 = vadd.f32 0.0, %v1951
      %1953 = vdwg.mxu0
      %v1955 = vsel %vm476, %v1813, 0
      %v1958 = vsel %vm476, %v1814, 0
      %v1961 = vsel %vm476, %v1815, 0
      %v1964 = vsel %vm476, %v1816, 0
      %1966 = vmatprep.subr.mxu0 %v1805
      %1967 = vmatpush1.msra.mxu0 %v1804
      %1968 = vmatprep.subr.mxu0 %v1807
      %1969 = vmatpush1.msra.mxu0 %v1806
      %1970 = vmatprep.subr.mxu0 %v1809
      %1971 = vmatpush1.msra.mxu0 %v1808
      %1972 = vmatprep.subr.mxu0 %v1811
      %1973 = vmatpush1.msra.mxu0 %v1810
      %1974 = vmatprep.subr.mxu0 0.0
      %1975 = vmatpush1.msra.mxu0 0.0
      %1976 = vmatprep.subr.mxu0 0.0
      %1977 = vmatpush1.msra.mxu0 0.0
      %1978 = vmatprep.subr.mxu0 0.0
      %1979 = vmatpush1.msra.mxu0 0.0
      %1980 = vmatprep.subr.mxu0 0.0
      %1981 = vmatpush1.msra.mxu0 0.0
      %1982 = vmatprep.subr.mxu0 0.0
      %1983 = vmatpush1.msra.mxu0 0.0
      %1984 = vmatprep.subr.mxu0 0.0
      %1985 = vmatpush1.msra.mxu0 0.0
      %1986 = vmatprep.subr.mxu0 0.0
      %1987 = vmatpush1.msra.mxu0 0.0
      %1988 = vmatprep.subr.mxu0 0.0
      %1989 = vmatpush1.msra.mxu0 0.0
      %1990 = vmatprep.subr.mxu0 0.0
      %1991 = vmatpush1.msra.mxu0 0.0
      %1992 = vmatprep.subr.mxu0 0.0
      %1993 = vmatpush1.msra.mxu0 0.0
      %1994 = vmatprep.subr.mxu0 0.0
      %1995 = vmatpush1.msra.mxu0 0.0
      %1996 = vmatprep.subr.mxu0 0.0
      %1997 = vmatpush1.msra.mxu0 0.0
      %1998 = vmatprep.subr.mxu0 0.0
      %1999 = vmatpush1.msra.mxu0 0.0
      %2000 = vmatprep.subr.mxu0 0.0
      %2001 = vmatpush1.msra.mxu0 0.0
      %2002 = vmatprep.subr.mxu0 0.0
      %2003 = vmatpush1.msra.mxu0 0.0
      %2004 = vmatprep.subr.mxu0 0.0
      %2005 = vmatpush1.msra.mxu0 0.0
      %2006 = vmatprep.subr.mxu0 0.0
      %2007 = vmatpush1.msra.mxu0 0.0
      %2008 = vmatprep.subr.mxu0 0.0
      %2009 = vmatpush1.msra.mxu0 0.0
      %2010 = vmatprep.subr.mxu0 0.0
      %2011 = vmatpush1.msra.mxu0 0.0
      %2012 = vmatprep.subr.mxu0 0.0
      %2013 = vmatpush1.msra.mxu0 0.0
      %2014 = vmatprep.subr.mxu0 0.0
      %2015 = vmatpush1.msra.mxu0 0.0
      %2016 = vmatprep.subr.mxu0 0.0
      %2017 = vmatpush1.msra.mxu0 0.0
      %2018 = vmatprep.subr.mxu0 0.0
      %2019 = vmatpush1.msra.mxu0 0.0
      %2020 = vmatprep.subr.mxu0 0.0
      %2021 = vmatpush1.msra.mxu0 0.0
      %2022 = vmatprep.subr.mxu0 0.0
      %2023 = vmatpush1.msra.mxu0 0.0
      %2024 = vmatprep.subr.mxu0 0.0
      %2025 = vmatpush1.msra.mxu0 0.0
      %2026 = vmatprep.subr.mxu0 0.0
      %2027 = vmatpush1.msra.mxu0 0.0
      %2028 = vmatprep.subr.mxu0 0.0
      %2029 = vmatpush1.msra.mxu0 0.0
      %2030 = vmatprep.mubr.f32.mxu0 0.0
      %2031 = vmatmul.mubr.f32.gmra.mrb[0].mxu0 %v1955
      %v2032 = vpop.f32.mrb[0].mxu0
      %v2033 = vadd.f32 %v1932, %v2032
      %v2034 = vpop.f32.mrb[0].mxu0
      %v2035 = vadd.f32 %v1934, %v2034
      %2036 = vmatprep.mubr.f32.mxu0 0.0
      %2037 = vmatmul.mubr.f32.gmra.mrb[0].mxu0 %v1958
      %v2038 = vpop.f32.mrb[0].mxu0
      %v2039 = vadd.f32 %v1938, %v2038
      %v2040 = vpop.f32.mrb[0].mxu0
      %v2041 = vadd.f32 %v1940, %v2040
      %2042 = vmatprep.mubr.f32.mxu0 0.0
      %2043 = vmatmul.mubr.f32.gmra.mrb[0].mxu0 %v1961
      %v2044 = vpop.f32.mrb[0].mxu0
      %v2045 = vadd.f32 %v1944, %v2044
      %v2046 = vpop.f32.mrb[0].mxu0
      %v2047 = vadd.f32 %v1946, %v2046
      %2048 = vmatprep.mubr.f32.mxu0 0.0
      %2049 = vmatmul.mubr.f32.gmra.mrb[0].mxu0 %v1964
      %v2050 = vpop.f32.mrb[0].mxu0
      %v2051 = vadd.f32 %v1950, %v2050
      %v2052 = vpop.f32.mrb[0].mxu0
      %v2053 = vadd.f32 %v1952, %v2052
      %2054 = vdwg.mxu0
      %2055 = vrot.lane.b32.xlu0 %v1804, 16
      %v2056 = vpop.permute.xlu0 %2055
      %2057 = vrot.lane.b32.xlu0 %v1806, 16
      %v2058 = vpop.permute.xlu0 %2057
      %2059 = vrot.lane.b32.xlu0 %v1808, 16
      %v2060 = vpop.permute.xlu0 %2059
      %2061 = vrot.lane.b32.xlu0 %v1810, 16
      %v2062 = vpop.permute.xlu0 %2061
      %2063 = vrot.lane.b32.xlu0 %v1805, 16
      %v2064 = vpop.permute.xlu0 %2063
      %2065 = vrot.lane.b32.xlu0 %v1807, 16
      %v2066 = vpop.permute.xlu0 %2065
      %2067 = vrot.lane.b32.xlu0 %v1809, 16
      %v2068 = vpop.permute.xlu0 %2067
      %2069 = vrot.lane.b32.xlu0 %v1811, 16
      %v2070 = vpop.permute.xlu0 %2069
      %v2071 = vsel %vm695, %v2056, %v2064
      %v2072 = vsel %vm695, %v2058, %v2066
      %v2073 = vsel %vm695, %v2060, %v2068
      %v2074 = vsel %vm695, %v2062, %v2070
      %v2075 = vsel %vm695, %v2064, %v2056
      %v2076 = vsel %vm695, %v2066, %v2058
      %v2077 = vsel %vm695, %v2068, %v2060
      %v2078 = vsel %vm695, %v2070, %v2062
      %v2079 = vmul.f32 %v2075, %v707
      %v2080 = vmul.f32 %v2071, %v711
      %v2081 = vmul.f32 %v2076, %v707
      %v2082 = vmul.f32 %v2072, %v711
      %v2083 = vmul.f32 %v2077, %v707
      %v2084 = vmul.f32 %v2073, %v711
      %v2085 = vmul.f32 %v2078, %v707
      %v2086 = vmul.f32 %v2074, %v711
      %s2087 = scalar_lea.vmem %s5, 32
      %v2088 = vld [vmem:[%s2087] sm:$0xff]
      %v2089 = vld [vmem:[%s2087 + $0x8] sm:$0xff]
      %v2090 = vld [vmem:[%s2087 + $0x10] sm:$0xff]
      %v2091 = vld [vmem:[%s2087 + $0x18] sm:$0xff]
      %v2093 = vsel %vm476, %v2088, 0
      %v2096 = vsel %vm476, %v2089, 0
      %v2099 = vsel %vm476, %v2090, 0
      %v2102 = vsel %vm476, %v2091, 0
      %2104 = vmatprep.subr.mxu0 %v2080
      %2105 = vmatpush1.msra.mxu0 %v2079
      %2106 = vmatprep.subr.mxu0 %v2082
      %2107 = vmatpush1.msra.mxu0 %v2081
      %2108 = vmatprep.subr.mxu0 %v2084
      %2109 = vmatpush1.msra.mxu0 %v2083
      %2110 = vmatprep.subr.mxu0 %v2086
      %2111 = vmatpush1.msra.mxu0 %v2085
      %2112 = vmatprep.subr.mxu0 0.0
      %2113 = vmatpush1.msra.mxu0 0.0
      %2114 = vmatprep.subr.mxu0 0.0
      %2115 = vmatpush1.msra.mxu0 0.0
      %2116 = vmatprep.subr.mxu0 0.0
      %2117 = vmatpush1.msra.mxu0 0.0
      %2118 = vmatprep.subr.mxu0 0.0
      %2119 = vmatpush1.msra.mxu0 0.0
      %2120 = vmatprep.subr.mxu0 0.0
      %2121 = vmatpush1.msra.mxu0 0.0
      %2122 = vmatprep.subr.mxu0 0.0
      %2123 = vmatpush1.msra.mxu0 0.0
      %2124 = vmatprep.subr.mxu0 0.0
      %2125 = vmatpush1.msra.mxu0 0.0
      %2126 = vmatprep.subr.mxu0 0.0
      %2127 = vmatpush1.msra.mxu0 0.0
      %2128 = vmatprep.subr.mxu0 0.0
      %2129 = vmatpush1.msra.mxu0 0.0
      %2130 = vmatprep.subr.mxu0 0.0
      %2131 = vmatpush1.msra.mxu0 0.0
      %2132 = vmatprep.subr.mxu0 0.0
      %2133 = vmatpush1.msra.mxu0 0.0
      %2134 = vmatprep.subr.mxu0 0.0
      %2135 = vmatpush1.msra.mxu0 0.0
      %2136 = vmatprep.subr.mxu0 0.0
      %2137 = vmatpush1.msra.mxu0 0.0
      %2138 = vmatprep.subr.mxu0 0.0
      %2139 = vmatpush1.msra.mxu0 0.0
      %2140 = vmatprep.subr.mxu0 0.0
      %2141 = vmatpush1.msra.mxu0 0.0
      %2142 = vmatprep.subr.mxu0 0.0
      %2143 = vmatpush1.msra.mxu0 0.0
      %2144 = vmatprep.subr.mxu0 0.0
      %2145 = vmatpush1.msra.mxu0 0.0
      %2146 = vmatprep.subr.mxu0 0.0
      %2147 = vmatpush1.msra.mxu0 0.0
      %2148 = vmatprep.subr.mxu0 0.0
      %2149 = vmatpush1.msra.mxu0 0.0
      %2150 = vmatprep.subr.mxu0 0.0
      %2151 = vmatpush1.msra.mxu0 0.0
      %2152 = vmatprep.subr.mxu0 0.0
      %2153 = vmatpush1.msra.mxu0 0.0
      %2154 = vmatprep.subr.mxu0 0.0
      %2155 = vmatpush1.msra.mxu0 0.0
      %2156 = vmatprep.subr.mxu0 0.0
      %2157 = vmatpush1.msra.mxu0 0.0
      %2158 = vmatprep.subr.mxu0 0.0
      %2159 = vmatpush1.msra.mxu0 0.0
      %2160 = vmatprep.subr.mxu0 0.0
      %2161 = vmatpush1.msra.mxu0 0.0
      %2162 = vmatprep.subr.mxu0 0.0
      %2163 = vmatpush1.msra.mxu0 0.0
      %2164 = vmatprep.subr.mxu0 0.0
      %2165 = vmatpush1.msra.mxu0 0.0
      %2166 = vmatprep.subr.mxu0 0.0
      %2167 = vmatpush1.msra.mxu0 0.0
      %2168 = vmatprep.mubr.f32.mxu0 0.0
      %2169 = vmatmul.mubr.f32.gmra.mrb[0].mxu0 %v2093
      %v2170 = vpop.f32.mrb[0].mxu0
      %v2171 = vadd.f32 0.0, %v2170
      %v2172 = vpop.f32.mrb[0].mxu0
      %v2173 = vadd.f32 0.0, %v2172
      %2174 = vmatprep.mubr.f32.mxu0 0.0
      %2175 = vmatmul.mubr.f32.gmra.mrb[0].mxu0 %v2096
      %v2176 = vpop.f32.mrb[0].mxu0
      %v2177 = vadd.f32 0.0, %v2176
      %v2178 = vpop.f32.mrb[0].mxu0
      %v2179 = vadd.f32 0.0, %v2178
      %2180 = vmatprep.mubr.f32.mxu0 0.0
      %2181 = vmatmul.mubr.f32.gmra.mrb[0].mxu0 %v2099
      %v2182 = vpop.f32.mrb[0].mxu0
      %v2183 = vadd.f32 0.0, %v2182
      %v2184 = vpop.f32.mrb[0].mxu0
      %v2185 = vadd.f32 0.0, %v2184
      %2186 = vmatprep.mubr.f32.mxu0 0.0
      %2187 = vmatmul.mubr.f32.gmra.mrb[0].mxu0 %v2102
      %v2188 = vpop.f32.mrb[0].mxu0
      %v2189 = vadd.f32 0.0, %v2188
      %v2190 = vpop.f32.mrb[0].mxu0
      %v2191 = vadd.f32 0.0, %v2190
      %2192 = vdwg.mxu0
      %v2193 = vadd.f32 %v2033, %v2171
      %v2194 = vadd.f32 %v2035, %v2173
      %v2195 = vadd.f32 %v2039, %v2177
      %v2196 = vadd.f32 %v2041, %v2179
      %v2197 = vadd.f32 %v2045, %v2183
      %v2198 = vadd.f32 %v2047, %v2185
      %v2199 = vadd.f32 %v2051, %v2189
      %v2200 = vadd.f32 %v2053, %v2191
      %2201 = vrot.lane.b32.xlu0 %v1804, 15
      %v2202 = vpop.permute.xlu0 %2201
      %2203 = vrot.lane.b32.xlu0 %v1806, 15
      %v2204 = vpop.permute.xlu0 %2203
      %2205 = vrot.lane.b32.xlu0 %v1808, 15
      %v2206 = vpop.permute.xlu0 %2205
      %2207 = vrot.lane.b32.xlu0 %v1810, 15
      %v2208 = vpop.permute.xlu0 %2207
      %2209 = vrot.lane.b32.xlu0 %v1805, 15
      %v2210 = vpop.permute.xlu0 %2209
      %2211 = vrot.lane.b32.xlu0 %v1807, 15
      %v2212 = vpop.permute.xlu0 %2211
      %2213 = vrot.lane.b32.xlu0 %v1809, 15
      %v2214 = vpop.permute.xlu0 %2213
      %2215 = vrot.lane.b32.xlu0 %v1811, 15
      %v2216 = vpop.permute.xlu0 %2215
      %v2217 = vsel %vm850, %v2202, %v2210
      %v2218 = vsel %vm850, %v2204, %v2212
      %v2219 = vsel %vm850, %v2206, %v2214
      %v2220 = vsel %vm850, %v2208, %v2216
      %v2221 = vsel %vm850, %v2210, %v2202
      %v2222 = vsel %vm850, %v2212, %v2204
      %v2223 = vsel %vm850, %v2214, %v2206
      %v2224 = vsel %vm850, %v2216, %v2208
      %v2225 = vmul.f32 %v2221, %v862
      %v2226 = vmul.f32 %v2217, %v866
      %v2227 = vmul.f32 %v2222, %v862
      %v2228 = vmul.f32 %v2218, %v866
      %v2229 = vmul.f32 %v2223, %v862
      %v2230 = vmul.f32 %v2219, %v866
      %v2231 = vmul.f32 %v2224, %v862
      %v2232 = vmul.f32 %v2220, %v866
      %s2233 = scalar_lea.vmem %s5, 64
      %v2234 = vld [vmem:[%s2233] sm:$0xff]
      %v2235 = vld [vmem:[%s2233 + $0x8] sm:$0xff]
      %v2236 = vld [vmem:[%s2233 + $0x10] sm:$0xff]
      %v2237 = vld [vmem:[%s2233 + $0x18] sm:$0xff]
      %v2239 = vsel %vm476, %v2234, 0
      %v2242 = vsel %vm476, %v2235, 0
      %v2245 = vsel %vm476, %v2236, 0
      %v2248 = vsel %vm476, %v2237, 0
      %2250 = vmatprep.subr.mxu0 %v2226
      %2251 = vmatpush1.msra.mxu0 %v2225
      %2252 = vmatprep.subr.mxu0 %v2228
      %2253 = vmatpush1.msra.mxu0 %v2227
      %2254 = vmatprep.subr.mxu0 %v2230
      %2255 = vmatpush1.msra.mxu0 %v2229
      %2256 = vmatprep.subr.mxu0 %v2232
      %2257 = vmatpush1.msra.mxu0 %v2231
      %2258 = vmatprep.subr.mxu0 0.0
      %2259 = vmatpush1.msra.mxu0 0.0
      %2260 = vmatprep.subr.mxu0 0.0
      %2261 = vmatpush1.msra.mxu0 0.0
      %2262 = vmatprep.subr.mxu0 0.0
      %2263 = vmatpush1.msra.mxu0 0.0
      %2264 = vmatprep.subr.mxu0 0.0
      %2265 = vmatpush1.msra.mxu0 0.0
      %2266 = vmatprep.subr.mxu0 0.0
      %2267 = vmatpush1.msra.mxu0 0.0
      %2268 = vmatprep.subr.mxu0 0.0
      %2269 = vmatpush1.msra.mxu0 0.0
      %2270 = vmatprep.subr.mxu0 0.0
      %2271 = vmatpush1.msra.mxu0 0.0
      %2272 = vmatprep.subr.mxu0 0.0
      %2273 = vmatpush1.msra.mxu0 0.0
      %2274 = vmatprep.subr.mxu0 0.0
      %2275 = vmatpush1.msra.mxu0 0.0
      %2276 = vmatprep.subr.mxu0 0.0
      %2277 = vmatpush1.msra.mxu0 0.0
      %2278 = vmatprep.subr.mxu0 0.0
      %2279 = vmatpush1.msra.mxu0 0.0
      %2280 = vmatprep.subr.mxu0 0.0
      %2281 = vmatpush1.msra.mxu0 0.0
      %2282 = vmatprep.subr.mxu0 0.0
      %2283 = vmatpush1.msra.mxu0 0.0
      %2284 = vmatprep.subr.mxu0 0.0
      %2285 = vmatpush1.msra.mxu0 0.0
      %2286 = vmatprep.subr.mxu0 0.0
      %2287 = vmatpush1.msra.mxu0 0.0
      %2288 = vmatprep.subr.mxu0 0.0
      %2289 = vmatpush1.msra.mxu0 0.0
      %2290 = vmatprep.subr.mxu0 0.0
      %2291 = vmatpush1.msra.mxu0 0.0
      %2292 = vmatprep.subr.mxu0 0.0
      %2293 = vmatpush1.msra.mxu0 0.0
      %2294 = vmatprep.subr.mxu0 0.0
      %2295 = vmatpush1.msra.mxu0 0.0
      %2296 = vmatprep.subr.mxu0 0.0
      %2297 = vmatpush1.msra.mxu0 0.0
      %2298 = vmatprep.subr.mxu0 0.0
      %2299 = vmatpush1.msra.mxu0 0.0
      %2300 = vmatprep.subr.mxu0 0.0
      %2301 = vmatpush1.msra.mxu0 0.0
      %2302 = vmatprep.subr.mxu0 0.0
      %2303 = vmatpush1.msra.mxu0 0.0
      %2304 = vmatprep.subr.mxu0 0.0
      %2305 = vmatpush1.msra.mxu0 0.0
      %2306 = vmatprep.subr.mxu0 0.0
      %2307 = vmatpush1.msra.mxu0 0.0
      %2308 = vmatprep.subr.mxu0 0.0
      %2309 = vmatpush1.msra.mxu0 0.0
      %2310 = vmatprep.subr.mxu0 0.0
      %2311 = vmatpush1.msra.mxu0 0.0
      %2312 = vmatprep.subr.mxu0 0.0
      %2313 = vmatpush1.msra.mxu0 0.0
      %2314 = vmatprep.mubr.f32.mxu0 0.0
      %2315 = vmatmul.mubr.f32.gmra.mrb[0].mxu0 %v2239
      %v2316 = vpop.f32.mrb[0].mxu0
      %v2317 = vadd.f32 0.0, %v2316
      %v2318 = vpop.f32.mrb[0].mxu0
      %v2319 = vadd.f32 0.0, %v2318
      %2320 = vmatprep.mubr.f32.mxu0 0.0
      %2321 = vmatmul.mubr.f32.gmra.mrb[0].mxu0 %v2242
      %v2322 = vpop.f32.mrb[0].mxu0
      %v2323 = vadd.f32 0.0, %v2322
      %v2324 = vpop.f32.mrb[0].mxu0
      %v2325 = vadd.f32 0.0, %v2324
      %2326 = vmatprep.mubr.f32.mxu0 0.0
      %2327 = vmatmul.mubr.f32.gmra.mrb[0].mxu0 %v2245
      %v2328 = vpop.f32.mrb[0].mxu0
      %v2329 = vadd.f32 0.0, %v2328
      %v2330 = vpop.f32.mrb[0].mxu0
      %v2331 = vadd.f32 0.0, %v2330
      %2332 = vmatprep.mubr.f32.mxu0 0.0
      %2333 = vmatmul.mubr.f32.gmra.mrb[0].mxu0 %v2248
      %v2334 = vpop.f32.mrb[0].mxu0
      %v2335 = vadd.f32 0.0, %v2334
      %v2336 = vpop.f32.mrb[0].mxu0
      %v2337 = vadd.f32 0.0, %v2336
      %2338 = vdwg.mxu0
      %v2339 = vadd.f32 %v2193, %v2317
      %v2340 = vadd.f32 %v2194, %v2319
      %v2341 = vadd.f32 %v2195, %v2323
      %v2342 = vadd.f32 %v2196, %v2325
      %v2343 = vadd.f32 %v2197, %v2329
      %v2344 = vadd.f32 %v2198, %v2331
      %v2345 = vadd.f32 %v2199, %v2335
      %v2346 = vadd.f32 %v2200, %v2337
      %2347 = vrot.lane.b32.xlu0 %v1804, 1
      %v2348 = vpop.permute.xlu0 %2347
      %2349 = vrot.lane.b32.xlu0 %v1806, 1
      %v2350 = vpop.permute.xlu0 %2349
      %2351 = vrot.lane.b32.xlu0 %v1808, 1
      %v2352 = vpop.permute.xlu0 %2351
      %2353 = vrot.lane.b32.xlu0 %v1810, 1
      %v2354 = vpop.permute.xlu0 %2353
      %2355 = vrot.lane.b32.xlu0 %v1805, 1
      %v2356 = vpop.permute.xlu0 %2355
      %2357 = vrot.lane.b32.xlu0 %v1807, 1
      %v2358 = vpop.permute.xlu0 %2357
      %2359 = vrot.lane.b32.xlu0 %v1809, 1
      %v2360 = vpop.permute.xlu0 %2359
      %2361 = vrot.lane.b32.xlu0 %v1811, 1
      %v2362 = vpop.permute.xlu0 %2361
      %v2363 = vsel %vm1005, %v2348, %v2356
      %v2364 = vsel %vm1005, %v2350, %v2358
      %v2365 = vsel %vm1005, %v2352, %v2360
      %v2366 = vsel %vm1005, %v2354, %v2362
      %v2367 = vsel %vm1005, %v2356, %v2348
      %v2368 = vsel %vm1005, %v2358, %v2350
      %v2369 = vsel %vm1005, %v2360, %v2352
      %v2370 = vsel %vm1005, %v2362, %v2354
      %v2371 = vmul.f32 %v2367, %v1017
      %v2372 = vmul.f32 %v2363, %v1021
      %v2373 = vmul.f32 %v2368, %v1017
      %v2374 = vmul.f32 %v2364, %v1021
      %v2375 = vmul.f32 %v2369, %v1017
      %v2376 = vmul.f32 %v2365, %v1021
      %v2377 = vmul.f32 %v2370, %v1017
      %v2378 = vmul.f32 %v2366, %v1021
      %s2379 = scalar_lea.vmem %s5, 96
      %v2380 = vld [vmem:[%s2379] sm:$0xff]
      %v2381 = vld [vmem:[%s2379 + $0x8] sm:$0xff]
      %v2382 = vld [vmem:[%s2379 + $0x10] sm:$0xff]
      %v2383 = vld [vmem:[%s2379 + $0x18] sm:$0xff]
      %v2385 = vsel %vm476, %v2380, 0
      %v2388 = vsel %vm476, %v2381, 0
      %v2391 = vsel %vm476, %v2382, 0
      %v2394 = vsel %vm476, %v2383, 0
      %2396 = vmatprep.subr.mxu0 %v2372
      %2397 = vmatpush1.msra.mxu0 %v2371
      %2398 = vmatprep.subr.mxu0 %v2374
      %2399 = vmatpush1.msra.mxu0 %v2373
      %2400 = vmatprep.subr.mxu0 %v2376
      %2401 = vmatpush1.msra.mxu0 %v2375
      %2402 = vmatprep.subr.mxu0 %v2378
      %2403 = vmatpush1.msra.mxu0 %v2377
      %2404 = vmatprep.subr.mxu0 0.0
      %2405 = vmatpush1.msra.mxu0 0.0
      %2406 = vmatprep.subr.mxu0 0.0
      %2407 = vmatpush1.msra.mxu0 0.0
      %2408 = vmatprep.subr.mxu0 0.0
      %2409 = vmatpush1.msra.mxu0 0.0
      %2410 = vmatprep.subr.mxu0 0.0
      %2411 = vmatpush1.msra.mxu0 0.0
      %2412 = vmatprep.subr.mxu0 0.0
      %2413 = vmatpush1.msra.mxu0 0.0
      %2414 = vmatprep.subr.mxu0 0.0
      %2415 = vmatpush1.msra.mxu0 0.0
      %2416 = vmatprep.subr.mxu0 0.0
      %2417 = vmatpush1.msra.mxu0 0.0
      %2418 = vmatprep.subr.mxu0 0.0
      %2419 = vmatpush1.msra.mxu0 0.0
      %2420 = vmatprep.subr.mxu0 0.0
      %2421 = vmatpush1.msra.mxu0 0.0
      %2422 = vmatprep.subr.mxu0 0.0
      %2423 = vmatpush1.msra.mxu0 0.0
      %2424 = vmatprep.subr.mxu0 0.0
      %2425 = vmatpush1.msra.mxu0 0.0
      %2426 = vmatprep.subr.mxu0 0.0
      %2427 = vmatpush1.msra.mxu0 0.0
      %2428 = vmatprep.subr.mxu0 0.0
      %2429 = vmatpush1.msra.mxu0 0.0
      %2430 = vmatprep.subr.mxu0 0.0
      %2431 = vmatpush1.msra.mxu0 0.0
      %2432 = vmatprep.subr.mxu0 0.0
      %2433 = vmatpush1.msra.mxu0 0.0
      %2434 = vmatprep.subr.mxu0 0.0
      %2435 = vmatpush1.msra.mxu0 0.0
      %2436 = vmatprep.subr.mxu0 0.0
      %2437 = vmatpush1.msra.mxu0 0.0
      %2438 = vmatprep.subr.mxu0 0.0
      %2439 = vmatpush1.msra.mxu0 0.0
      %2440 = vmatprep.subr.mxu0 0.0
      %2441 = vmatpush1.msra.mxu0 0.0
      %2442 = vmatprep.subr.mxu0 0.0
      %2443 = vmatpush1.msra.mxu0 0.0
      %2444 = vmatprep.subr.mxu0 0.0
      %2445 = vmatpush1.msra.mxu0 0.0
      %2446 = vmatprep.subr.mxu0 0.0
      %2447 = vmatpush1.msra.mxu0 0.0
      %2448 = vmatprep.subr.mxu0 0.0
      %2449 = vmatpush1.msra.mxu0 0.0
      %2450 = vmatprep.subr.mxu0 0.0
      %2451 = vmatpush1.msra.mxu0 0.0
      %2452 = vmatprep.subr.mxu0 0.0
      %2453 = vmatpush1.msra.mxu0 0.0
      %2454 = vmatprep.subr.mxu0 0.0
      %2455 = vmatpush1.msra.mxu0 0.0
      %2456 = vmatprep.subr.mxu0 0.0
      %2457 = vmatpush1.msra.mxu0 0.0
      %2458 = vmatprep.subr.mxu0 0.0
      %2459 = vmatpush1.msra.mxu0 0.0
      %2460 = vmatprep.mubr.f32.mxu0 0.0
      %2461 = vmatmul.mubr.f32.gmra.mrb[0].mxu0 %v2385
      %v2462 = vpop.f32.mrb[0].mxu0
      %v2463 = vadd.f32 0.0, %v2462
      %v2464 = vpop.f32.mrb[0].mxu0
      %v2465 = vadd.f32 0.0, %v2464
      %2466 = vmatprep.mubr.f32.mxu0 0.0
      %2467 = vmatmul.mubr.f32.gmra.mrb[0].mxu0 %v2388
      %v2468 = vpop.f32.mrb[0].mxu0
      %v2469 = vadd.f32 0.0, %v2468
      %v2470 = vpop.f32.mrb[0].mxu0
      %v2471 = vadd.f32 0.0, %v2470
      %2472 = vmatprep.mubr.f32.mxu0 0.0
      %2473 = vmatmul.mubr.f32.gmra.mrb[0].mxu0 %v2391
      %v2474 = vpop.f32.mrb[0].mxu0
      %v2475 = vadd.f32 0.0, %v2474
      %v2476 = vpop.f32.mrb[0].mxu0
      %v2477 = vadd.f32 0.0, %v2476
      %2478 = vmatprep.mubr.f32.mxu0 0.0
      %2479 = vmatmul.mubr.f32.gmra.mrb[0].mxu0 %v2394
      %v2480 = vpop.f32.mrb[0].mxu0
      %v2481 = vadd.f32 0.0, %v2480
      %v2482 = vpop.f32.mrb[0].mxu0
      %v2483 = vadd.f32 0.0, %v2482
      %2484 = vdwg.mxu0
      %v2485 = vadd.f32 %v2339, %v2463
      %v2486 = vadd.f32 %v2340, %v2465
      %v2487 = vadd.f32 %v2341, %v2469
      %v2488 = vadd.f32 %v2342, %v2471
      %v2489 = vadd.f32 %v2343, %v2475
      %v2490 = vadd.f32 %v2344, %v2477
      %v2491 = vadd.f32 %v2345, %v2481
      %v2492 = vadd.f32 %v2346, %v2483
      %2493 = vrot.lane.b32.xlu0 %v1804, 127
      %v2494 = vpop.permute.xlu0 %2493
      %2495 = vrot.lane.b32.xlu0 %v1806, 127
      %v2496 = vpop.permute.xlu0 %2495
      %2497 = vrot.lane.b32.xlu0 %v1808, 127
      %v2498 = vpop.permute.xlu0 %2497
      %2499 = vrot.lane.b32.xlu0 %v1810, 127
      %v2500 = vpop.permute.xlu0 %2499
      %2501 = vrot.lane.b32.xlu0 %v1805, 127
      %v2502 = vpop.permute.xlu0 %2501
      %2503 = vrot.lane.b32.xlu0 %v1807, 127
      %v2504 = vpop.permute.xlu0 %2503
      %2505 = vrot.lane.b32.xlu0 %v1809, 127
      %v2506 = vpop.permute.xlu0 %2505
      %2507 = vrot.lane.b32.xlu0 %v1811, 127
      %v2508 = vpop.permute.xlu0 %2507
      %v2509 = vsel %vm1160, %v2494, %v2502
      %v2510 = vsel %vm1160, %v2496, %v2504
      %v2511 = vsel %vm1160, %v2498, %v2506
      %v2512 = vsel %vm1160, %v2500, %v2508
      %v2513 = vsel %vm1160, %v2502, %v2494
      %v2514 = vsel %vm1160, %v2504, %v2496
      %v2515 = vsel %vm1160, %v2506, %v2498
      %v2516 = vsel %vm1160, %v2508, %v2500
      %v2517 = vmul.f32 %v2509, %v1172
      %v2518 = vmul.f32 %v2513, %v1176
      %v2519 = vmul.f32 %v2510, %v1172
      %v2520 = vmul.f32 %v2514, %v1176
      %v2521 = vmul.f32 %v2511, %v1172
      %v2522 = vmul.f32 %v2515, %v1176
      %v2523 = vmul.f32 %v2512, %v1172
      %v2524 = vmul.f32 %v2516, %v1176
      %s2525 = scalar_lea.vmem %s5, 160
      %v2526 = vld [vmem:[%s2525] sm:$0xff]
      %v2527 = vld [vmem:[%s2525 + $0x8] sm:$0xff]
      %v2528 = vld [vmem:[%s2525 + $0x10] sm:$0xff]
      %v2529 = vld [vmem:[%s2525 + $0x18] sm:$0xff]
      %v2531 = vsel %vm476, %v2526, 0
      %v2534 = vsel %vm476, %v2527, 0
      %v2537 = vsel %vm476, %v2528, 0
      %v2540 = vsel %vm476, %v2529, 0
      %2542 = vmatprep.subr.mxu0 %v2518
      %2543 = vmatpush1.msra.mxu0 %v2517
      %2544 = vmatprep.subr.mxu0 %v2520
      %2545 = vmatpush1.msra.mxu0 %v2519
      %2546 = vmatprep.subr.mxu0 %v2522
      %2547 = vmatpush1.msra.mxu0 %v2521
      %2548 = vmatprep.subr.mxu0 %v2524
      %2549 = vmatpush1.msra.mxu0 %v2523
      %2550 = vmatprep.subr.mxu0 0.0
      %2551 = vmatpush1.msra.mxu0 0.0
      %2552 = vmatprep.subr.mxu0 0.0
      %2553 = vmatpush1.msra.mxu0 0.0
      %2554 = vmatprep.subr.mxu0 0.0
      %2555 = vmatpush1.msra.mxu0 0.0
      %2556 = vmatprep.subr.mxu0 0.0
      %2557 = vmatpush1.msra.mxu0 0.0
      %2558 = vmatprep.subr.mxu0 0.0
      %2559 = vmatpush1.msra.mxu0 0.0
      %2560 = vmatprep.subr.mxu0 0.0
      %2561 = vmatpush1.msra.mxu0 0.0
      %2562 = vmatprep.subr.mxu0 0.0
      %2563 = vmatpush1.msra.mxu0 0.0
      %2564 = vmatprep.subr.mxu0 0.0
      %2565 = vmatpush1.msra.mxu0 0.0
      %2566 = vmatprep.subr.mxu0 0.0
      %2567 = vmatpush1.msra.mxu0 0.0
      %2568 = vmatprep.subr.mxu0 0.0
      %2569 = vmatpush1.msra.mxu0 0.0
      %2570 = vmatprep.subr.mxu0 0.0
      %2571 = vmatpush1.msra.mxu0 0.0
      %2572 = vmatprep.subr.mxu0 0.0
      %2573 = vmatpush1.msra.mxu0 0.0
      %2574 = vmatprep.subr.mxu0 0.0
      %2575 = vmatpush1.msra.mxu0 0.0
      %2576 = vmatprep.subr.mxu0 0.0
      %2577 = vmatpush1.msra.mxu0 0.0
      %2578 = vmatprep.subr.mxu0 0.0
      %2579 = vmatpush1.msra.mxu0 0.0
      %2580 = vmatprep.subr.mxu0 0.0
      %2581 = vmatpush1.msra.mxu0 0.0
      %2582 = vmatprep.subr.mxu0 0.0
      %2583 = vmatpush1.msra.mxu0 0.0
      %2584 = vmatprep.subr.mxu0 0.0
      %2585 = vmatpush1.msra.mxu0 0.0
      %2586 = vmatprep.subr.mxu0 0.0
      %2587 = vmatpush1.msra.mxu0 0.0
      %2588 = vmatprep.subr.mxu0 0.0
      %2589 = vmatpush1.msra.mxu0 0.0
      %2590 = vmatprep.subr.mxu0 0.0
      %2591 = vmatpush1.msra.mxu0 0.0
      %2592 = vmatprep.subr.mxu0 0.0
      %2593 = vmatpush1.msra.mxu0 0.0
      %2594 = vmatprep.subr.mxu0 0.0
      %2595 = vmatpush1.msra.mxu0 0.0
      %2596 = vmatprep.subr.mxu0 0.0
      %2597 = vmatpush1.msra.mxu0 0.0
      %2598 = vmatprep.subr.mxu0 0.0
      %2599 = vmatpush1.msra.mxu0 0.0
      %2600 = vmatprep.subr.mxu0 0.0
      %2601 = vmatpush1.msra.mxu0 0.0
      %2602 = vmatprep.subr.mxu0 0.0
      %2603 = vmatpush1.msra.mxu0 0.0
      %2604 = vmatprep.subr.mxu0 0.0
      %2605 = vmatpush1.msra.mxu0 0.0
      %2606 = vmatprep.mubr.f32.mxu0 0.0
      %2607 = vmatmul.mubr.f32.gmra.mrb[0].mxu0 %v2531
      %v2608 = vpop.f32.mrb[0].mxu0
      %v2609 = vadd.f32 0.0, %v2608
      %v2610 = vpop.f32.mrb[0].mxu0
      %v2611 = vadd.f32 0.0, %v2610
      %2612 = vmatprep.mubr.f32.mxu0 0.0
      %2613 = vmatmul.mubr.f32.gmra.mrb[0].mxu0 %v2534
      %v2614 = vpop.f32.mrb[0].mxu0
      %v2615 = vadd.f32 0.0, %v2614
      %v2616 = vpop.f32.mrb[0].mxu0
      %v2617 = vadd.f32 0.0, %v2616
      %2618 = vmatprep.mubr.f32.mxu0 0.0
      %2619 = vmatmul.mubr.f32.gmra.mrb[0].mxu0 %v2537
      %v2620 = vpop.f32.mrb[0].mxu0
      %v2621 = vadd.f32 0.0, %v2620
      %v2622 = vpop.f32.mrb[0].mxu0
      %v2623 = vadd.f32 0.0, %v2622
      %2624 = vmatprep.mubr.f32.mxu0 0.0
      %2625 = vmatmul.mubr.f32.gmra.mrb[0].mxu0 %v2540
      %v2626 = vpop.f32.mrb[0].mxu0
      %v2627 = vadd.f32 0.0, %v2626
      %v2628 = vpop.f32.mrb[0].mxu0
      %v2629 = vadd.f32 0.0, %v2628
      %2630 = vdwg.mxu0
      %v2631 = vadd.f32 %v2485, %v2609
      %v2632 = vadd.f32 %v2486, %v2611
      %v2633 = vadd.f32 %v2487, %v2615
      %v2634 = vadd.f32 %v2488, %v2617
      %v2635 = vadd.f32 %v2489, %v2621
      %v2636 = vadd.f32 %v2490, %v2623
      %v2637 = vadd.f32 %v2491, %v2627
      %v2638 = vadd.f32 %v2492, %v2629
      %2639 = vrot.lane.b32.xlu0 %v1804, 113
      %v2640 = vpop.permute.xlu0 %2639
      %2641 = vrot.lane.b32.xlu0 %v1806, 113
      %v2642 = vpop.permute.xlu0 %2641
      %2643 = vrot.lane.b32.xlu0 %v1808, 113
      %v2644 = vpop.permute.xlu0 %2643
      %2645 = vrot.lane.b32.xlu0 %v1810, 113
      %v2646 = vpop.permute.xlu0 %2645
      %2647 = vrot.lane.b32.xlu0 %v1805, 113
      %v2648 = vpop.permute.xlu0 %2647
      %2649 = vrot.lane.b32.xlu0 %v1807, 113
      %v2650 = vpop.permute.xlu0 %2649
      %2651 = vrot.lane.b32.xlu0 %v1809, 113
      %v2652 = vpop.permute.xlu0 %2651
      %2653 = vrot.lane.b32.xlu0 %v1811, 113
      %v2654 = vpop.permute.xlu0 %2653
      %v2655 = vsel %vm1315, %v2640, %v2648
      %v2656 = vsel %vm1315, %v2642, %v2650
      %v2657 = vsel %vm1315, %v2644, %v2652
      %v2658 = vsel %vm1315, %v2646, %v2654
      %v2659 = vsel %vm1315, %v2648, %v2640
      %v2660 = vsel %vm1315, %v2650, %v2642
      %v2661 = vsel %vm1315, %v2652, %v2644
      %v2662 = vsel %vm1315, %v2654, %v2646
      %v2663 = vmul.f32 %v2655, %v1327
      %v2664 = vmul.f32 %v2659, %v1331
      %v2665 = vmul.f32 %v2656, %v1327
      %v2666 = vmul.f32 %v2660, %v1331
      %v2667 = vmul.f32 %v2657, %v1327
      %v2668 = vmul.f32 %v2661, %v1331
      %v2669 = vmul.f32 %v2658, %v1327
      %v2670 = vmul.f32 %v2662, %v1331
      %s2671 = scalar_lea.vmem %s5, 192
      %v2672 = vld [vmem:[%s2671] sm:$0xff]
      %v2673 = vld [vmem:[%s2671 + $0x8] sm:$0xff]
      %v2674 = vld [vmem:[%s2671 + $0x10] sm:$0xff]
      %v2675 = vld [vmem:[%s2671 + $0x18] sm:$0xff]
      %v2677 = vsel %vm476, %v2672, 0
      %v2680 = vsel %vm476, %v2673, 0
      %v2683 = vsel %vm476, %v2674, 0
      %v2686 = vsel %vm476, %v2675, 0
      %2688 = vmatprep.subr.mxu0 %v2664
      %2689 = vmatpush1.msra.mxu0 %v2663
      %2690 = vmatprep.subr.mxu0 %v2666
      %2691 = vmatpush1.msra.mxu0 %v2665
      %2692 = vmatprep.subr.mxu0 %v2668
      %2693 = vmatpush1.msra.mxu0 %v2667
      %2694 = vmatprep.subr.mxu0 %v2670
      %2695 = vmatpush1.msra.mxu0 %v2669
      %2696 = vmatprep.subr.mxu0 0.0
      %2697 = vmatpush1.msra.mxu0 0.0
      %2698 = vmatprep.subr.mxu0 0.0
      %2699 = vmatpush1.msra.mxu0 0.0
      %2700 = vmatprep.subr.mxu0 0.0
      %2701 = vmatpush1.msra.mxu0 0.0
      %2702 = vmatprep.subr.mxu0 0.0
      %2703 = vmatpush1.msra.mxu0 0.0
      %2704 = vmatprep.subr.mxu0 0.0
      %2705 = vmatpush1.msra.mxu0 0.0
      %2706 = vmatprep.subr.mxu0 0.0
      %2707 = vmatpush1.msra.mxu0 0.0
      %2708 = vmatprep.subr.mxu0 0.0
      %2709 = vmatpush1.msra.mxu0 0.0
      %2710 = vmatprep.subr.mxu0 0.0
      %2711 = vmatpush1.msra.mxu0 0.0
      %2712 = vmatprep.subr.mxu0 0.0
      %2713 = vmatpush1.msra.mxu0 0.0
      %2714 = vmatprep.subr.mxu0 0.0
      %2715 = vmatpush1.msra.mxu0 0.0
      %2716 = vmatprep.subr.mxu0 0.0
      %2717 = vmatpush1.msra.mxu0 0.0
      %2718 = vmatprep.subr.mxu0 0.0
      %2719 = vmatpush1.msra.mxu0 0.0
      %2720 = vmatprep.subr.mxu0 0.0
      %2721 = vmatpush1.msra.mxu0 0.0
      %2722 = vmatprep.subr.mxu0 0.0
      %2723 = vmatpush1.msra.mxu0 0.0
      %2724 = vmatprep.subr.mxu0 0.0
      %2725 = vmatpush1.msra.mxu0 0.0
      %2726 = vmatprep.subr.mxu0 0.0
      %2727 = vmatpush1.msra.mxu0 0.0
      %2728 = vmatprep.subr.mxu0 0.0
      %2729 = vmatpush1.msra.mxu0 0.0
      %2730 = vmatprep.subr.mxu0 0.0
      %2731 = vmatpush1.msra.mxu0 0.0
      %2732 = vmatprep.subr.mxu0 0.0
      %2733 = vmatpush1.msra.mxu0 0.0
      %2734 = vmatprep.subr.mxu0 0.0
      %2735 = vmatpush1.msra.mxu0 0.0
      %2736 = vmatprep.subr.mxu0 0.0
      %2737 = vmatpush1.msra.mxu0 0.0
      %2738 = vmatprep.subr.mxu0 0.0
      %2739 = vmatpush1.msra.mxu0 0.0
      %2740 = vmatprep.subr.mxu0 0.0
      %2741 = vmatpush1.msra.mxu0 0.0
      %2742 = vmatprep.subr.mxu0 0.0
      %2743 = vmatpush1.msra.mxu0 0.0
      %2744 = vmatprep.subr.mxu0 0.0
      %2745 = vmatpush1.msra.mxu0 0.0
      %2746 = vmatprep.subr.mxu0 0.0
      %2747 = vmatpush1.msra.mxu0 0.0
      %2748 = vmatprep.subr.mxu0 0.0
      %2749 = vmatpush1.msra.mxu0 0.0
      %2750 = vmatprep.subr.mxu0 0.0
      %2751 = vmatpush1.msra.mxu0 0.0
      %2752 = vmatprep.mubr.f32.mxu0 0.0
      %2753 = vmatmul.mubr.f32.gmra.mrb[0].mxu0 %v2677
      %v2754 = vpop.f32.mrb[0].mxu0
      %v2755 = vadd.f32 0.0, %v2754
      %v2756 = vpop.f32.mrb[0].mxu0
      %v2757 = vadd.f32 0.0, %v2756
      %2758 = vmatprep.mubr.f32.mxu0 0.0
      %2759 = vmatmul.mubr.f32.gmra.mrb[0].mxu0 %v2680
      %v2760 = vpop.f32.mrb[0].mxu0
      %v2761 = vadd.f32 0.0, %v2760
      %v2762 = vpop.f32.mrb[0].mxu0
      %v2763 = vadd.f32 0.0, %v2762
      %2764 = vmatprep.mubr.f32.mxu0 0.0
      %2765 = vmatmul.mubr.f32.gmra.mrb[0].mxu0 %v2683
      %v2766 = vpop.f32.mrb[0].mxu0
      %v2767 = vadd.f32 0.0, %v2766
      %v2768 = vpop.f32.mrb[0].mxu0
      %v2769 = vadd.f32 0.0, %v2768
      %2770 = vmatprep.mubr.f32.mxu0 0.0
      %2771 = vmatmul.mubr.f32.gmra.mrb[0].mxu0 %v2686
      %v2772 = vpop.f32.mrb[0].mxu0
      %v2773 = vadd.f32 0.0, %v2772
      %v2774 = vpop.f32.mrb[0].mxu0
      %v2775 = vadd.f32 0.0, %v2774
      %2776 = vdwg.mxu0
      %v2777 = vadd.f32 %v2631, %v2755
      %v2778 = vadd.f32 %v2632, %v2757
      %v2779 = vadd.f32 %v2633, %v2761
      %v2780 = vadd.f32 %v2634, %v2763
      %v2781 = vadd.f32 %v2635, %v2767
      %v2782 = vadd.f32 %v2636, %v2769
      %v2783 = vadd.f32 %v2637, %v2773
      %v2784 = vadd.f32 %v2638, %v2775
      %2785 = vrot.lane.b32.xlu0 %v1804, 112
      %v2786 = vpop.permute.xlu0 %2785
      %2787 = vrot.lane.b32.xlu0 %v1806, 112
      %v2788 = vpop.permute.xlu0 %2787
      %2789 = vrot.lane.b32.xlu0 %v1808, 112
      %v2790 = vpop.permute.xlu0 %2789
      %2791 = vrot.lane.b32.xlu0 %v1810, 112
      %v2792 = vpop.permute.xlu0 %2791
      %2793 = vrot.lane.b32.xlu0 %v1805, 112
      %v2794 = vpop.permute.xlu0 %2793
      %2795 = vrot.lane.b32.xlu0 %v1807, 112
      %v2796 = vpop.permute.xlu0 %2795
      %2797 = vrot.lane.b32.xlu0 %v1809, 112
      %v2798 = vpop.permute.xlu0 %2797
      %2799 = vrot.lane.b32.xlu0 %v1811, 112
      %v2800 = vpop.permute.xlu0 %2799
      %v2801 = vsel %vm1470, %v2786, %v2794
      %v2802 = vsel %vm1470, %v2788, %v2796
      %v2803 = vsel %vm1470, %v2790, %v2798
      %v2804 = vsel %vm1470, %v2792, %v2800
      %v2805 = vsel %vm1470, %v2794, %v2786
      %v2806 = vsel %vm1470, %v2796, %v2788
      %v2807 = vsel %vm1470, %v2798, %v2790
      %v2808 = vsel %vm1470, %v2800, %v2792
      %v2809 = vmul.f32 %v2801, %v1482
      %v2810 = vmul.f32 %v2805, %v1486
      %v2811 = vmul.f32 %v2802, %v1482
      %v2812 = vmul.f32 %v2806, %v1486
      %v2813 = vmul.f32 %v2803, %v1482
      %v2814 = vmul.f32 %v2807, %v1486
      %v2815 = vmul.f32 %v2804, %v1482
      %v2816 = vmul.f32 %v2808, %v1486
      %s2817 = scalar_lea.vmem %s5, 224
      %v2818 = vld [vmem:[%s2817] sm:$0xff]
      %v2819 = vld [vmem:[%s2817 + $0x8] sm:$0xff]
      %v2820 = vld [vmem:[%s2817 + $0x10] sm:$0xff]
      %v2821 = vld [vmem:[%s2817 + $0x18] sm:$0xff]
      %v2823 = vsel %vm476, %v2818, 0
      %v2826 = vsel %vm476, %v2819, 0
      %v2829 = vsel %vm476, %v2820, 0
      %v2832 = vsel %vm476, %v2821, 0
      %2834 = vmatprep.subr.mxu0 %v2810
      %2835 = vmatpush1.msra.mxu0 %v2809
      %2836 = vmatprep.subr.mxu0 %v2812
      %2837 = vmatpush1.msra.mxu0 %v2811
      %2838 = vmatprep.subr.mxu0 %v2814
      %2839 = vmatpush1.msra.mxu0 %v2813
      %2840 = vmatprep.subr.mxu0 %v2816
      %2841 = vmatpush1.msra.mxu0 %v2815
      %2842 = vmatprep.subr.mxu0 0.0
      %2843 = vmatpush1.msra.mxu0 0.0
      %2844 = vmatprep.subr.mxu0 0.0
      %2845 = vmatpush1.msra.mxu0 0.0
      %2846 = vmatprep.subr.mxu0 0.0
      %2847 = vmatpush1.msra.mxu0 0.0
      %2848 = vmatprep.subr.mxu0 0.0
      %2849 = vmatpush1.msra.mxu0 0.0
      %2850 = vmatprep.subr.mxu0 0.0
      %2851 = vmatpush1.msra.mxu0 0.0
      %2852 = vmatprep.subr.mxu0 0.0
      %2853 = vmatpush1.msra.mxu0 0.0
      %2854 = vmatprep.subr.mxu0 0.0
      %2855 = vmatpush1.msra.mxu0 0.0
      %2856 = vmatprep.subr.mxu0 0.0
      %2857 = vmatpush1.msra.mxu0 0.0
      %2858 = vmatprep.subr.mxu0 0.0
      %2859 = vmatpush1.msra.mxu0 0.0
      %2860 = vmatprep.subr.mxu0 0.0
      %2861 = vmatpush1.msra.mxu0 0.0
      %2862 = vmatprep.subr.mxu0 0.0
      %2863 = vmatpush1.msra.mxu0 0.0
      %2864 = vmatprep.subr.mxu0 0.0
      %2865 = vmatpush1.msra.mxu0 0.0
      %2866 = vmatprep.subr.mxu0 0.0
      %2867 = vmatpush1.msra.mxu0 0.0
      %2868 = vmatprep.subr.mxu0 0.0
      %2869 = vmatpush1.msra.mxu0 0.0
      %2870 = vmatprep.subr.mxu0 0.0
      %2871 = vmatpush1.msra.mxu0 0.0
      %2872 = vmatprep.subr.mxu0 0.0
      %2873 = vmatpush1.msra.mxu0 0.0
      %2874 = vmatprep.subr.mxu0 0.0
      %2875 = vmatpush1.msra.mxu0 0.0
      %2876 = vmatprep.subr.mxu0 0.0
      %2877 = vmatpush1.msra.mxu0 0.0
      %2878 = vmatprep.subr.mxu0 0.0
      %2879 = vmatpush1.msra.mxu0 0.0
      %2880 = vmatprep.subr.mxu0 0.0
      %2881 = vmatpush1.msra.mxu0 0.0
      %2882 = vmatprep.subr.mxu0 0.0
      %2883 = vmatpush1.msra.mxu0 0.0
      %2884 = vmatprep.subr.mxu0 0.0
      %2885 = vmatpush1.msra.mxu0 0.0
      %2886 = vmatprep.subr.mxu0 0.0
      %2887 = vmatpush1.msra.mxu0 0.0
      %2888 = vmatprep.subr.mxu0 0.0
      %2889 = vmatpush1.msra.mxu0 0.0
      %2890 = vmatprep.subr.mxu0 0.0
      %2891 = vmatpush1.msra.mxu0 0.0
      %2892 = vmatprep.subr.mxu0 0.0
      %2893 = vmatpush1.msra.mxu0 0.0
      %2894 = vmatprep.subr.mxu0 0.0
      %2895 = vmatpush1.msra.mxu0 0.0
      %2896 = vmatprep.subr.mxu0 0.0
      %2897 = vmatpush1.msra.mxu0 0.0
      %2898 = vmatprep.mubr.f32.mxu0 0.0
      %2899 = vmatmul.mubr.f32.gmra.mrb[0].mxu0 %v2823
      %v2900 = vpop.f32.mrb[0].mxu0
      %v2901 = vadd.f32 0.0, %v2900
      %v2902 = vpop.f32.mrb[0].mxu0
      %v2903 = vadd.f32 0.0, %v2902
      %2904 = vmatprep.mubr.f32.mxu0 0.0
      %2905 = vmatmul.mubr.f32.gmra.mrb[0].mxu0 %v2826
      %v2906 = vpop.f32.mrb[0].mxu0
      %v2907 = vadd.f32 0.0, %v2906
      %v2908 = vpop.f32.mrb[0].mxu0
      %v2909 = vadd.f32 0.0, %v2908
      %2910 = vmatprep.mubr.f32.mxu0 0.0
      %2911 = vmatmul.mubr.f32.gmra.mrb[0].mxu0 %v2829
      %v2912 = vpop.f32.mrb[0].mxu0
      %v2913 = vadd.f32 0.0, %v2912
      %v2914 = vpop.f32.mrb[0].mxu0
      %v2915 = vadd.f32 0.0, %v2914
      %2916 = vmatprep.mubr.f32.mxu0 0.0
      %2917 = vmatmul.mubr.f32.gmra.mrb[0].mxu0 %v2832
      %v2918 = vpop.f32.mrb[0].mxu0
      %v2919 = vadd.f32 0.0, %v2918
      %v2920 = vpop.f32.mrb[0].mxu0
      %v2921 = vadd.f32 0.0, %v2920
      %2922 = vdwg.mxu0
      %v2923 = vadd.f32 %v2777, %v2901
      %v2924 = vadd.f32 %v2778, %v2903
      %v2925 = vadd.f32 %v2779, %v2907
      %v2926 = vadd.f32 %v2780, %v2909
      %v2927 = vadd.f32 %v2781, %v2913
      %v2928 = vadd.f32 %v2782, %v2915
      %v2929 = vadd.f32 %v2783, %v2919
      %v2930 = vadd.f32 %v2784, %v2921
      %2931 = vrot.lane.b32.xlu0 %v1804, 111
      %v2932 = vpop.permute.xlu0 %2931
      %2933 = vrot.lane.b32.xlu0 %v1806, 111
      %v2934 = vpop.permute.xlu0 %2933
      %2935 = vrot.lane.b32.xlu0 %v1808, 111
      %v2936 = vpop.permute.xlu0 %2935
      %2937 = vrot.lane.b32.xlu0 %v1810, 111
      %v2938 = vpop.permute.xlu0 %2937
      %2939 = vrot.lane.b32.xlu0 %v1805, 111
      %v2940 = vpop.permute.xlu0 %2939
      %2941 = vrot.lane.b32.xlu0 %v1807, 111
      %v2942 = vpop.permute.xlu0 %2941
      %2943 = vrot.lane.b32.xlu0 %v1809, 111
      %v2944 = vpop.permute.xlu0 %2943
      %2945 = vrot.lane.b32.xlu0 %v1811, 111
      %v2946 = vpop.permute.xlu0 %2945
      %v2947 = vsel %vm1625, %v2932, %v2940
      %v2948 = vsel %vm1625, %v2934, %v2942
      %v2949 = vsel %vm1625, %v2936, %v2944
      %v2950 = vsel %vm1625, %v2938, %v2946
      %v2951 = vsel %vm1625, %v2940, %v2932
      %v2952 = vsel %vm1625, %v2942, %v2934
      %v2953 = vsel %vm1625, %v2944, %v2936
      %v2954 = vsel %vm1625, %v2946, %v2938
      %v2955 = vmul.f32 %v2947, %v1637
      %v2956 = vmul.f32 %v2951, %v1641
      %v2957 = vmul.f32 %v2948, %v1637
      %v2958 = vmul.f32 %v2952, %v1641
      %v2959 = vmul.f32 %v2949, %v1637
      %v2960 = vmul.f32 %v2953, %v1641
      %v2961 = vmul.f32 %v2950, %v1637
      %v2962 = vmul.f32 %v2954, %v1641
      %s2963 = scalar_lea.vmem %s5, 256
      %v2964 = vld [vmem:[%s2963] sm:$0xff]
      %v2965 = vld [vmem:[%s2963 + $0x8] sm:$0xff]
      %v2966 = vld [vmem:[%s2963 + $0x10] sm:$0xff]
      %v2967 = vld [vmem:[%s2963 + $0x18] sm:$0xff]
      %v2969 = vsel %vm476, %v2964, 0
      %v2972 = vsel %vm476, %v2965, 0
      %v2975 = vsel %vm476, %v2966, 0
      %v2978 = vsel %vm476, %v2967, 0
      %2980 = vmatprep.subr.mxu0 %v2956
      %2981 = vmatpush1.msra.mxu0 %v2955
      %2982 = vmatprep.subr.mxu0 %v2958
      %2983 = vmatpush1.msra.mxu0 %v2957
      %2984 = vmatprep.subr.mxu0 %v2960
      %2985 = vmatpush1.msra.mxu0 %v2959
      %2986 = vmatprep.subr.mxu0 %v2962
      %2987 = vmatpush1.msra.mxu0 %v2961
      %2988 = vmatprep.subr.mxu0 0.0
      %2989 = vmatpush1.msra.mxu0 0.0
      %2990 = vmatprep.subr.mxu0 0.0
      %2991 = vmatpush1.msra.mxu0 0.0
      %2992 = vmatprep.subr.mxu0 0.0
      %2993 = vmatpush1.msra.mxu0 0.0
      %2994 = vmatprep.subr.mxu0 0.0
      %2995 = vmatpush1.msra.mxu0 0.0
      %2996 = vmatprep.subr.mxu0 0.0
      %2997 = vmatpush1.msra.mxu0 0.0
      %2998 = vmatprep.subr.mxu0 0.0
      %2999 = vmatpush1.msra.mxu0 0.0
      %3000 = vmatprep.subr.mxu0 0.0
      %3001 = vmatpush1.msra.mxu0 0.0
      %3002 = vmatprep.subr.mxu0 0.0
      %3003 = vmatpush1.msra.mxu0 0.0
      %3004 = vmatprep.subr.mxu0 0.0
      %3005 = vmatpush1.msra.mxu0 0.0
      %3006 = vmatprep.subr.mxu0 0.0
      %3007 = vmatpush1.msra.mxu0 0.0
      %3008 = vmatprep.subr.mxu0 0.0
      %3009 = vmatpush1.msra.mxu0 0.0
      %3010 = vmatprep.subr.mxu0 0.0
      %3011 = vmatpush1.msra.mxu0 0.0
      %3012 = vmatprep.subr.mxu0 0.0
      %3013 = vmatpush1.msra.mxu0 0.0
      %3014 = vmatprep.subr.mxu0 0.0
      %3015 = vmatpush1.msra.mxu0 0.0
      %3016 = vmatprep.subr.mxu0 0.0
      %3017 = vmatpush1.msra.mxu0 0.0
      %3018 = vmatprep.subr.mxu0 0.0
      %3019 = vmatpush1.msra.mxu0 0.0
      %3020 = vmatprep.subr.mxu0 0.0
      %3021 = vmatpush1.msra.mxu0 0.0
      %3022 = vmatprep.subr.mxu0 0.0
      %3023 = vmatpush1.msra.mxu0 0.0
      %3024 = vmatprep.subr.mxu0 0.0
      %3025 = vmatpush1.msra.mxu0 0.0
      %3026 = vmatprep.subr.mxu0 0.0
      %3027 = vmatpush1.msra.mxu0 0.0
      %3028 = vmatprep.subr.mxu0 0.0
      %3029 = vmatpush1.msra.mxu0 0.0
      %3030 = vmatprep.subr.mxu0 0.0
      %3031 = vmatpush1.msra.mxu0 0.0
      %3032 = vmatprep.subr.mxu0 0.0
      %3033 = vmatpush1.msra.mxu0 0.0
      %3034 = vmatprep.subr.mxu0 0.0
      %3035 = vmatpush1.msra.mxu0 0.0
      %3036 = vmatprep.subr.mxu0 0.0
      %3037 = vmatpush1.msra.mxu0 0.0
      %3038 = vmatprep.subr.mxu0 0.0
      %3039 = vmatpush1.msra.mxu0 0.0
      %3040 = vmatprep.subr.mxu0 0.0
      %3041 = vmatpush1.msra.mxu0 0.0
      %3042 = vmatprep.subr.mxu0 0.0
      %3043 = vmatpush1.msra.mxu0 0.0
      %3044 = vmatprep.mubr.f32.mxu0 0.0
      %3045 = vmatmul.mubr.f32.gmra.mrb[0].mxu0 %v2969
      %v3046 = vpop.f32.mrb[0].mxu0
      %v3047 = vadd.f32 0.0, %v3046
      %v3048 = vpop.f32.mrb[0].mxu0
      %v3049 = vadd.f32 0.0, %v3048
      %3050 = vmatprep.mubr.f32.mxu0 0.0
      %3051 = vmatmul.mubr.f32.gmra.mrb[0].mxu0 %v2972
      %v3052 = vpop.f32.mrb[0].mxu0
      %v3053 = vadd.f32 0.0, %v3052
      %v3054 = vpop.f32.mrb[0].mxu0
      %v3055 = vadd.f32 0.0, %v3054
      %3056 = vmatprep.mubr.f32.mxu0 0.0
      %3057 = vmatmul.mubr.f32.gmra.mrb[0].mxu0 %v2975
      %v3058 = vpop.f32.mrb[0].mxu0
      %v3059 = vadd.f32 0.0, %v3058
      %v3060 = vpop.f32.mrb[0].mxu0
      %v3061 = vadd.f32 0.0, %v3060
      %3062 = vmatprep.mubr.f32.mxu0 0.0
      %3063 = vmatmul.mubr.f32.gmra.mrb[0].mxu0 %v2978
      %v3064 = vpop.f32.mrb[0].mxu0
      %v3065 = vadd.f32 0.0, %v3064
      %v3066 = vpop.f32.mrb[0].mxu0
      %v3067 = vadd.f32 0.0, %v3066
      %3068 = vdwg.mxu0
      %v3069 = vadd.f32 %v2923, %v3047
      %v3070 = vadd.f32 %v2924, %v3049
      %v3071 = vadd.f32 %v2925, %v3053
      %v3072 = vadd.f32 %v2926, %v3055
      %v3073 = vadd.f32 %v2927, %v3059
      %v3074 = vadd.f32 %v2928, %v3061
      %v3075 = vadd.f32 %v2929, %v3065
      %v3076 = vadd.f32 %v2930, %v3067
      %v3077 = vld [vmem:[%s6] sm:$0xff]
      %v3078 = vld [vmem:[%s6 + $0x8] sm:$0xff]
      %v3079 = vld [vmem:[%s6 + $0x10] sm:$0xff]
      %v3080 = vld [vmem:[%s6 + $0x18] sm:$0xff]
      %3082 = vset.pattern.permute.xlu0 0
      %3083 = vperm.xlu0 %3082, %v3077
      %v3084 = vpop.permute.xlu0 %3083
      %3087 = vset.pattern.permute.xlu0 0
      %3088 = vperm.xlu0 %3087, %v3078
      %v3089 = vpop.permute.xlu0 %3088
      %3092 = vset.pattern.permute.xlu0 0
      %3093 = vperm.xlu0 %3092, %v3079
      %v3094 = vpop.permute.xlu0 %3093
      %3097 = vset.pattern.permute.xlu0 0
      %3098 = vperm.xlu0 %3097, %v3080
      %v3099 = vpop.permute.xlu0 %3098
      %v3101 = vadd.f32 %v3069, %v3084
      %v3102 = vadd.f32 %v3070, %v3084
      %v3103 = vadd.f32 %v3071, %v3089
      %v3104 = vadd.f32 %v3072, %v3089
      %v3105 = vadd.f32 %v3073, %v3094
      %v3106 = vadd.f32 %v3074, %v3094
      %v3107 = vadd.f32 %v3075, %v3099
      %v3108 = vadd.f32 %v3076, %v3099
      %v3109 = vadd.f32 %v299, %v3101
      %v3110 = vadd.f32 %v300, %v3102
      %v3111 = vadd.f32 %v301, %v3103
      %v3112 = vadd.f32 %v302, %v3104
      %v3113 = vadd.f32 %v303, %v3105
      %v3114 = vadd.f32 %v304, %v3106
      %v3115 = vadd.f32 %v305, %v3107
      %v3116 = vadd.f32 %v306, %v3108
      %3117 = vst [vmem:[%s298] sm:$0xff] %v3109
      %3118 = vst [vmem:[%s298 + $0x8] sm:$0xff] %v3110
      %3119 = vst [vmem:[%s298 + $0x10] sm:$0xff] %v3111
      %3120 = vst [vmem:[%s298 + $0x18] sm:$0xff] %v3112
      %3121 = vst [vmem:[%s298 + $0x20] sm:$0xff] %v3113
      %3122 = vst [vmem:[%s298 + $0x28] sm:$0xff] %v3114
      %3123 = vst [vmem:[%s298 + $0x30] sm:$0xff] %v3115
      %3124 = vst [vmem:[%s298 + $0x38] sm:$0xff] %v3116
      %p3125 = scmp.lt.s32.totalorder %s18, 1
      %s3126 = scalar_select %p3125, %s18, 1
      %s3127 = smul.addr %s3126, 8
      %s3128 = smul.addr %s3127, 8
      %s3129 = scalar_lea.vmem %s7, %s3128
      // Predicated region
      $region49: #{transition_model.1} parent=47 // pred_check
        %p3130 = pneg %p193
      $region50: #{transition_model.1} parent=47 // pred_check_branch
        %3132 = sbr.rel (%p3130) target = $region52
      $region51: #{transition_model.1} parent=47 // pred_region
        _
      $region52: #{transition_model.1} parent=47 // pred_fallthru
        _
    $region48: #{transition_model.1} parent=5 // pred_fallthru
      _
    %p3133 = scmp.le.s32.totalorder 2, %s13
    // Predicated region
    $region53: #{transition_model.1} parent=5 // pred_check
      %p3134 = pneg %p3133
    $region54: #{transition_model.1} parent=5 // pred_check_branch
      %3136 = sbr.rel (%p3134) target = $region56
    $region55: #{transition_model.1} parent=5 // pred_region
      %s3137 = ssub.s32 %s13, 2
      // Predicated region
      $region57: #{transition_model.1} parent=55 // pred_check
        %p3138 = pneg %p199
      $region58: #{transition_model.1} parent=55 // pred_check_branch
        %3140 = sbr.rel (%p3138) target = $region60
      $region59: #{transition_model.1} parent=55 // pred_region
        %p3141 = scmp.lt.s32.totalorder %s19, 1
        %s3142 = scalar_select %p3141, %s19, 1
        %s3143 = smul.addr %s3142, 8
        %s3144 = smul.addr %s3143, 8
        %s3145 = scalar_lea.vmem %s7, %s3144
      $region60: #{transition_model.1} parent=55 // pred_fallthru
        _
    $region56: #{transition_model.1} parent=5 // pred_fallthru
      _
  $region6: #{transition_model.1} parent=0 // loop_footer
    %s17 = sadd.s32 1, %s13
  $region7: #{transition_model.1} parent=0 // loop_footer_branch
    %12 = sbr.rel target = $region3
  $region8: #{transition_model.1} parent=0 // loop_exit
    _

</llo_original>
